<compile_context>
chip_gen: v7x
topology: tpu7x:2x2x1
jax: 0.10.0
libtpu: 0.0.40
codegen_flags: <defaults>
</compile_context>

<pallas_src>
import jax
import jax.numpy as jnp
import numpy as np
from jax import lax
from jax.experimental import pallas as pl
from jax.experimental.pallas import tpu as pltpu

META_IN = 23
META_HIDDEN = 3072
EMBED_DIM = 8
N_TOKENS = 260
NUM_CLASSES = 4
LSTM_IN = N_TOKENS * EMBED_DIM          # 2080
HIDDEN_DIM = 32
GATES = 4 * HIDDEN_DIM                  # 128
FC_OUT = N_TOKENS * NUM_CLASSES         # 1040
FC_PAD = 1152                           # 9*128 -> lane-dense output stores


def _round_up(x, m):
    return (x + m - 1) // m * m


# -------------------- fused forward kernel --------------------
# Per grid step (one chunk of ts timesteps):
#   1. pregates = seq_chunk @ Wih(bf16) + b_lstm          (one MXU matmul)
#   2. chunk 0 only: overwrite pregate row 0 with the folded meta pregate
#      relu(meta @ W1 + b1) @ (W2@Wih) + (b2@Wih + b_lstm)  (fp32)
#   3. serial recurrence: per step only h @ Whh + gate math, h/c in VMEM
#   4. out_chunk = hs @ Wfc(bf16) + bfc                    (lane-dense store)
def _make_fused_kernel(ts):
    def kernel(meta_ref, w1_ref, b1_ref, w2wih_ref, b2f_ref,
               seq_ref, wih_ref, blstm_ref, whh_ref, wfc_ref, bfc_ref,
               out_ref,
               h_ref, c_ref, pg_ref, hs_ref):
        chunk = pl.program_id(0)

        @pl.when(chunk == 0)
        def _():
            h_ref[...] = jnp.zeros_like(h_ref)
            c_ref[...] = jnp.zeros_like(c_ref)

        # 1. Hoisted input projection for the whole chunk (bf16 weight stream).
        pg_ref[...] = (jnp.dot(seq_ref[...].astype(jnp.bfloat16), wih_ref[...],
                               preferred_element_type=jnp.float32)
                       + blstm_ref[...])

        # 2. Folded MetadataEncoder pregate (fp32).  Computed unconditionally
        #    (it is tiny); only the row-0 store is gated on chunk 0.
        h1 = jnp.maximum(jnp.dot(meta_ref[...], w1_ref[...],
                                 preferred_element_type=jnp.float32)
                         + b1_ref[...], 0.0)                       # (1, 3072)
        meta_pg = (jnp.dot(h1, w2wih_ref[...],
                           preferred_element_type=jnp.float32)
                   + b2f_ref[...])                                 # (1, 128)

        @pl.when(chunk == 0)
        def _():
            pg_ref[pl.ds(0, 1), :] = meta_pg

        # 3. Serial LSTM recurrence (PyTorch gate order i, f, g, o).
        H = HIDDEN_DIM

        def step(s, carry):
            h = h_ref[...]
            c = c_ref[...]
            gates = (pg_ref[pl.ds(s, 1), :]
                     + jnp.dot(h, whh_ref[...],
                               preferred_element_type=jnp.float32))  # (1, 128)
            sg = jax.nn.sigmoid(gates)        # one full-width EUP pass
            th = jnp.tanh(gates)              # one full-width EUP pass
            i = sg[:, 0 * H:1 * H]
            f = sg[:, 1 * H:2 * H]
            g = th[:, 2 * H:3 * H]
            o = sg[:, 3 * H:4 * H]
            c_new = f * c + i * g
            h_new = o * jnp.tanh(c_new)
            c_ref[...] = c_new
            h_ref[...] = h_new
            hs_ref[pl.ds(s, 1), :] = h_new
            return carry

        lax.fori_loop(0, ts, step, 0, unroll=(True if ts <= 32 else 8))

        # 4. Deferred FC: one batched matmul, lane-dense (ts, 1152) store.
        out_ref[...] = (jnp.dot(hs_ref[...].astype(jnp.bfloat16), wfc_ref[...],
                                preferred_element_type=jnp.float32)
                        + bfc_ref[...])

    return kernel


def fused_forward(meta_2d, seq, kp, *, max_chunk=128):
    """seq: (T, 2080) fp32 (row 0 is a dummy; its pregate is overwritten)."""
    T = seq.shape[0]
    if T <= max_chunk:
        ts = T                              # full-extent block, no dead steps
        t_pad = T
    else:
        ts = max_chunk                      # 128, divisible by 8
        t_pad = _round_up(T, ts)
        seq = jnp.pad(seq, ((0, t_pad - T), (0, 0)))
    n_chunks = t_pad // ts

    out = pl.pallas_call(
        _make_fused_kernel(ts),
        out_shape=jax.ShapeDtypeStruct((t_pad, FC_PAD), jnp.float32),
        grid_spec=pltpu.PrefetchScalarGridSpec(
            num_scalar_prefetch=0,
            grid=(n_chunks,),
            in_specs=[
                pl.BlockSpec((1, META_IN), lambda c: (0, 0)),
                pl.BlockSpec((META_IN, META_HIDDEN), lambda c: (0, 0)),
                pl.BlockSpec((1, META_HIDDEN), lambda c: (0, 0)),
                pl.BlockSpec((META_HIDDEN, GATES), lambda c: (0, 0)),
                pl.BlockSpec((1, GATES), lambda c: (0, 0)),
                pl.BlockSpec((ts, LSTM_IN), lambda c: (c, 0)),
                pl.BlockSpec((LSTM_IN, GATES), lambda c: (0, 0)),
                pl.BlockSpec((1, GATES), lambda c: (0, 0)),
                pl.BlockSpec((HIDDEN_DIM, GATES), lambda c: (0, 0)),
                pl.BlockSpec((HIDDEN_DIM, FC_PAD), lambda c: (0, 0)),
                pl.BlockSpec((1, FC_PAD), lambda c: (0, 0)),
            ],
            out_specs=pl.BlockSpec((ts, FC_PAD), lambda c: (c, 0)),
            scratch_shapes=[
                pltpu.VMEM((1, HIDDEN_DIM), jnp.float32),   # h carry
                pltpu.VMEM((1, HIDDEN_DIM), jnp.float32),   # c carry
                pltpu.VMEM((ts, GATES), jnp.float32),       # pregates
                pltpu.VMEM((ts, HIDDEN_DIM), jnp.float32),  # hs buffer
            ],
        ),
        compiler_params=pltpu.CompilerParams(
            dimension_semantics=("arbitrary",)),   # serial recurrence
    )(meta_2d, kp["w1"], kp["b1"], kp["w2wih"], kp["b2fold"],
      seq, kp["wih_bf16"], kp["b_lstm"], kp["whh"],
      kp["wfc_bf16_pad"], kp["bfc_pad"])
    return out


# -------------------- parameters --------------------
def init_params(key):
    ks = jax.random.split(key, 10)

    def nrm(k, shape, scale):
        return jax.random.normal(k, shape, jnp.float32) * scale

    return {
        "embed": nrm(ks[0], (NUM_CLASSES, EMBED_DIM), 0.5),
        "w1": nrm(ks[1], (META_IN, META_HIDDEN), 1.0 / np.sqrt(META_IN)),
        "b1": nrm(ks[2], (1, META_HIDDEN), 0.01),
        "w2": nrm(ks[3], (META_HIDDEN, LSTM_IN), 1.0 / np.sqrt(META_HIDDEN)),
        "b2": nrm(ks[4], (1, LSTM_IN), 0.01),
        "wih": nrm(ks[5], (LSTM_IN, GATES), 1.0 / np.sqrt(LSTM_IN)),
        "whh": nrm(ks[6], (HIDDEN_DIM, GATES), 1.0 / np.sqrt(HIDDEN_DIM)),
        # NOTE: equals PyTorch's bias_ih + bias_hh when porting checkpoints.
        "b_lstm": nrm(ks[7], (1, GATES), 0.01),
        "wfc": nrm(ks[8], (HIDDEN_DIM, FC_OUT), 1.0 / np.sqrt(HIDDEN_DIM)),
        "bfc": nrm(ks[9], (1, FC_OUT), 0.01),
    }


def pack_params(p):
    """Kernel-facing layout: W2 folded through Wih (fp32), bf16 Wih/Wfc,
    FC weights column-padded to a 128 multiple."""
    hp = jax.lax.Precision.HIGHEST
    return {
        "embed": p["embed"],
        "w1": p["w1"],
        "b1": p["b1"],
        # enc is only consumed through Wih -> fold offline in fp32.
        "w2wih": jnp.dot(p["w2"], p["wih"], precision=hp),               # (3072, 128)
        "b2fold": jnp.dot(p["b2"], p["wih"], precision=hp) + p["b_lstm"],  # (1, 128)
        "wih_bf16": p["wih"].astype(jnp.bfloat16),
        "b_lstm": p["b_lstm"],
        "whh": p["whh"],
        "wfc_bf16_pad": jnp.pad(
            p["wfc"], ((0, 0), (0, FC_PAD - FC_OUT))).astype(jnp.bfloat16),
        "bfc_pad": jnp.pad(p["bfc"], ((0, 0), (0, FC_PAD - FC_OUT))),
    }


# -------------------- forward wrapper --------------------
@jax.jit
def mtlstm_forward(x, meta, kparams):
    B, L, N, _ = x.shape
    assert B == 1, "torch.cat of a (1,1,F) meta token in the module requires B=1"
    tok = x[..., 0].astype(jnp.int32)                      # (B, L, 260) == squeeze(-1).long()
    # Prepend one dummy timestep (token 0) so the sequence has T = L+1 rows;
    # its pregate row is overwritten in-kernel with the folded meta pregate.
    tok_pad = jnp.pad(tok[0], ((1, 0), (0, 0)))            # (T, 260)
    emb = jnp.take(kparams["embed"], tok_pad, axis=0)      # (T, 260, 8) gather glue
    seq = emb.reshape(L + 1, LSTM_IN)                      # (T, 2080)
    out = fused_forward(meta.reshape(1, META_IN), seq, kparams)   # (t_pad, 1152)
    out = out[:L + 1, :FC_OUT]
    return out.reshape(B, L + 1, N_TOKENS, NUM_CLASSES)


# -------------------- pure-JAX reference (sanity check) --------------------
def ref_forward(x, meta, params):
    B, L, N, _ = x.shape
    tok = x[..., 0].astype(jnp.int32)
    emb = params["embed"][tok].reshape(B, L, LSTM_IN)
    hp = jax.lax.Precision.HIGHEST
    h1 = jnp.maximum(
        jnp.dot(meta.reshape(1, META_IN), params["w1"], precision=hp) + params["b1"], 0.0)
    enc = jnp.dot(h1, params["w2"], precision=hp) + params["b2"]
    seq = jnp.concatenate([enc[None], emb], axis=1)[0]     # (T, 2080)

    def step(carry, xt):
        h, c = carry
        gates = (jnp.dot(xt[None], params["wih"], precision=hp)
                 + jnp.dot(h, params["whh"], precision=hp) + params["b_lstm"])
        H = HIDDEN_DIM
        i = jax.nn.sigmoid(gates[:, :H])
        f = jax.nn.sigmoid(gates[:, H:2 * H])
        g = jnp.tanh(gates[:, 2 * H:3 * H])
        o = jax.nn.sigmoid(gates[:, 3 * H:])
        c = f * c + i * g
        h = o * jnp.tanh(c)
        return (h, c), h[0]

    carry0 = (jnp.zeros((1, HIDDEN_DIM), jnp.float32),
              jnp.zeros((1, HIDDEN_DIM), jnp.float32))
    _, hs = jax.lax.scan(step, carry0, seq)
    out = jnp.dot(hs, params["wfc"], precision=hp) + params["bfc"]
    return out.reshape(B, L + 1, N_TOKENS, NUM_CLASSES)


if __name__ == "__main__":
    key = jax.random.PRNGKey(0)
    k_param, k_tok, k_meta = jax.random.split(key, 3)

    params = init_params(k_param)
    kparams = pack_params(params)

    B, L = 1, 8   # B=1 is required by the module's torch.cat of the meta token
    x = jax.random.randint(k_tok, (B, L, N_TOKENS, 1), 0, NUM_CLASSES, dtype=jnp.int32)
    meta = jax.random.normal(k_meta, (META_IN,), jnp.float32)

    out = mtlstm_forward(x, meta, kparams)
    out = jax.block_until_ready(out)

    assert out.shape == (B, L + 1, N_TOKENS, NUM_CLASSES), out.shape
    ref = jax.block_until_ready(ref_forward(x, meta, params))
    assert np.all(np.isfinite(np.asarray(out)))
    np.testing.assert_allclose(np.asarray(out), np.asarray(ref), atol=5e-2, rtol=5e-2)

    print("KERNEL_OK")
</pallas_src>

<mosaic_0001>
module attributes {stable_mosaic.version = 11 : i64} {
  func.func @kernel(%arg0: i32, %arg1: memref<1x23xf32, #tpu.memory_space<vmem>>, %arg2: memref<23x3072xf32, #tpu.memory_space<vmem>>, %arg3: memref<1x3072xf32, #tpu.memory_space<vmem>>, %arg4: memref<3072x128xf32, #tpu.memory_space<vmem>>, %arg5: memref<1x128xf32, #tpu.memory_space<vmem>>, %arg6: memref<9x2080xf32, #tpu.memory_space<vmem>>, %arg7: memref<2080x128xbf16, #tpu.memory_space<vmem>>, %arg8: memref<1x128xf32, #tpu.memory_space<vmem>>, %arg9: memref<32x128xf32, #tpu.memory_space<vmem>>, %arg10: memref<32x1152xbf16, #tpu.memory_space<vmem>>, %arg11: memref<1x1152xf32, #tpu.memory_space<vmem>>, %arg12: memref<9x1152xf32, #tpu.memory_space<vmem>>, %arg13: memref<1x32xf32, #tpu.memory_space<vmem>>, %arg14: memref<1x32xf32, #tpu.memory_space<vmem>>, %arg15: memref<9x128xf32, #tpu.memory_space<vmem>>, %arg16: memref<9x32xf32, #tpu.memory_space<vmem>>) attributes {dimension_semantics = [#tpu.dimension_semantics<arbitrary>], iteration_bounds = array<i64: 1>, scalar_prefetch = 0 : i64, scratch_operands = 4 : i64, tpu.core_type = #tpu.core_type<tc>, window_params = [{pipeline_mode = #tpu.pipeline_mode<synchronous>, transform_indices = @transform_0, window_bounds = array<i64: 1, 23>}, {pipeline_mode = #tpu.pipeline_mode<synchronous>, transform_indices = @transform_1, window_bounds = array<i64: 23, 3072>}, {pipeline_mode = #tpu.pipeline_mode<synchronous>, transform_indices = @transform_2, window_bounds = array<i64: 1, 3072>}, {pipeline_mode = #tpu.pipeline_mode<synchronous>, transform_indices = @transform_3, window_bounds = array<i64: 3072, 128>}, {pipeline_mode = #tpu.pipeline_mode<synchronous>, transform_indices = @transform_4, window_bounds = array<i64: 1, 128>}, {transform_indices = @transform_5, window_bounds = array<i64: 9, 2080>}, {pipeline_mode = #tpu.pipeline_mode<synchronous>, transform_indices = @transform_6, window_bounds = array<i64: 2080, 128>}, {pipeline_mode = #tpu.pipeline_mode<synchronous>, transform_indices = @transform_7, window_bounds = array<i64: 1, 128>}, {pipeline_mode = #tpu.pipeline_mode<synchronous>, transform_indices = @transform_8, window_bounds = array<i64: 32, 128>}, {pipeline_mode = #tpu.pipeline_mode<synchronous>, transform_indices = @transform_9, window_bounds = array<i64: 32, 1152>}, {pipeline_mode = #tpu.pipeline_mode<synchronous>, transform_indices = @transform_10, window_bounds = array<i64: 1, 1152>}, {transform_indices = @transform_11, window_bounds = array<i64: 9, 1152>}]} {
    %c0_i32 = arith.constant 0 : i32
    %0 = arith.cmpi eq, %arg0, %c0_i32 : i32
    %1 = arith.extui %0 : i1 to i32
    %c0_i32_0 = arith.constant 0 : i32
    %2 = arith.cmpi ne, %1, %c0_i32_0 : i32
    scf.if %2 {
      %cst_159 = arith.constant 0.000000e+00 : f32
      %267 = vector.broadcast %cst_159 : f32 to vector<1x32xf32>
      %c0_160 = arith.constant 0 : index
      %c0_161 = arith.constant 0 : index
      %268 = vector.load %arg13[%c0_160, %c0_161] : memref<1x32xf32, #tpu.memory_space<vmem>>, vector<1x32xf32>
      tpu.vector_store %arg13[%c0_160, %c0_161], %267 {strides = array<i32>} : memref<1x32xf32, #tpu.memory_space<vmem>>, vector<1x32xf32>,
      %cst_162 = arith.constant 0.000000e+00 : f32
      %269 = vector.broadcast %cst_162 : f32 to vector<1x32xf32>
      %c0_163 = arith.constant 0 : index
      %c0_164 = arith.constant 0 : index
      %270 = vector.load %arg14[%c0_163, %c0_164] : memref<1x32xf32, #tpu.memory_space<vmem>>, vector<1x32xf32>
      tpu.vector_store %arg14[%c0_163, %c0_164], %269 {strides = array<i32>} : memref<1x32xf32, #tpu.memory_space<vmem>>, vector<1x32xf32>,
    } else {
    }
    %c0 = arith.constant 0 : index
    %c0_1 = arith.constant 0 : index
    %3 = vector.load %arg6[%c0, %c0_1] : memref<9x2080xf32, #tpu.memory_space<vmem>>, vector<9x2080xf32>
    %4 = arith.truncf %3 : vector<9x2080xf32> to vector<9x2080xbf16>
    %c0_2 = arith.constant 0 : index
    %c0_3 = arith.constant 0 : index
    %5 = vector.load %arg7[%c0_2, %c0_3] : memref<2080x128xbf16, #tpu.memory_space<vmem>>, vector<2080x128xbf16>
    %cst = arith.constant dense<0.000000e+00> : vector<9x128xf32>
    %6 = tpu.matmul %4, %5, %cst {dimension_numbers = #tpu.dot_dimension_numbers<[1], [0], [0], [1], [0, 0, 1, 1], [], []>} : vector<9x2080xbf16>, vector<2080x128xbf16>, vector<9x128xf32> -> vector<9x128xf32>
    %c0_4 = arith.constant 0 : index
    %c0_5 = arith.constant 0 : index
    %7 = vector.load %arg8[%c0_4, %c0_5] : memref<1x128xf32, #tpu.memory_space<vmem>>, vector<1x128xf32>
    %8 = vector.broadcast %7 : vector<1x128xf32> to vector<9x128xf32>
    %9 = arith.addf %6, %8 : vector<9x128xf32>
    %c0_6 = arith.constant 0 : index
    %c0_7 = arith.constant 0 : index
    %10 = vector.load %arg15[%c0_6, %c0_7] : memref<9x128xf32, #tpu.memory_space<vmem>>, vector<9x128xf32>
    tpu.vector_store %arg15[%c0_6, %c0_7], %9 {strides = array<i32>} : memref<9x128xf32, #tpu.memory_space<vmem>>, vector<9x128xf32>,
    %c0_8 = arith.constant 0 : index
    %c0_9 = arith.constant 0 : index
    %11 = vector.load %arg1[%c0_8, %c0_9] : memref<1x23xf32, #tpu.memory_space<vmem>>, vector<1x23xf32>
    %c0_10 = arith.constant 0 : index
    %c0_11 = arith.constant 0 : index
    %12 = vector.load %arg2[%c0_10, %c0_11] : memref<23x3072xf32, #tpu.memory_space<vmem>>, vector<23x3072xf32>
    %cst_12 = arith.constant dense<0.000000e+00> : vector<1x3072xf32>
    %13 = tpu.matmul %11, %12, %cst_12 {dimension_numbers = #tpu.dot_dimension_numbers<[1], [0], [0], [1], [0, 0, 1, 1], [], []>} : vector<1x23xf32>, vector<23x3072xf32>, vector<1x3072xf32> -> vector<1x3072xf32>
    %c0_13 = arith.constant 0 : index
    %c0_14 = arith.constant 0 : index
    %14 = vector.load %arg3[%c0_13, %c0_14] : memref<1x3072xf32, #tpu.memory_space<vmem>>, vector<1x3072xf32>
    %15 = arith.addf %13, %14 : vector<1x3072xf32>
    %cst_15 = arith.constant 0.000000e+00 : f32
    %16 = vector.broadcast %cst_15 : f32 to vector<1x3072xf32>
    %17 = arith.maximumf %15, %16 : vector<1x3072xf32>
    %c0_16 = arith.constant 0 : index
    %c0_17 = arith.constant 0 : index
    %18 = vector.load %arg4[%c0_16, %c0_17] : memref<3072x128xf32, #tpu.memory_space<vmem>>, vector<3072x128xf32>
    %cst_18 = arith.constant dense<0.000000e+00> : vector<1x128xf32>
    %19 = tpu.matmul %17, %18, %cst_18 {dimension_numbers = #tpu.dot_dimension_numbers<[1], [0], [0], [1], [0, 0, 1, 1], [], []>} : vector<1x3072xf32>, vector<3072x128xf32>, vector<1x128xf32> -> vector<1x128xf32>
    %c0_19 = arith.constant 0 : index
    %c0_20 = arith.constant 0 : index
    %20 = vector.load %arg5[%c0_19, %c0_20] : memref<1x128xf32, #tpu.memory_space<vmem>>, vector<1x128xf32>
    %21 = arith.addf %19, %20 : vector<1x128xf32>
    %c0_i32_21 = arith.constant 0 : i32
    %22 = arith.cmpi eq, %arg0, %c0_i32_21 : i32
    %23 = arith.extui %22 : i1 to i32
    %c0_i32_22 = arith.constant 0 : i32
    %24 = arith.cmpi ne, %23, %c0_i32_22 : i32
    scf.if %24 {
      %c0_159 = arith.constant 0 : index
      %c0_160 = arith.constant 0 : index
      %267 = vector.load %arg15[%c0_159, %c0_160] : memref<9x128xf32, #tpu.memory_space<vmem>>, vector<1x128xf32>
      tpu.vector_store %arg15[%c0_159, %c0_160], %21 {strides = array<i32>} : memref<9x128xf32, #tpu.memory_space<vmem>>, vector<1x128xf32>,
    } else {
    }
    %c0_i32_23 = arith.constant 0 : i32
    %c0_24 = arith.constant 0 : index
    %c0_25 = arith.constant 0 : index
    %25 = vector.load %arg13[%c0_24, %c0_25] : memref<1x32xf32, #tpu.memory_space<vmem>>, vector<1x32xf32>
    %c0_26 = arith.constant 0 : index
    %c0_27 = arith.constant 0 : index
    %26 = vector.load %arg14[%c0_26, %c0_27] : memref<1x32xf32, #tpu.memory_space<vmem>>, vector<1x32xf32>
    %27 = arith.index_cast %c0_i32_23 : i32 to index
    %c0_28 = arith.constant 0 : index
    %28 = vector.load %arg15[%27, %c0_28] : memref<9x128xf32, #tpu.memory_space<vmem>>, vector<1x128xf32>
    %c0_29 = arith.constant 0 : index
    %c0_30 = arith.constant 0 : index
    %29 = vector.load %arg9[%c0_29, %c0_30] : memref<32x128xf32, #tpu.memory_space<vmem>>, vector<32x128xf32>
    %cst_31 = arith.constant dense<0.000000e+00> : vector<1x128xf32>
    %30 = tpu.matmul %25, %29, %cst_31 {dimension_numbers = #tpu.dot_dimension_numbers<[1], [0], [0], [1], [0, 0, 1, 1], [], []>} : vector<1x32xf32>, vector<32x128xf32>, vector<1x128xf32> -> vector<1x128xf32>
    %31 = arith.addf %28, %30 : vector<1x128xf32>
    %32 = arith.negf %31 : vector<1x128xf32>
    %33 = math.exp %32 : vector<1x128xf32>
    %cst_32 = arith.constant 1.000000e+00 : f32
    %34 = vector.broadcast %cst_32 : f32 to vector<1x128xf32>
    %35 = arith.addf %34, %33 : vector<1x128xf32>
    %36 = arith.divf %34, %35 : vector<1x128xf32>
    %37 = math.tanh %31 : vector<1x128xf32>
    %38 = vector.extract_strided_slice %36 {offsets = [0, 0], sizes = [1, 32], strides = [1, 1]} : vector<1x128xf32> to vector<1x32xf32>
    %39 = vector.extract_strided_slice %36 {offsets = [0, 32], sizes = [1, 32], strides = [1, 1]} : vector<1x128xf32> to vector<1x32xf32>
    %40 = vector.extract_strided_slice %37 {offsets = [0, 64], sizes = [1, 32], strides = [1, 1]} : vector<1x128xf32> to vector<1x32xf32>
    %41 = vector.extract_strided_slice %36 {offsets = [0, 96], sizes = [1, 32], strides = [1, 1]} : vector<1x128xf32> to vector<1x32xf32>
    %42 = arith.mulf %39, %26 : vector<1x32xf32>
    %43 = arith.mulf %38, %40 : vector<1x32xf32>
    %44 = arith.addf %42, %43 : vector<1x32xf32>
    %45 = math.tanh %44 : vector<1x32xf32>
    %46 = arith.mulf %41, %45 : vector<1x32xf32>
    %c0_33 = arith.constant 0 : index
    %c0_34 = arith.constant 0 : index
    %47 = vector.load %arg14[%c0_33, %c0_34] : memref<1x32xf32, #tpu.memory_space<vmem>>, vector<1x32xf32>
    tpu.vector_store %arg14[%c0_33, %c0_34], %44 {strides = array<i32>} : memref<1x32xf32, #tpu.memory_space<vmem>>, vector<1x32xf32>,
    %c0_35 = arith.constant 0 : index
    %c0_36 = arith.constant 0 : index
    %48 = vector.load %arg13[%c0_35, %c0_36] : memref<1x32xf32, #tpu.memory_space<vmem>>, vector<1x32xf32>
    tpu.vector_store %arg13[%c0_35, %c0_36], %46 {strides = array<i32>} : memref<1x32xf32, #tpu.memory_space<vmem>>, vector<1x32xf32>,
    %49 = arith.index_cast %c0_i32_23 : i32 to index
    %c0_37 = arith.constant 0 : index
    %50 = vector.load %arg16[%49, %c0_37] : memref<9x32xf32, #tpu.memory_space<vmem>>, vector<1x32xf32>
    tpu.vector_store %arg16[%49, %c0_37], %46 {strides = array<i32>} : memref<9x32xf32, #tpu.memory_space<vmem>>, vector<1x32xf32>,
    %c1_i32 = arith.constant 1 : i32
    %c0_38 = arith.constant 0 : index
    %c0_39 = arith.constant 0 : index
    %51 = vector.load %arg13[%c0_38, %c0_39] : memref<1x32xf32, #tpu.memory_space<vmem>>, vector<1x32xf32>
    %c0_40 = arith.constant 0 : index
    %c0_41 = arith.constant 0 : index
    %52 = vector.load %arg14[%c0_40, %c0_41] : memref<1x32xf32, #tpu.memory_space<vmem>>, vector<1x32xf32>
    %53 = arith.index_cast %c1_i32 : i32 to index
    %c0_42 = arith.constant 0 : index
    %54 = vector.load %arg15[%53, %c0_42] : memref<9x128xf32, #tpu.memory_space<vmem>>, vector<1x128xf32>
    %c0_43 = arith.constant 0 : index
    %c0_44 = arith.constant 0 : index
    %55 = vector.load %arg9[%c0_43, %c0_44] : memref<32x128xf32, #tpu.memory_space<vmem>>, vector<32x128xf32>
    %cst_45 = arith.constant dense<0.000000e+00> : vector<1x128xf32>
    %56 = tpu.matmul %51, %55, %cst_45 {dimension_numbers = #tpu.dot_dimension_numbers<[1], [0], [0], [1], [0, 0, 1, 1], [], []>} : vector<1x32xf32>, vector<32x128xf32>, vector<1x128xf32> -> vector<1x128xf32>
    %57 = arith.addf %54, %56 : vector<1x128xf32>
    %58 = arith.negf %57 : vector<1x128xf32>
    %59 = math.exp %58 : vector<1x128xf32>
    %cst_46 = arith.constant 1.000000e+00 : f32
    %60 = vector.broadcast %cst_46 : f32 to vector<1x128xf32>
    %61 = arith.addf %60, %59 : vector<1x128xf32>
    %62 = arith.divf %60, %61 : vector<1x128xf32>
    %63 = math.tanh %57 : vector<1x128xf32>
    %64 = vector.extract_strided_slice %62 {offsets = [0, 0], sizes = [1, 32], strides = [1, 1]} : vector<1x128xf32> to vector<1x32xf32>
    %65 = vector.extract_strided_slice %62 {offsets = [0, 32], sizes = [1, 32], strides = [1, 1]} : vector<1x128xf32> to vector<1x32xf32>
    %66 = vector.extract_strided_slice %63 {offsets = [0, 64], sizes = [1, 32], strides = [1, 1]} : vector<1x128xf32> to vector<1x32xf32>
    %67 = vector.extract_strided_slice %62 {offsets = [0, 96], sizes = [1, 32], strides = [1, 1]} : vector<1x128xf32> to vector<1x32xf32>
    %68 = arith.mulf %65, %52 : vector<1x32xf32>
    %69 = arith.mulf %64, %66 : vector<1x32xf32>
    %70 = arith.addf %68, %69 : vector<1x32xf32>
    %71 = math.tanh %70 : vector<1x32xf32>
    %72 = arith.mulf %67, %71 : vector<1x32xf32>
    %c0_47 = arith.constant 0 : index
    %c0_48 = arith.constant 0 : index
    %73 = vector.load %arg14[%c0_47, %c0_48] : memref<1x32xf32, #tpu.memory_space<vmem>>, vector<1x32xf32>
    tpu.vector_store %arg14[%c0_47, %c0_48], %70 {strides = array<i32>} : memref<1x32xf32, #tpu.memory_space<vmem>>, vector<1x32xf32>,
    %c0_49 = arith.constant 0 : index
    %c0_50 = arith.constant 0 : index
    %74 = vector.load %arg13[%c0_49, %c0_50] : memref<1x32xf32, #tpu.memory_space<vmem>>, vector<1x32xf32>
    tpu.vector_store %arg13[%c0_49, %c0_50], %72 {strides = array<i32>} : memref<1x32xf32, #tpu.memory_space<vmem>>, vector<1x32xf32>,
    %75 = arith.index_cast %c1_i32 : i32 to index
    %c0_51 = arith.constant 0 : index
    %76 = vector.load %arg16[%75, %c0_51] : memref<9x32xf32, #tpu.memory_space<vmem>>, vector<1x32xf32>
    tpu.vector_store %arg16[%75, %c0_51], %72 {strides = array<i32>} : memref<9x32xf32, #tpu.memory_space<vmem>>, vector<1x32xf32>,
    %c2_i32 = arith.constant 2 : i32
    %c0_52 = arith.constant 0 : index
    %c0_53 = arith.constant 0 : index
    %77 = vector.load %arg13[%c0_52, %c0_53] : memref<1x32xf32, #tpu.memory_space<vmem>>, vector<1x32xf32>
    %c0_54 = arith.constant 0 : index
    %c0_55 = arith.constant 0 : index
    %78 = vector.load %arg14[%c0_54, %c0_55] : memref<1x32xf32, #tpu.memory_space<vmem>>, vector<1x32xf32>
    %79 = arith.index_cast %c2_i32 : i32 to index
    %c0_56 = arith.constant 0 : index
    %80 = vector.load %arg15[%79, %c0_56] : memref<9x128xf32, #tpu.memory_space<vmem>>, vector<1x128xf32>
    %c0_57 = arith.constant 0 : index
    %c0_58 = arith.constant 0 : index
    %81 = vector.load %arg9[%c0_57, %c0_58] : memref<32x128xf32, #tpu.memory_space<vmem>>, vector<32x128xf32>
    %cst_59 = arith.constant dense<0.000000e+00> : vector<1x128xf32>
    %82 = tpu.matmul %77, %81, %cst_59 {dimension_numbers = #tpu.dot_dimension_numbers<[1], [0], [0], [1], [0, 0, 1, 1], [], []>} : vector<1x32xf32>, vector<32x128xf32>, vector<1x128xf32> -> vector<1x128xf32>
    %83 = arith.addf %80, %82 : vector<1x128xf32>
    %84 = arith.negf %83 : vector<1x128xf32>
    %85 = math.exp %84 : vector<1x128xf32>
    %cst_60 = arith.constant 1.000000e+00 : f32
    %86 = vector.broadcast %cst_60 : f32 to vector<1x128xf32>
    %87 = arith.addf %86, %85 : vector<1x128xf32>
    %88 = arith.divf %86, %87 : vector<1x128xf32>
    %89 = math.tanh %83 : vector<1x128xf32>
    %90 = vector.extract_strided_slice %88 {offsets = [0, 0], sizes = [1, 32], strides = [1, 1]} : vector<1x128xf32> to vector<1x32xf32>
    %91 = vector.extract_strided_slice %88 {offsets = [0, 32], sizes = [1, 32], strides = [1, 1]} : vector<1x128xf32> to vector<1x32xf32>
    %92 = vector.extract_strided_slice %89 {offsets = [0, 64], sizes = [1, 32], strides = [1, 1]} : vector<1x128xf32> to vector<1x32xf32>
    %93 = vector.extract_strided_slice %88 {offsets = [0, 96], sizes = [1, 32], strides = [1, 1]} : vector<1x128xf32> to vector<1x32xf32>
    %94 = arith.mulf %91, %78 : vector<1x32xf32>
    %95 = arith.mulf %90, %92 : vector<1x32xf32>
    %96 = arith.addf %94, %95 : vector<1x32xf32>
    %97 = math.tanh %96 : vector<1x32xf32>
    %98 = arith.mulf %93, %97 : vector<1x32xf32>
    %c0_61 = arith.constant 0 : index
    %c0_62 = arith.constant 0 : index
    %99 = vector.load %arg14[%c0_61, %c0_62] : memref<1x32xf32, #tpu.memory_space<vmem>>, vector<1x32xf32>
    tpu.vector_store %arg14[%c0_61, %c0_62], %96 {strides = array<i32>} : memref<1x32xf32, #tpu.memory_space<vmem>>, vector<1x32xf32>,
    %c0_63 = arith.constant 0 : index
    %c0_64 = arith.constant 0 : index
    %100 = vector.load %arg13[%c0_63, %c0_64] : memref<1x32xf32, #tpu.memory_space<vmem>>, vector<1x32xf32>
    tpu.vector_store %arg13[%c0_63, %c0_64], %98 {strides = array<i32>} : memref<1x32xf32, #tpu.memory_space<vmem>>, vector<1x32xf32>,
    %101 = arith.index_cast %c2_i32 : i32 to index
    %c0_65 = arith.constant 0 : index
    %102 = vector.load %arg16[%101, %c0_65] : memref<9x32xf32, #tpu.memory_space<vmem>>, vector<1x32xf32>
    tpu.vector_store %arg16[%101, %c0_65], %98 {strides = array<i32>} : memref<9x32xf32, #tpu.memory_space<vmem>>, vector<1x32xf32>,
    %c3_i32 = arith.constant 3 : i32
    %c0_66 = arith.constant 0 : index
    %c0_67 = arith.constant 0 : index
    %103 = vector.load %arg13[%c0_66, %c0_67] : memref<1x32xf32, #tpu.memory_space<vmem>>, vector<1x32xf32>
    %c0_68 = arith.constant 0 : index
    %c0_69 = arith.constant 0 : index
    %104 = vector.load %arg14[%c0_68, %c0_69] : memref<1x32xf32, #tpu.memory_space<vmem>>, vector<1x32xf32>
    %105 = arith.index_cast %c3_i32 : i32 to index
    %c0_70 = arith.constant 0 : index
    %106 = vector.load %arg15[%105, %c0_70] : memref<9x128xf32, #tpu.memory_space<vmem>>, vector<1x128xf32>
    %c0_71 = arith.constant 0 : index
    %c0_72 = arith.constant 0 : index
    %107 = vector.load %arg9[%c0_71, %c0_72] : memref<32x128xf32, #tpu.memory_space<vmem>>, vector<32x128xf32>
    %cst_73 = arith.constant dense<0.000000e+00> : vector<1x128xf32>
    %108 = tpu.matmul %103, %107, %cst_73 {dimension_numbers = #tpu.dot_dimension_numbers<[1], [0], [0], [1], [0, 0, 1, 1], [], []>} : vector<1x32xf32>, vector<32x128xf32>, vector<1x128xf32> -> vector<1x128xf32>
    %109 = arith.addf %106, %108 : vector<1x128xf32>
    %110 = arith.negf %109 : vector<1x128xf32>
    %111 = math.exp %110 : vector<1x128xf32>
    %cst_74 = arith.constant 1.000000e+00 : f32
    %112 = vector.broadcast %cst_74 : f32 to vector<1x128xf32>
    %113 = arith.addf %112, %111 : vector<1x128xf32>
    %114 = arith.divf %112, %113 : vector<1x128xf32>
    %115 = math.tanh %109 : vector<1x128xf32>
    %116 = vector.extract_strided_slice %114 {offsets = [0, 0], sizes = [1, 32], strides = [1, 1]} : vector<1x128xf32> to vector<1x32xf32>
    %117 = vector.extract_strided_slice %114 {offsets = [0, 32], sizes = [1, 32], strides = [1, 1]} : vector<1x128xf32> to vector<1x32xf32>
    %118 = vector.extract_strided_slice %115 {offsets = [0, 64], sizes = [1, 32], strides = [1, 1]} : vector<1x128xf32> to vector<1x32xf32>
    %119 = vector.extract_strided_slice %114 {offsets = [0, 96], sizes = [1, 32], strides = [1, 1]} : vector<1x128xf32> to vector<1x32xf32>
    %120 = arith.mulf %117, %104 : vector<1x32xf32>
    %121 = arith.mulf %116, %118 : vector<1x32xf32>
    %122 = arith.addf %120, %121 : vector<1x32xf32>
    %123 = math.tanh %122 : vector<1x32xf32>
    %124 = arith.mulf %119, %123 : vector<1x32xf32>
    %c0_75 = arith.constant 0 : index
    %c0_76 = arith.constant 0 : index
    %125 = vector.load %arg14[%c0_75, %c0_76] : memref<1x32xf32, #tpu.memory_space<vmem>>, vector<1x32xf32>
    tpu.vector_store %arg14[%c0_75, %c0_76], %122 {strides = array<i32>} : memref<1x32xf32, #tpu.memory_space<vmem>>, vector<1x32xf32>,
    %c0_77 = arith.constant 0 : index
    %c0_78 = arith.constant 0 : index
    %126 = vector.load %arg13[%c0_77, %c0_78] : memref<1x32xf32, #tpu.memory_space<vmem>>, vector<1x32xf32>
    tpu.vector_store %arg13[%c0_77, %c0_78], %124 {strides = array<i32>} : memref<1x32xf32, #tpu.memory_space<vmem>>, vector<1x32xf32>,
    %127 = arith.index_cast %c3_i32 : i32 to index
    %c0_79 = arith.constant 0 : index
    %128 = vector.load %arg16[%127, %c0_79] : memref<9x32xf32, #tpu.memory_space<vmem>>, vector<1x32xf32>
    tpu.vector_store %arg16[%127, %c0_79], %124 {strides = array<i32>} : memref<9x32xf32, #tpu.memory_space<vmem>>, vector<1x32xf32>,
    %c4_i32 = arith.constant 4 : i32
    %c0_80 = arith.constant 0 : index
    %c0_81 = arith.constant 0 : index
    %129 = vector.load %arg13[%c0_80, %c0_81] : memref<1x32xf32, #tpu.memory_space<vmem>>, vector<1x32xf32>
    %c0_82 = arith.constant 0 : index
    %c0_83 = arith.constant 0 : index
    %130 = vector.load %arg14[%c0_82, %c0_83] : memref<1x32xf32, #tpu.memory_space<vmem>>, vector<1x32xf32>
    %131 = arith.index_cast %c4_i32 : i32 to index
    %c0_84 = arith.constant 0 : index
    %132 = vector.load %arg15[%131, %c0_84] : memref<9x128xf32, #tpu.memory_space<vmem>>, vector<1x128xf32>
    %c0_85 = arith.constant 0 : index
    %c0_86 = arith.constant 0 : index
    %133 = vector.load %arg9[%c0_85, %c0_86] : memref<32x128xf32, #tpu.memory_space<vmem>>, vector<32x128xf32>
    %cst_87 = arith.constant dense<0.000000e+00> : vector<1x128xf32>
    %134 = tpu.matmul %129, %133, %cst_87 {dimension_numbers = #tpu.dot_dimension_numbers<[1], [0], [0], [1], [0, 0, 1, 1], [], []>} : vector<1x32xf32>, vector<32x128xf32>, vector<1x128xf32> -> vector<1x128xf32>
    %135 = arith.addf %132, %134 : vector<1x128xf32>
    %136 = arith.negf %135 : vector<1x128xf32>
    %137 = math.exp %136 : vector<1x128xf32>
    %cst_88 = arith.constant 1.000000e+00 : f32
    %138 = vector.broadcast %cst_88 : f32 to vector<1x128xf32>
    %139 = arith.addf %138, %137 : vector<1x128xf32>
    %140 = arith.divf %138, %139 : vector<1x128xf32>
    %141 = math.tanh %135 : vector<1x128xf32>
    %142 = vector.extract_strided_slice %140 {offsets = [0, 0], sizes = [1, 32], strides = [1, 1]} : vector<1x128xf32> to vector<1x32xf32>
    %143 = vector.extract_strided_slice %140 {offsets = [0, 32], sizes = [1, 32], strides = [1, 1]} : vector<1x128xf32> to vector<1x32xf32>
    %144 = vector.extract_strided_slice %141 {offsets = [0, 64], sizes = [1, 32], strides = [1, 1]} : vector<1x128xf32> to vector<1x32xf32>
    %145 = vector.extract_strided_slice %140 {offsets = [0, 96], sizes = [1, 32], strides = [1, 1]} : vector<1x128xf32> to vector<1x32xf32>
    %146 = arith.mulf %143, %130 : vector<1x32xf32>
    %147 = arith.mulf %142, %144 : vector<1x32xf32>
    %148 = arith.addf %146, %147 : vector<1x32xf32>
    %149 = math.tanh %148 : vector<1x32xf32>
    %150 = arith.mulf %145, %149 : vector<1x32xf32>
    %c0_89 = arith.constant 0 : index
    %c0_90 = arith.constant 0 : index
    %151 = vector.load %arg14[%c0_89, %c0_90] : memref<1x32xf32, #tpu.memory_space<vmem>>, vector<1x32xf32>
    tpu.vector_store %arg14[%c0_89, %c0_90], %148 {strides = array<i32>} : memref<1x32xf32, #tpu.memory_space<vmem>>, vector<1x32xf32>,
    %c0_91 = arith.constant 0 : index
    %c0_92 = arith.constant 0 : index
    %152 = vector.load %arg13[%c0_91, %c0_92] : memref<1x32xf32, #tpu.memory_space<vmem>>, vector<1x32xf32>
    tpu.vector_store %arg13[%c0_91, %c0_92], %150 {strides = array<i32>} : memref<1x32xf32, #tpu.memory_space<vmem>>, vector<1x32xf32>,
    %153 = arith.index_cast %c4_i32 : i32 to index
    %c0_93 = arith.constant 0 : index
    %154 = vector.load %arg16[%153, %c0_93] : memref<9x32xf32, #tpu.memory_space<vmem>>, vector<1x32xf32>
    tpu.vector_store %arg16[%153, %c0_93], %150 {strides = array<i32>} : memref<9x32xf32, #tpu.memory_space<vmem>>, vector<1x32xf32>,
    %c5_i32 = arith.constant 5 : i32
    %c0_94 = arith.constant 0 : index
    %c0_95 = arith.constant 0 : index
    %155 = vector.load %arg13[%c0_94, %c0_95] : memref<1x32xf32, #tpu.memory_space<vmem>>, vector<1x32xf32>
    %c0_96 = arith.constant 0 : index
    %c0_97 = arith.constant 0 : index
    %156 = vector.load %arg14[%c0_96, %c0_97] : memref<1x32xf32, #tpu.memory_space<vmem>>, vector<1x32xf32>
    %157 = arith.index_cast %c5_i32 : i32 to index
    %c0_98 = arith.constant 0 : index
    %158 = vector.load %arg15[%157, %c0_98] : memref<9x128xf32, #tpu.memory_space<vmem>>, vector<1x128xf32>
    %c0_99 = arith.constant 0 : index
    %c0_100 = arith.constant 0 : index
    %159 = vector.load %arg9[%c0_99, %c0_100] : memref<32x128xf32, #tpu.memory_space<vmem>>, vector<32x128xf32>
    %cst_101 = arith.constant dense<0.000000e+00> : vector<1x128xf32>
    %160 = tpu.matmul %155, %159, %cst_101 {dimension_numbers = #tpu.dot_dimension_numbers<[1], [0], [0], [1], [0, 0, 1, 1], [], []>} : vector<1x32xf32>, vector<32x128xf32>, vector<1x128xf32> -> vector<1x128xf32>
    %161 = arith.addf %158, %160 : vector<1x128xf32>
    %162 = arith.negf %161 : vector<1x128xf32>
    %163 = math.exp %162 : vector<1x128xf32>
    %cst_102 = arith.constant 1.000000e+00 : f32
    %164 = vector.broadcast %cst_102 : f32 to vector<1x128xf32>
    %165 = arith.addf %164, %163 : vector<1x128xf32>
    %166 = arith.divf %164, %165 : vector<1x128xf32>
    %167 = math.tanh %161 : vector<1x128xf32>
    %168 = vector.extract_strided_slice %166 {offsets = [0, 0], sizes = [1, 32], strides = [1, 1]} : vector<1x128xf32> to vector<1x32xf32>
    %169 = vector.extract_strided_slice %166 {offsets = [0, 32], sizes = [1, 32], strides = [1, 1]} : vector<1x128xf32> to vector<1x32xf32>
    %170 = vector.extract_strided_slice %167 {offsets = [0, 64], sizes = [1, 32], strides = [1, 1]} : vector<1x128xf32> to vector<1x32xf32>
    %171 = vector.extract_strided_slice %166 {offsets = [0, 96], sizes = [1, 32], strides = [1, 1]} : vector<1x128xf32> to vector<1x32xf32>
    %172 = arith.mulf %169, %156 : vector<1x32xf32>
    %173 = arith.mulf %168, %170 : vector<1x32xf32>
    %174 = arith.addf %172, %173 : vector<1x32xf32>
    %175 = math.tanh %174 : vector<1x32xf32>
    %176 = arith.mulf %171, %175 : vector<1x32xf32>
    %c0_103 = arith.constant 0 : index
    %c0_104 = arith.constant 0 : index
    %177 = vector.load %arg14[%c0_103, %c0_104] : memref<1x32xf32, #tpu.memory_space<vmem>>, vector<1x32xf32>
    tpu.vector_store %arg14[%c0_103, %c0_104], %174 {strides = array<i32>} : memref<1x32xf32, #tpu.memory_space<vmem>>, vector<1x32xf32>,
    %c0_105 = arith.constant 0 : index
    %c0_106 = arith.constant 0 : index
    %178 = vector.load %arg13[%c0_105, %c0_106] : memref<1x32xf32, #tpu.memory_space<vmem>>, vector<1x32xf32>
    tpu.vector_store %arg13[%c0_105, %c0_106], %176 {strides = array<i32>} : memref<1x32xf32, #tpu.memory_space<vmem>>, vector<1x32xf32>,
    %179 = arith.index_cast %c5_i32 : i32 to index
    %c0_107 = arith.constant 0 : index
    %180 = vector.load %arg16[%179, %c0_107] : memref<9x32xf32, #tpu.memory_space<vmem>>, vector<1x32xf32>
    tpu.vector_store %arg16[%179, %c0_107], %176 {strides = array<i32>} : memref<9x32xf32, #tpu.memory_space<vmem>>, vector<1x32xf32>,
    %c6_i32 = arith.constant 6 : i32
    %c0_108 = arith.constant 0 : index
    %c0_109 = arith.constant 0 : index
    %181 = vector.load %arg13[%c0_108, %c0_109] : memref<1x32xf32, #tpu.memory_space<vmem>>, vector<1x32xf32>
    %c0_110 = arith.constant 0 : index
    %c0_111 = arith.constant 0 : index
    %182 = vector.load %arg14[%c0_110, %c0_111] : memref<1x32xf32, #tpu.memory_space<vmem>>, vector<1x32xf32>
    %183 = arith.index_cast %c6_i32 : i32 to index
    %c0_112 = arith.constant 0 : index
    %184 = vector.load %arg15[%183, %c0_112] : memref<9x128xf32, #tpu.memory_space<vmem>>, vector<1x128xf32>
    %c0_113 = arith.constant 0 : index
    %c0_114 = arith.constant 0 : index
    %185 = vector.load %arg9[%c0_113, %c0_114] : memref<32x128xf32, #tpu.memory_space<vmem>>, vector<32x128xf32>
    %cst_115 = arith.constant dense<0.000000e+00> : vector<1x128xf32>
    %186 = tpu.matmul %181, %185, %cst_115 {dimension_numbers = #tpu.dot_dimension_numbers<[1], [0], [0], [1], [0, 0, 1, 1], [], []>} : vector<1x32xf32>, vector<32x128xf32>, vector<1x128xf32> -> vector<1x128xf32>
    %187 = arith.addf %184, %186 : vector<1x128xf32>
    %188 = arith.negf %187 : vector<1x128xf32>
    %189 = math.exp %188 : vector<1x128xf32>
    %cst_116 = arith.constant 1.000000e+00 : f32
    %190 = vector.broadcast %cst_116 : f32 to vector<1x128xf32>
    %191 = arith.addf %190, %189 : vector<1x128xf32>
    %192 = arith.divf %190, %191 : vector<1x128xf32>
    %193 = math.tanh %187 : vector<1x128xf32>
    %194 = vector.extract_strided_slice %192 {offsets = [0, 0], sizes = [1, 32], strides = [1, 1]} : vector<1x128xf32> to vector<1x32xf32>
    %195 = vector.extract_strided_slice %192 {offsets = [0, 32], sizes = [1, 32], strides = [1, 1]} : vector<1x128xf32> to vector<1x32xf32>
    %196 = vector.extract_strided_slice %193 {offsets = [0, 64], sizes = [1, 32], strides = [1, 1]} : vector<1x128xf32> to vector<1x32xf32>
    %197 = vector.extract_strided_slice %192 {offsets = [0, 96], sizes = [1, 32], strides = [1, 1]} : vector<1x128xf32> to vector<1x32xf32>
    %198 = arith.mulf %195, %182 : vector<1x32xf32>
    %199 = arith.mulf %194, %196 : vector<1x32xf32>
    %200 = arith.addf %198, %199 : vector<1x32xf32>
    %201 = math.tanh %200 : vector<1x32xf32>
    %202 = arith.mulf %197, %201 : vector<1x32xf32>
    %c0_117 = arith.constant 0 : index
    %c0_118 = arith.constant 0 : index
    %203 = vector.load %arg14[%c0_117, %c0_118] : memref<1x32xf32, #tpu.memory_space<vmem>>, vector<1x32xf32>
    tpu.vector_store %arg14[%c0_117, %c0_118], %200 {strides = array<i32>} : memref<1x32xf32, #tpu.memory_space<vmem>>, vector<1x32xf32>,
    %c0_119 = arith.constant 0 : index
    %c0_120 = arith.constant 0 : index
    %204 = vector.load %arg13[%c0_119, %c0_120] : memref<1x32xf32, #tpu.memory_space<vmem>>, vector<1x32xf32>
    tpu.vector_store %arg13[%c0_119, %c0_120], %202 {strides = array<i32>} : memref<1x32xf32, #tpu.memory_space<vmem>>, vector<1x32xf32>,
    %205 = arith.index_cast %c6_i32 : i32 to index
    %c0_121 = arith.constant 0 : index
    %206 = vector.load %arg16[%205, %c0_121] : memref<9x32xf32, #tpu.memory_space<vmem>>, vector<1x32xf32>
    tpu.vector_store %arg16[%205, %c0_121], %202 {strides = array<i32>} : memref<9x32xf32, #tpu.memory_space<vmem>>, vector<1x32xf32>,
    %c7_i32 = arith.constant 7 : i32
    %c0_122 = arith.constant 0 : index
    %c0_123 = arith.constant 0 : index
    %207 = vector.load %arg13[%c0_122, %c0_123] : memref<1x32xf32, #tpu.memory_space<vmem>>, vector<1x32xf32>
    %c0_124 = arith.constant 0 : index
    %c0_125 = arith.constant 0 : index
    %208 = vector.load %arg14[%c0_124, %c0_125] : memref<1x32xf32, #tpu.memory_space<vmem>>, vector<1x32xf32>
    %209 = arith.index_cast %c7_i32 : i32 to index
    %c0_126 = arith.constant 0 : index
    %210 = vector.load %arg15[%209, %c0_126] : memref<9x128xf32, #tpu.memory_space<vmem>>, vector<1x128xf32>
    %c0_127 = arith.constant 0 : index
    %c0_128 = arith.constant 0 : index
    %211 = vector.load %arg9[%c0_127, %c0_128] : memref<32x128xf32, #tpu.memory_space<vmem>>, vector<32x128xf32>
    %cst_129 = arith.constant dense<0.000000e+00> : vector<1x128xf32>
    %212 = tpu.matmul %207, %211, %cst_129 {dimension_numbers = #tpu.dot_dimension_numbers<[1], [0], [0], [1], [0, 0, 1, 1], [], []>} : vector<1x32xf32>, vector<32x128xf32>, vector<1x128xf32> -> vector<1x128xf32>
    %213 = arith.addf %210, %212 : vector<1x128xf32>
    %214 = arith.negf %213 : vector<1x128xf32>
    %215 = math.exp %214 : vector<1x128xf32>
    %cst_130 = arith.constant 1.000000e+00 : f32
    %216 = vector.broadcast %cst_130 : f32 to vector<1x128xf32>
    %217 = arith.addf %216, %215 : vector<1x128xf32>
    %218 = arith.divf %216, %217 : vector<1x128xf32>
    %219 = math.tanh %213 : vector<1x128xf32>
    %220 = vector.extract_strided_slice %218 {offsets = [0, 0], sizes = [1, 32], strides = [1, 1]} : vector<1x128xf32> to vector<1x32xf32>
    %221 = vector.extract_strided_slice %218 {offsets = [0, 32], sizes = [1, 32], strides = [1, 1]} : vector<1x128xf32> to vector<1x32xf32>
    %222 = vector.extract_strided_slice %219 {offsets = [0, 64], sizes = [1, 32], strides = [1, 1]} : vector<1x128xf32> to vector<1x32xf32>
    %223 = vector.extract_strided_slice %218 {offsets = [0, 96], sizes = [1, 32], strides = [1, 1]} : vector<1x128xf32> to vector<1x32xf32>
    %224 = arith.mulf %221, %208 : vector<1x32xf32>
    %225 = arith.mulf %220, %222 : vector<1x32xf32>
    %226 = arith.addf %224, %225 : vector<1x32xf32>
    %227 = math.tanh %226 : vector<1x32xf32>
    %228 = arith.mulf %223, %227 : vector<1x32xf32>
    %c0_131 = arith.constant 0 : index
    %c0_132 = arith.constant 0 : index
    %229 = vector.load %arg14[%c0_131, %c0_132] : memref<1x32xf32, #tpu.memory_space<vmem>>, vector<1x32xf32>
    tpu.vector_store %arg14[%c0_131, %c0_132], %226 {strides = array<i32>} : memref<1x32xf32, #tpu.memory_space<vmem>>, vector<1x32xf32>,
    %c0_133 = arith.constant 0 : index
    %c0_134 = arith.constant 0 : index
    %230 = vector.load %arg13[%c0_133, %c0_134] : memref<1x32xf32, #tpu.memory_space<vmem>>, vector<1x32xf32>
    tpu.vector_store %arg13[%c0_133, %c0_134], %228 {strides = array<i32>} : memref<1x32xf32, #tpu.memory_space<vmem>>, vector<1x32xf32>,
    %231 = arith.index_cast %c7_i32 : i32 to index
    %c0_135 = arith.constant 0 : index
    %232 = vector.load %arg16[%231, %c0_135] : memref<9x32xf32, #tpu.memory_space<vmem>>, vector<1x32xf32>
    tpu.vector_store %arg16[%231, %c0_135], %228 {strides = array<i32>} : memref<9x32xf32, #tpu.memory_space<vmem>>, vector<1x32xf32>,
    %c8_i32 = arith.constant 8 : i32
    %c0_136 = arith.constant 0 : index
    %c0_137 = arith.constant 0 : index
    %233 = vector.load %arg13[%c0_136, %c0_137] : memref<1x32xf32, #tpu.memory_space<vmem>>, vector<1x32xf32>
    %c0_138 = arith.constant 0 : index
    %c0_139 = arith.constant 0 : index
    %234 = vector.load %arg14[%c0_138, %c0_139] : memref<1x32xf32, #tpu.memory_space<vmem>>, vector<1x32xf32>
    %235 = arith.index_cast %c8_i32 : i32 to index
    %c0_140 = arith.constant 0 : index
    %236 = vector.load %arg15[%235, %c0_140] : memref<9x128xf32, #tpu.memory_space<vmem>>, vector<1x128xf32>
    %c0_141 = arith.constant 0 : index
    %c0_142 = arith.constant 0 : index
    %237 = vector.load %arg9[%c0_141, %c0_142] : memref<32x128xf32, #tpu.memory_space<vmem>>, vector<32x128xf32>
    %cst_143 = arith.constant dense<0.000000e+00> : vector<1x128xf32>
    %238 = tpu.matmul %233, %237, %cst_143 {dimension_numbers = #tpu.dot_dimension_numbers<[1], [0], [0], [1], [0, 0, 1, 1], [], []>} : vector<1x32xf32>, vector<32x128xf32>, vector<1x128xf32> -> vector<1x128xf32>
    %239 = arith.addf %236, %238 : vector<1x128xf32>
    %240 = arith.negf %239 : vector<1x128xf32>
    %241 = math.exp %240 : vector<1x128xf32>
    %cst_144 = arith.constant 1.000000e+00 : f32
    %242 = vector.broadcast %cst_144 : f32 to vector<1x128xf32>
    %243 = arith.addf %242, %241 : vector<1x128xf32>
    %244 = arith.divf %242, %243 : vector<1x128xf32>
    %245 = math.tanh %239 : vector<1x128xf32>
    %246 = vector.extract_strided_slice %244 {offsets = [0, 0], sizes = [1, 32], strides = [1, 1]} : vector<1x128xf32> to vector<1x32xf32>
    %247 = vector.extract_strided_slice %244 {offsets = [0, 32], sizes = [1, 32], strides = [1, 1]} : vector<1x128xf32> to vector<1x32xf32>
    %248 = vector.extract_strided_slice %245 {offsets = [0, 64], sizes = [1, 32], strides = [1, 1]} : vector<1x128xf32> to vector<1x32xf32>
    %249 = vector.extract_strided_slice %244 {offsets = [0, 96], sizes = [1, 32], strides = [1, 1]} : vector<1x128xf32> to vector<1x32xf32>
    %250 = arith.mulf %247, %234 : vector<1x32xf32>
    %251 = arith.mulf %246, %248 : vector<1x32xf32>
    %252 = arith.addf %250, %251 : vector<1x32xf32>
    %253 = math.tanh %252 : vector<1x32xf32>
    %254 = arith.mulf %249, %253 : vector<1x32xf32>
    %c0_145 = arith.constant 0 : index
    %c0_146 = arith.constant 0 : index
    %255 = vector.load %arg14[%c0_145, %c0_146] : memref<1x32xf32, #tpu.memory_space<vmem>>, vector<1x32xf32>
    tpu.vector_store %arg14[%c0_145, %c0_146], %252 {strides = array<i32>} : memref<1x32xf32, #tpu.memory_space<vmem>>, vector<1x32xf32>,
    %c0_147 = arith.constant 0 : index
    %c0_148 = arith.constant 0 : index
    %256 = vector.load %arg13[%c0_147, %c0_148] : memref<1x32xf32, #tpu.memory_space<vmem>>, vector<1x32xf32>
    tpu.vector_store %arg13[%c0_147, %c0_148], %254 {strides = array<i32>} : memref<1x32xf32, #tpu.memory_space<vmem>>, vector<1x32xf32>,
    %257 = arith.index_cast %c8_i32 : i32 to index
    %c0_149 = arith.constant 0 : index
    %258 = vector.load %arg16[%257, %c0_149] : memref<9x32xf32, #tpu.memory_space<vmem>>, vector<1x32xf32>
    tpu.vector_store %arg16[%257, %c0_149], %254 {strides = array<i32>} : memref<9x32xf32, #tpu.memory_space<vmem>>, vector<1x32xf32>,
    %c9_i32 = arith.constant 9 : i32
    %c0_150 = arith.constant 0 : index
    %c0_151 = arith.constant 0 : index
    %259 = vector.load %arg16[%c0_150, %c0_151] : memref<9x32xf32, #tpu.memory_space<vmem>>, vector<9x32xf32>
    %260 = arith.truncf %259 : vector<9x32xf32> to vector<9x32xbf16>
    %c0_152 = arith.constant 0 : index
    %c0_153 = arith.constant 0 : index
    %261 = vector.load %arg10[%c0_152, %c0_153] : memref<32x1152xbf16, #tpu.memory_space<vmem>>, vector<32x1152xbf16>
    %cst_154 = arith.constant dense<0.000000e+00> : vector<9x1152xf32>
    %262 = tpu.matmul %260, %261, %cst_154 {dimension_numbers = #tpu.dot_dimension_numbers<[1], [0], [0], [1], [0, 0, 1, 1], [], []>} : vector<9x32xbf16>, vector<32x1152xbf16>, vector<9x1152xf32> -> vector<9x1152xf32>
    %c0_155 = arith.constant 0 : index
    %c0_156 = arith.constant 0 : index
    %263 = vector.load %arg11[%c0_155, %c0_156] : memref<1x1152xf32, #tpu.memory_space<vmem>>, vector<1x1152xf32>
    %264 = vector.broadcast %263 : vector<1x1152xf32> to vector<9x1152xf32>
    %265 = arith.addf %262, %264 : vector<9x1152xf32>
    %c0_157 = arith.constant 0 : index
    %c0_158 = arith.constant 0 : index
    %266 = vector.load %arg12[%c0_157, %c0_158] : memref<9x1152xf32, #tpu.memory_space<vmem>>, vector<9x1152xf32>
    tpu.vector_store %arg12[%c0_157, %c0_158], %265 {strides = array<i32>} : memref<9x1152xf32, #tpu.memory_space<vmem>>, vector<9x1152xf32>,
    return
  }
  func.func @transform_0(%arg0: i32) -> (i32, i32) {
    %c0_i32 = arith.constant 0 : i32
    %c0_i32_0 = arith.constant 0 : i32
    %c0_i32_1 = arith.constant 0 : i32
    return %c0_i32, %c0_i32_0 : i32, i32
  }
  func.func @transform_1(%arg0: i32) -> (i32, i32) {
    %c0_i32 = arith.constant 0 : i32
    %c0_i32_0 = arith.constant 0 : i32
    %c0_i32_1 = arith.constant 0 : i32
    return %c0_i32, %c0_i32_0 : i32, i32
  }
  func.func @transform_2(%arg0: i32) -> (i32, i32) {
    %c0_i32 = arith.constant 0 : i32
    %c0_i32_0 = arith.constant 0 : i32
    %c0_i32_1 = arith.constant 0 : i32
    return %c0_i32, %c0_i32_0 : i32, i32
  }
  func.func @transform_3(%arg0: i32) -> (i32, i32) {
    %c0_i32 = arith.constant 0 : i32
    %c0_i32_0 = arith.constant 0 : i32
    %c0_i32_1 = arith.constant 0 : i32
    return %c0_i32, %c0_i32_0 : i32, i32
  }
  func.func @transform_4(%arg0: i32) -> (i32, i32) {
    %c0_i32 = arith.constant 0 : i32
    %c0_i32_0 = arith.constant 0 : i32
    %c0_i32_1 = arith.constant 0 : i32
    return %c0_i32, %c0_i32_0 : i32, i32
  }
  func.func @transform_5(%arg0: i32) -> (i32, i32) {
    %c0_i32 = arith.constant 0 : i32
    %c0_i32_0 = arith.constant 0 : i32
    return %arg0, %c0_i32 : i32, i32
  }
  func.func @transform_6(%arg0: i32) -> (i32, i32) {
    %c0_i32 = arith.constant 0 : i32
    %c0_i32_0 = arith.constant 0 : i32
    %c0_i32_1 = arith.constant 0 : i32
    return %c0_i32, %c0_i32_0 : i32, i32
  }
  func.func @transform_7(%arg0: i32) -> (i32, i32) {
    %c0_i32 = arith.constant 0 : i32
    %c0_i32_0 = arith.constant 0 : i32
    %c0_i32_1 = arith.constant 0 : i32
    return %c0_i32, %c0_i32_0 : i32, i32
  }
  func.func @transform_8(%arg0: i32) -> (i32, i32) {
    %c0_i32 = arith.constant 0 : i32
    %c0_i32_0 = arith.constant 0 : i32
    %c0_i32_1 = arith.constant 0 : i32
    return %c0_i32, %c0_i32_0 : i32, i32
  }
  func.func @transform_9(%arg0: i32) -> (i32, i32) {
    %c0_i32 = arith.constant 0 : i32
    %c0_i32_0 = arith.constant 0 : i32
    %c0_i32_1 = arith.constant 0 : i32
    return %c0_i32, %c0_i32_0 : i32, i32
  }
  func.func @transform_10(%arg0: i32) -> (i32, i32) {
    %c0_i32 = arith.constant 0 : i32
    %c0_i32_0 = arith.constant 0 : i32
    %c0_i32_1 = arith.constant 0 : i32
    return %c0_i32, %c0_i32_0 : i32, i32
  }
  func.func @transform_11(%arg0: i32) -> (i32, i32) {
    %c0_i32 = arith.constant 0 : i32
    %c0_i32_0 = arith.constant 0 : i32
    return %arg0, %c0_i32 : i32, i32
  }
}

</mosaic_0001>

<llo_original>
// kernel: mtlstm_forward.1
$region0: #{mtlstm_forward.1}
  #allocation0 [shape = 'u32[]', space=smem, size = 0x4, offset = 0x4, fixed_abs, tag = 'smem constant byte address 0x4 - core index']
  #allocation1 [shape = 'u32[144,128]{1,0:T(1,128)}', space=vmem, size = 0x12000, scoped, tag = 'internal scratch']
  #allocation2 [shape = 'f32[1,32]{1,0:T(1,128)}', space=vmem, size = 0x200, scoped, tag = 'scratch operand']
  #allocation3 [shape = 'f32[1,32]{1,0:T(1,128)}', space=vmem, size = 0x200, scoped, tag = 'scratch operand']
  #allocation4 [shape = 'f32[9,128]{1,0:T(8,128)}', space=vmem, size = 0x2000, scoped, tag = 'scratch operand']
  #allocation5 [shape = 'f32[9,32]{1,0:T(8,128)}', space=vmem, size = 0x2000, scoped, tag = 'scratch operand']
  %s0 = inlined_call_operand.vmem [shape: f32[1,23], index: 0, kind: input, shape index: {}]
  %s1 = inlined_call_operand.vmem [shape: f32[23,3072], index: 1, kind: input, shape index: {}]
  %s2 = inlined_call_operand.vmem [shape: f32[1,3072], index: 2, kind: input, shape index: {}]
  %s3 = inlined_call_operand.vmem [shape: f32[3072,128], index: 3, kind: input, shape index: {}]
  %s4 = inlined_call_operand.vmem [shape: f32[1,128], index: 4, kind: input, shape index: {}]
  %s5 = inlined_call_operand.vmem [shape: f32[9,2080], index: 5, kind: input, shape index: {}]
  %s6 = inlined_call_operand.vmem [shape: bf16[2080,128], index: 6, kind: input, shape index: {}]
  %s7 = inlined_call_operand.vmem [shape: f32[1,128], index: 7, kind: input, shape index: {}]
  %s8 = inlined_call_operand.vmem [shape: f32[32,128], index: 8, kind: input, shape index: {}]
  %s9 = inlined_call_operand.vmem [shape: bf16[32,1152], index: 9, kind: input, shape index: {}]
  %s10 = inlined_call_operand.vmem [shape: f32[1,1152], index: 10, kind: input, shape index: {}]
  %s11 = inlined_call_operand.vmem [shape: f32[9,1152], index: 11, kind: output, shape index: {}]
  %s12 = sld [smem:[#allocation0]]
  $region62: #{mtlstm_forward.1} parent=0
    _
  %s14 = ssub.s32 1, %s12
  %s15 = scalar_select 0, %s14, %s12
  // Predicated region
  $region2: #{mtlstm_forward.1} parent=0 // pred_check
    _
  $region3: #{mtlstm_forward.1} parent=0 // pred_check_branch
    %17 = sbr.rel (0) target = $region5
  $region4: #{mtlstm_forward.1} parent=0 // pred_region
    _
  $region5: #{mtlstm_forward.1} parent=0 // pred_fallthru
    _
  // Predicated region
  $region6: #{mtlstm_forward.1} parent=0 // pred_check
    _
  $region7: #{mtlstm_forward.1} parent=0 // pred_check_branch
    %19 = sbr.rel (0) target = $region9
  $region8: #{mtlstm_forward.1} parent=0 // pred_region
    _
  $region9: #{mtlstm_forward.1} parent=0 // pred_fallthru
    _
  // Predicated region
  $region10: #{mtlstm_forward.1} parent=0 // pred_check
    _
  $region11: #{mtlstm_forward.1} parent=0 // pred_check_branch
    %21 = sbr.rel (0) target = $region13
  $region12: #{mtlstm_forward.1} parent=0 // pred_region
    _
  $region13: #{mtlstm_forward.1} parent=0 // pred_fallthru
    _
  // Predicated region
  $region14: #{mtlstm_forward.1} parent=0 // pred_check
    _
  $region15: #{mtlstm_forward.1} parent=0 // pred_check_branch
    %23 = sbr.rel (0) target = $region17
  $region16: #{mtlstm_forward.1} parent=0 // pred_region
    _
  $region17: #{mtlstm_forward.1} parent=0 // pred_fallthru
    _
  // Predicated region
  $region18: #{mtlstm_forward.1} parent=0 // pred_check
    _
  $region19: #{mtlstm_forward.1} parent=0 // pred_check_branch
    %25 = sbr.rel (0) target = $region21
  $region20: #{mtlstm_forward.1} parent=0 // pred_region
    _
  $region21: #{mtlstm_forward.1} parent=0 // pred_fallthru
    _
  // Predicated region
  $region22: #{mtlstm_forward.1} parent=0 // pred_check
    _
  $region23: #{mtlstm_forward.1} parent=0 // pred_check_branch
    %27 = sbr.rel (0) target = $region25
  $region24: #{mtlstm_forward.1} parent=0 // pred_region
    _
  $region25: #{mtlstm_forward.1} parent=0 // pred_fallthru
    _
  // Predicated region
  $region26: #{mtlstm_forward.1} parent=0 // pred_check
    _
  $region27: #{mtlstm_forward.1} parent=0 // pred_check_branch
    %29 = sbr.rel (0) target = $region29
  $region28: #{mtlstm_forward.1} parent=0 // pred_region
    _
  $region29: #{mtlstm_forward.1} parent=0 // pred_fallthru
    _
  // Predicated region
  $region30: #{mtlstm_forward.1} parent=0 // pred_check
    _
  $region31: #{mtlstm_forward.1} parent=0 // pred_check_branch
    %31 = sbr.rel (0) target = $region33
  $region32: #{mtlstm_forward.1} parent=0 // pred_region
    _
  $region33: #{mtlstm_forward.1} parent=0 // pred_fallthru
    _
  // Predicated region
  $region34: #{mtlstm_forward.1} parent=0 // pred_check
    _
  $region35: #{mtlstm_forward.1} parent=0 // pred_check_branch
    %33 = sbr.rel (0) target = $region37
  $region36: #{mtlstm_forward.1} parent=0 // pred_region
    _
  $region37: #{mtlstm_forward.1} parent=0 // pred_fallthru
    _
  // Predicated region
  $region38: #{mtlstm_forward.1} parent=0 // pred_check
    _
  $region39: #{mtlstm_forward.1} parent=0 // pred_check_branch
    %35 = sbr.rel (0) target = $region41
  $region40: #{mtlstm_forward.1} parent=0 // pred_region
    _
  $region41: #{mtlstm_forward.1} parent=0 // pred_fallthru
    _
  // Predicated region
  $region42: #{mtlstm_forward.1} parent=0 // pred_check
    _
  $region43: #{mtlstm_forward.1} parent=0 // pred_check_branch
    %37 = sbr.rel (0) target = $region45
  $region44: #{mtlstm_forward.1} parent=0 // pred_region
    _
  $region45: #{mtlstm_forward.1} parent=0 // pred_fallthru
    _
  %p39 = scmp.eq.s32.totalorder 0, 0
  // Predicated region
  $region46: #{mtlstm_forward.1} parent=0 // pred_check
    %p40 = pneg %p39
  $region47: #{mtlstm_forward.1} parent=0 // pred_check_branch
    %42 = sbr.rel (%p40) target = $region49
  $region48: #{mtlstm_forward.1} parent=0 // pred_region
    %vm43 = vcmask 253952
    %44 = vst.msk [vmem:[#allocation2] sm:$0x1] %vm43, 0.0
    %45 = vst.msk [vmem:[#allocation3] sm:$0x1] %vm43, 0.0
  $region49: #{mtlstm_forward.1} parent=0 // pred_fallthru
    _
  %v46 = vld [vmem:[%s5] sm:$0xff]
  %v47 = vld [vmem:[%s5 + $0x8] sm:$0xff]
  %v48 = vld [vmem:[%s5 + $0x10] sm:$0xff]
  %v49 = vld [vmem:[%s5 + $0x18] sm:$0xff]
  %v50 = vld [vmem:[%s5 + $0x20] sm:$0xff]
  %v51 = vld [vmem:[%s5 + $0x28] sm:$0xff]
  %v52 = vld [vmem:[%s5 + $0x30] sm:$0xff]
  %v53 = vld [vmem:[%s5 + $0x38] sm:$0xff]
  %v54 = vld [vmem:[%s5 + $0x40] sm:$0xff]
  %v55 = vld [vmem:[%s5 + $0x48] sm:$0xff]
  %v56 = vld [vmem:[%s5 + $0x50] sm:$0xff]
  %v57 = vld [vmem:[%s5 + $0x58] sm:$0xff]
  %v58 = vld [vmem:[%s5 + $0x60] sm:$0xff]
  %v59 = vld [vmem:[%s5 + $0x68] sm:$0xff]
  %v60 = vld [vmem:[%s5 + $0x70] sm:$0xff]
  %v61 = vld [vmem:[%s5 + $0x78] sm:$0xff]
  %v62 = vld [vmem:[%s5 + $0x80] sm:$0xff]
  %v63 = vld [vmem:[%s5 + $0x88] sm:$0x1]
  %v64 = vld [vmem:[%s5 + $0x90] sm:$0x1]
  %v65 = vld [vmem:[%s5 + $0x98] sm:$0x1]
  %v66 = vld [vmem:[%s5 + $0xa0] sm:$0x1]
  %v67 = vld [vmem:[%s5 + $0xa8] sm:$0x1]
  %v68 = vld [vmem:[%s5 + $0xb0] sm:$0x1]
  %v69 = vld [vmem:[%s5 + $0xb8] sm:$0x1]
  %v70 = vld [vmem:[%s5 + $0xc0] sm:$0x1]
  %v71 = vld [vmem:[%s5 + $0xc8] sm:$0x1]
  %v72 = vld [vmem:[%s5 + $0xd0] sm:$0x1]
  %v73 = vld [vmem:[%s5 + $0xd8] sm:$0x1]
  %v74 = vld [vmem:[%s5 + $0xe0] sm:$0x1]
  %v75 = vld [vmem:[%s5 + $0xe8] sm:$0x1]
  %v76 = vld [vmem:[%s5 + $0xf0] sm:$0x1]
  %v77 = vld [vmem:[%s5 + $0xf8] sm:$0x1]
  %v78 = vld [vmem:[%s5 + $0x100] sm:$0x1]
  %v79 = vld [vmem:[%s5 + $0x108] sm:$0x1]
  %v80 = vpack.c.bf16 %v63, %v46
  %v81 = vpack.c.bf16 %v64, %v47
  %v82 = vpack.c.bf16 %v65, %v48
  %v83 = vpack.c.bf16 %v66, %v49
  %v84 = vpack.c.bf16 %v67, %v50
  %v85 = vpack.c.bf16 %v68, %v51
  %v86 = vpack.c.bf16 %v69, %v52
  %v87 = vpack.c.bf16 %v70, %v53
  %v88 = vpack.c.bf16 %v71, %v54
  %v89 = vpack.c.bf16 %v72, %v55
  %v90 = vpack.c.bf16 %v73, %v56
  %v91 = vpack.c.bf16 %v74, %v57
  %v92 = vpack.c.bf16 %v75, %v58
  %v93 = vpack.c.bf16 %v76, %v59
  %v94 = vpack.c.bf16 %v77, %v60
  %v95 = vpack.c.bf16 %v78, %v61
  %v96 = vpack.c.bf16 %v79, %v62
  %v97 = vld [vmem:[%s6] sm:$0xf]
  %v98 = vld [vmem:[%s6 + $0x4] sm:$0xf]
  %v99 = vld [vmem:[%s6 + $0x8] sm:$0xf]
  %v100 = vld [vmem:[%s6 + $0xc] sm:$0xf]
  %v101 = vld [vmem:[%s6 + $0x10] sm:$0xf]
  %v102 = vld [vmem:[%s6 + $0x14] sm:$0xf]
  %v103 = vld [vmem:[%s6 + $0x18] sm:$0xf]
  %v104 = vld [vmem:[%s6 + $0x1c] sm:$0xf]
  %v105 = vld [vmem:[%s6 + $0x20] sm:$0xf]
  %v106 = vld [vmem:[%s6 + $0x24] sm:$0xf]
  %v107 = vld [vmem:[%s6 + $0x28] sm:$0xf]
  %v108 = vld [vmem:[%s6 + $0x2c] sm:$0xf]
  %v109 = vld [vmem:[%s6 + $0x30] sm:$0xf]
  %v110 = vld [vmem:[%s6 + $0x34] sm:$0xf]
  %v111 = vld [vmem:[%s6 + $0x38] sm:$0xf]
  %v112 = vld [vmem:[%s6 + $0x3c] sm:$0xf]
  %v113 = vld [vmem:[%s6 + $0x40] sm:$0xf]
  %v114 = vld [vmem:[%s6 + $0x44] sm:$0xf]
  %v115 = vld [vmem:[%s6 + $0x48] sm:$0xf]
  %v116 = vld [vmem:[%s6 + $0x4c] sm:$0xf]
  %v117 = vld [vmem:[%s6 + $0x50] sm:$0xf]
  %v118 = vld [vmem:[%s6 + $0x54] sm:$0xf]
  %v119 = vld [vmem:[%s6 + $0x58] sm:$0xf]
  %v120 = vld [vmem:[%s6 + $0x5c] sm:$0xf]
  %v121 = vld [vmem:[%s6 + $0x60] sm:$0xf]
  %v122 = vld [vmem:[%s6 + $0x64] sm:$0xf]
  %v123 = vld [vmem:[%s6 + $0x68] sm:$0xf]
  %v124 = vld [vmem:[%s6 + $0x6c] sm:$0xf]
  %v125 = vld [vmem:[%s6 + $0x70] sm:$0xf]
  %v126 = vld [vmem:[%s6 + $0x74] sm:$0xf]
  %v127 = vld [vmem:[%s6 + $0x78] sm:$0xf]
  %v128 = vld [vmem:[%s6 + $0x7c] sm:$0xf]
  %v129 = vld [vmem:[%s6 + $0x80] sm:$0xf]
  %v130 = vld [vmem:[%s6 + $0x84] sm:$0xf]
  %v131 = vld [vmem:[%s6 + $0x88] sm:$0xf]
  %v132 = vld [vmem:[%s6 + $0x8c] sm:$0xf]
  %v133 = vld [vmem:[%s6 + $0x90] sm:$0xf]
  %v134 = vld [vmem:[%s6 + $0x94] sm:$0xf]
  %v135 = vld [vmem:[%s6 + $0x98] sm:$0xf]
  %v136 = vld [vmem:[%s6 + $0x9c] sm:$0xf]
  %v137 = vld [vmem:[%s6 + $0xa0] sm:$0xf]
  %v138 = vld [vmem:[%s6 + $0xa4] sm:$0xf]
  %v139 = vld [vmem:[%s6 + $0xa8] sm:$0xf]
  %v140 = vld [vmem:[%s6 + $0xac] sm:$0xf]
  %v141 = vld [vmem:[%s6 + $0xb0] sm:$0xf]
  %v142 = vld [vmem:[%s6 + $0xb4] sm:$0xf]
  %v143 = vld [vmem:[%s6 + $0xb8] sm:$0xf]
  %v144 = vld [vmem:[%s6 + $0xbc] sm:$0xf]
  %v145 = vld [vmem:[%s6 + $0xc0] sm:$0xf]
  %v146 = vld [vmem:[%s6 + $0xc4] sm:$0xf]
  %v147 = vld [vmem:[%s6 + $0xc8] sm:$0xf]
  %v148 = vld [vmem:[%s6 + $0xcc] sm:$0xf]
  %v149 = vld [vmem:[%s6 + $0xd0] sm:$0xf]
  %v150 = vld [vmem:[%s6 + $0xd4] sm:$0xf]
  %v151 = vld [vmem:[%s6 + $0xd8] sm:$0xf]
  %v152 = vld [vmem:[%s6 + $0xdc] sm:$0xf]
  %v153 = vld [vmem:[%s6 + $0xe0] sm:$0xf]
  %v154 = vld [vmem:[%s6 + $0xe4] sm:$0xf]
  %v155 = vld [vmem:[%s6 + $0xe8] sm:$0xf]
  %v156 = vld [vmem:[%s6 + $0xec] sm:$0xf]
  %v157 = vld [vmem:[%s6 + $0xf0] sm:$0xf]
  %v158 = vld [vmem:[%s6 + $0xf4] sm:$0xf]
  %v159 = vld [vmem:[%s6 + $0xf8] sm:$0xf]
  %v160 = vld [vmem:[%s6 + $0xfc] sm:$0xf]
  %v161 = vld [vmem:[%s6 + $0x100] sm:$0xf]
  %v162 = vld [vmem:[%s6 + $0x104] sm:$0xf]
  %v163 = vld [vmem:[%s6 + $0x108] sm:$0xf]
  %v164 = vld [vmem:[%s6 + $0x10c] sm:$0xf]
  %v165 = vld [vmem:[%s6 + $0x110] sm:$0xf]
  %v166 = vld [vmem:[%s6 + $0x114] sm:$0xf]
  %v167 = vld [vmem:[%s6 + $0x118] sm:$0xf]
  %v168 = vld [vmem:[%s6 + $0x11c] sm:$0xf]
  %v169 = vld [vmem:[%s6 + $0x120] sm:$0xf]
  %v170 = vld [vmem:[%s6 + $0x124] sm:$0xf]
  %v171 = vld [vmem:[%s6 + $0x128] sm:$0xf]
  %v172 = vld [vmem:[%s6 + $0x12c] sm:$0xf]
  %v173 = vld [vmem:[%s6 + $0x130] sm:$0xf]
  %v174 = vld [vmem:[%s6 + $0x134] sm:$0xf]
  %v175 = vld [vmem:[%s6 + $0x138] sm:$0xf]
  %v176 = vld [vmem:[%s6 + $0x13c] sm:$0xf]
  %v177 = vld [vmem:[%s6 + $0x140] sm:$0xf]
  %v178 = vld [vmem:[%s6 + $0x144] sm:$0xf]
  %v179 = vld [vmem:[%s6 + $0x148] sm:$0xf]
  %v180 = vld [vmem:[%s6 + $0x14c] sm:$0xf]
  %v181 = vld [vmem:[%s6 + $0x150] sm:$0xf]
  %v182 = vld [vmem:[%s6 + $0x154] sm:$0xf]
  %v183 = vld [vmem:[%s6 + $0x158] sm:$0xf]
  %v184 = vld [vmem:[%s6 + $0x15c] sm:$0xf]
  %v185 = vld [vmem:[%s6 + $0x160] sm:$0xf]
  %v186 = vld [vmem:[%s6 + $0x164] sm:$0xf]
  %v187 = vld [vmem:[%s6 + $0x168] sm:$0xf]
  %v188 = vld [vmem:[%s6 + $0x16c] sm:$0xf]
  %v189 = vld [vmem:[%s6 + $0x170] sm:$0xf]
  %v190 = vld [vmem:[%s6 + $0x174] sm:$0xf]
  %v191 = vld [vmem:[%s6 + $0x178] sm:$0xf]
  %v192 = vld [vmem:[%s6 + $0x17c] sm:$0xf]
  %v193 = vld [vmem:[%s6 + $0x180] sm:$0xf]
  %v194 = vld [vmem:[%s6 + $0x184] sm:$0xf]
  %v195 = vld [vmem:[%s6 + $0x188] sm:$0xf]
  %v196 = vld [vmem:[%s6 + $0x18c] sm:$0xf]
  %v197 = vld [vmem:[%s6 + $0x190] sm:$0xf]
  %v198 = vld [vmem:[%s6 + $0x194] sm:$0xf]
  %v199 = vld [vmem:[%s6 + $0x198] sm:$0xf]
  %v200 = vld [vmem:[%s6 + $0x19c] sm:$0xf]
  %v201 = vld [vmem:[%s6 + $0x1a0] sm:$0xf]
  %v202 = vld [vmem:[%s6 + $0x1a4] sm:$0xf]
  %v203 = vld [vmem:[%s6 + $0x1a8] sm:$0xf]
  %v204 = vld [vmem:[%s6 + $0x1ac] sm:$0xf]
  %v205 = vld [vmem:[%s6 + $0x1b0] sm:$0xf]
  %v206 = vld [vmem:[%s6 + $0x1b4] sm:$0xf]
  %v207 = vld [vmem:[%s6 + $0x1b8] sm:$0xf]
  %v208 = vld [vmem:[%s6 + $0x1bc] sm:$0xf]
  %v209 = vld [vmem:[%s6 + $0x1c0] sm:$0xf]
  %v210 = vld [vmem:[%s6 + $0x1c4] sm:$0xf]
  %v211 = vld [vmem:[%s6 + $0x1c8] sm:$0xf]
  %v212 = vld [vmem:[%s6 + $0x1cc] sm:$0xf]
  %v213 = vld [vmem:[%s6 + $0x1d0] sm:$0xf]
  %v214 = vld [vmem:[%s6 + $0x1d4] sm:$0xf]
  %v215 = vld [vmem:[%s6 + $0x1d8] sm:$0xf]
  %v216 = vld [vmem:[%s6 + $0x1dc] sm:$0xf]
  %v217 = vld [vmem:[%s6 + $0x1e0] sm:$0xf]
  %v218 = vld [vmem:[%s6 + $0x1e4] sm:$0xf]
  %v219 = vld [vmem:[%s6 + $0x1e8] sm:$0xf]
  %v220 = vld [vmem:[%s6 + $0x1ec] sm:$0xf]
  %v221 = vld [vmem:[%s6 + $0x1f0] sm:$0xf]
  %v222 = vld [vmem:[%s6 + $0x1f4] sm:$0xf]
  %v223 = vld [vmem:[%s6 + $0x1f8] sm:$0xf]
  %v224 = vld [vmem:[%s6 + $0x1fc] sm:$0xf]
  %v225 = vld [vmem:[%s6 + $0x200] sm:$0xf]
  %v226 = vld [vmem:[%s6 + $0x204] sm:$0xf]
  %v227 = vld [vmem:[%s6 + $0x208] sm:$0xf]
  %v228 = vld [vmem:[%s6 + $0x20c] sm:$0xf]
  %v229 = vld [vmem:[%s6 + $0x210] sm:$0xf]
  %v230 = vld [vmem:[%s6 + $0x214] sm:$0xf]
  %v231 = vld [vmem:[%s6 + $0x218] sm:$0xf]
  %v232 = vld [vmem:[%s6 + $0x21c] sm:$0xf]
  %v233 = vld [vmem:[%s6 + $0x220] sm:$0xf]
  %v234 = vld [vmem:[%s6 + $0x224] sm:$0xf]
  %v235 = vld [vmem:[%s6 + $0x228] sm:$0xf]
  %v236 = vld [vmem:[%s6 + $0x22c] sm:$0xf]
  %v237 = vld [vmem:[%s6 + $0x230] sm:$0xf]
  %v238 = vld [vmem:[%s6 + $0x234] sm:$0xf]
  %v239 = vld [vmem:[%s6 + $0x238] sm:$0xf]
  %v240 = vld [vmem:[%s6 + $0x23c] sm:$0xf]
  %v241 = vld [vmem:[%s6 + $0x240] sm:$0xf]
  %v242 = vld [vmem:[%s6 + $0x244] sm:$0xf]
  %v243 = vld [vmem:[%s6 + $0x248] sm:$0xf]
  %v244 = vld [vmem:[%s6 + $0x24c] sm:$0xf]
  %v245 = vld [vmem:[%s6 + $0x250] sm:$0xf]
  %v246 = vld [vmem:[%s6 + $0x254] sm:$0xf]
  %v247 = vld [vmem:[%s6 + $0x258] sm:$0xf]
  %v248 = vld [vmem:[%s6 + $0x25c] sm:$0xf]
  %v249 = vld [vmem:[%s6 + $0x260] sm:$0xf]
  %v250 = vld [vmem:[%s6 + $0x264] sm:$0xf]
  %v251 = vld [vmem:[%s6 + $0x268] sm:$0xf]
  %v252 = vld [vmem:[%s6 + $0x26c] sm:$0xf]
  %v253 = vld [vmem:[%s6 + $0x270] sm:$0xf]
  %v254 = vld [vmem:[%s6 + $0x274] sm:$0xf]
  %v255 = vld [vmem:[%s6 + $0x278] sm:$0xf]
  %v256 = vld [vmem:[%s6 + $0x27c] sm:$0xf]
  %v257 = vld [vmem:[%s6 + $0x280] sm:$0xf]
  %v258 = vld [vmem:[%s6 + $0x284] sm:$0xf]
  %v259 = vld [vmem:[%s6 + $0x288] sm:$0xf]
  %v260 = vld [vmem:[%s6 + $0x28c] sm:$0xf]
  %v261 = vld [vmem:[%s6 + $0x290] sm:$0xf]
  %v262 = vld [vmem:[%s6 + $0x294] sm:$0xf]
  %v263 = vld [vmem:[%s6 + $0x298] sm:$0xf]
  %v264 = vld [vmem:[%s6 + $0x29c] sm:$0xf]
  %v265 = vld [vmem:[%s6 + $0x2a0] sm:$0xf]
  %v266 = vld [vmem:[%s6 + $0x2a4] sm:$0xf]
  %v267 = vld [vmem:[%s6 + $0x2a8] sm:$0xf]
  %v268 = vld [vmem:[%s6 + $0x2ac] sm:$0xf]
  %v269 = vld [vmem:[%s6 + $0x2b0] sm:$0xf]
  %v270 = vld [vmem:[%s6 + $0x2b4] sm:$0xf]
  %v271 = vld [vmem:[%s6 + $0x2b8] sm:$0xf]
  %v272 = vld [vmem:[%s6 + $0x2bc] sm:$0xf]
  %v273 = vld [vmem:[%s6 + $0x2c0] sm:$0xf]
  %v274 = vld [vmem:[%s6 + $0x2c4] sm:$0xf]
  %v275 = vld [vmem:[%s6 + $0x2c8] sm:$0xf]
  %v276 = vld [vmem:[%s6 + $0x2cc] sm:$0xf]
  %v277 = vld [vmem:[%s6 + $0x2d0] sm:$0xf]
  %v278 = vld [vmem:[%s6 + $0x2d4] sm:$0xf]
  %v279 = vld [vmem:[%s6 + $0x2d8] sm:$0xf]
  %v280 = vld [vmem:[%s6 + $0x2dc] sm:$0xf]
  %v281 = vld [vmem:[%s6 + $0x2e0] sm:$0xf]
  %v282 = vld [vmem:[%s6 + $0x2e4] sm:$0xf]
  %v283 = vld [vmem:[%s6 + $0x2e8] sm:$0xf]
  %v284 = vld [vmem:[%s6 + $0x2ec] sm:$0xf]
  %v285 = vld [vmem:[%s6 + $0x2f0] sm:$0xf]
  %v286 = vld [vmem:[%s6 + $0x2f4] sm:$0xf]
  %v287 = vld [vmem:[%s6 + $0x2f8] sm:$0xf]
  %v288 = vld [vmem:[%s6 + $0x2fc] sm:$0xf]
  %v289 = vld [vmem:[%s6 + $0x300] sm:$0xf]
  %v290 = vld [vmem:[%s6 + $0x304] sm:$0xf]
  %v291 = vld [vmem:[%s6 + $0x308] sm:$0xf]
  %v292 = vld [vmem:[%s6 + $0x30c] sm:$0xf]
  %v293 = vld [vmem:[%s6 + $0x310] sm:$0xf]
  %v294 = vld [vmem:[%s6 + $0x314] sm:$0xf]
  %v295 = vld [vmem:[%s6 + $0x318] sm:$0xf]
  %v296 = vld [vmem:[%s6 + $0x31c] sm:$0xf]
  %v297 = vld [vmem:[%s6 + $0x320] sm:$0xf]
  %v298 = vld [vmem:[%s6 + $0x324] sm:$0xf]
  %v299 = vld [vmem:[%s6 + $0x328] sm:$0xf]
  %v300 = vld [vmem:[%s6 + $0x32c] sm:$0xf]
  %v301 = vld [vmem:[%s6 + $0x330] sm:$0xf]
  %v302 = vld [vmem:[%s6 + $0x334] sm:$0xf]
  %v303 = vld [vmem:[%s6 + $0x338] sm:$0xf]
  %v304 = vld [vmem:[%s6 + $0x33c] sm:$0xf]
  %v305 = vld [vmem:[%s6 + $0x340] sm:$0xf]
  %v306 = vld [vmem:[%s6 + $0x344] sm:$0xf]
  %v307 = vld [vmem:[%s6 + $0x348] sm:$0xf]
  %v308 = vld [vmem:[%s6 + $0x34c] sm:$0xf]
  %v309 = vld [vmem:[%s6 + $0x350] sm:$0xf]
  %v310 = vld [vmem:[%s6 + $0x354] sm:$0xf]
  %v311 = vld [vmem:[%s6 + $0x358] sm:$0xf]
  %v312 = vld [vmem:[%s6 + $0x35c] sm:$0xf]
  %v313 = vld [vmem:[%s6 + $0x360] sm:$0xf]
  %v314 = vld [vmem:[%s6 + $0x364] sm:$0xf]
  %v315 = vld [vmem:[%s6 + $0x368] sm:$0xf]
  %v316 = vld [vmem:[%s6 + $0x36c] sm:$0xf]
  %v317 = vld [vmem:[%s6 + $0x370] sm:$0xf]
  %v318 = vld [vmem:[%s6 + $0x374] sm:$0xf]
  %v319 = vld [vmem:[%s6 + $0x378] sm:$0xf]
  %v320 = vld [vmem:[%s6 + $0x37c] sm:$0xf]
  %v321 = vld [vmem:[%s6 + $0x380] sm:$0xf]
  %v322 = vld [vmem:[%s6 + $0x384] sm:$0xf]
  %v323 = vld [vmem:[%s6 + $0x388] sm:$0xf]
  %v324 = vld [vmem:[%s6 + $0x38c] sm:$0xf]
  %v325 = vld [vmem:[%s6 + $0x390] sm:$0xf]
  %v326 = vld [vmem:[%s6 + $0x394] sm:$0xf]
  %v327 = vld [vmem:[%s6 + $0x398] sm:$0xf]
  %v328 = vld [vmem:[%s6 + $0x39c] sm:$0xf]
  %v329 = vld [vmem:[%s6 + $0x3a0] sm:$0xf]
  %v330 = vld [vmem:[%s6 + $0x3a4] sm:$0xf]
  %v331 = vld [vmem:[%s6 + $0x3a8] sm:$0xf]
  %v332 = vld [vmem:[%s6 + $0x3ac] sm:$0xf]
  %v333 = vld [vmem:[%s6 + $0x3b0] sm:$0xf]
  %v334 = vld [vmem:[%s6 + $0x3b4] sm:$0xf]
  %v335 = vld [vmem:[%s6 + $0x3b8] sm:$0xf]
  %v336 = vld [vmem:[%s6 + $0x3bc] sm:$0xf]
  %v337 = vld [vmem:[%s6 + $0x3c0] sm:$0xf]
  %v338 = vld [vmem:[%s6 + $0x3c4] sm:$0xf]
  %v339 = vld [vmem:[%s6 + $0x3c8] sm:$0xf]
  %v340 = vld [vmem:[%s6 + $0x3cc] sm:$0xf]
  %v341 = vld [vmem:[%s6 + $0x3d0] sm:$0xf]
  %v342 = vld [vmem:[%s6 + $0x3d4] sm:$0xf]
  %v343 = vld [vmem:[%s6 + $0x3d8] sm:$0xf]
  %v344 = vld [vmem:[%s6 + $0x3dc] sm:$0xf]
  %v345 = vld [vmem:[%s6 + $0x3e0] sm:$0xf]
  %v346 = vld [vmem:[%s6 + $0x3e4] sm:$0xf]
  %v347 = vld [vmem:[%s6 + $0x3e8] sm:$0xf]
  %v348 = vld [vmem:[%s6 + $0x3ec] sm:$0xf]
  %v349 = vld [vmem:[%s6 + $0x3f0] sm:$0xf]
  %v350 = vld [vmem:[%s6 + $0x3f4] sm:$0xf]
  %v351 = vld [vmem:[%s6 + $0x3f8] sm:$0xf]
  %v352 = vld [vmem:[%s6 + $0x3fc] sm:$0xf]
  %v353 = vld [vmem:[%s6 + $0x400] sm:$0xf]
  %v354 = vld [vmem:[%s6 + $0x404] sm:$0xf]
  %v355 = vld [vmem:[%s6 + $0x408] sm:$0xf]
  %v356 = vld [vmem:[%s6 + $0x40c] sm:$0xf]
  %v357 = vld [vmem:[%s7] sm:$0x1]
  %v359 = vlaneseq
  %v360 = vshrl.u32 %v359, 7
  %v361 = vsub.s32 0, %v360
  %v362 = vrot.slane %v357, %v361
  %v624 = vunpack.c.l.b16 %v97
  %v625 = vunpack.c.l.b16 %v98
  %v626 = vunpack.c.l.b16 %v99
  %v627 = vunpack.c.l.b16 %v100
  %v628 = vunpack.c.l.b16 %v101
  %v629 = vunpack.c.l.b16 %v102
  %v630 = vunpack.c.l.b16 %v103
  %v631 = vunpack.c.l.b16 %v104
  %v632 = vunpack.c.l.b16 %v105
  %v633 = vunpack.c.l.b16 %v106
  %v634 = vunpack.c.l.b16 %v107
  %v635 = vunpack.c.l.b16 %v108
  %v636 = vunpack.c.l.b16 %v109
  %v637 = vunpack.c.l.b16 %v110
  %v638 = vunpack.c.l.b16 %v111
  %v639 = vunpack.c.l.b16 %v112
  %v640 = vunpack.c.l.b16 %v113
  %v641 = vunpack.c.l.b16 %v114
  %v642 = vunpack.c.l.b16 %v115
  %v643 = vunpack.c.l.b16 %v116
  %v644 = vunpack.c.l.b16 %v117
  %v645 = vunpack.c.l.b16 %v118
  %v646 = vunpack.c.l.b16 %v119
  %v647 = vunpack.c.l.b16 %v120
  %v648 = vunpack.c.l.b16 %v121
  %v649 = vunpack.c.l.b16 %v122
  %v650 = vunpack.c.l.b16 %v123
  %v651 = vunpack.c.l.b16 %v124
  %v652 = vunpack.c.l.b16 %v125
  %v653 = vunpack.c.l.b16 %v126
  %v654 = vunpack.c.l.b16 %v127
  %v655 = vunpack.c.l.b16 %v128
  %v656 = vunpack.c.l.b16 %v129
  %v657 = vunpack.c.l.b16 %v130
  %v658 = vunpack.c.l.b16 %v131
  %v659 = vunpack.c.l.b16 %v132
  %v660 = vunpack.c.l.b16 %v133
  %v661 = vunpack.c.l.b16 %v134
  %v662 = vunpack.c.l.b16 %v135
  %v663 = vunpack.c.l.b16 %v136
  %v664 = vunpack.c.l.b16 %v137
  %v665 = vunpack.c.l.b16 %v138
  %v666 = vunpack.c.l.b16 %v139
  %v667 = vunpack.c.l.b16 %v140
  %v668 = vunpack.c.l.b16 %v141
  %v669 = vunpack.c.l.b16 %v142
  %v670 = vunpack.c.l.b16 %v143
  %v671 = vunpack.c.l.b16 %v144
  %v672 = vunpack.c.l.b16 %v145
  %v673 = vunpack.c.l.b16 %v146
  %v674 = vunpack.c.l.b16 %v147
  %v675 = vunpack.c.l.b16 %v148
  %v676 = vunpack.c.l.b16 %v149
  %v677 = vunpack.c.l.b16 %v150
  %v678 = vunpack.c.l.b16 %v151
  %v679 = vunpack.c.l.b16 %v152
  %v680 = vunpack.c.l.b16 %v153
  %v681 = vunpack.c.l.b16 %v154
  %v682 = vunpack.c.l.b16 %v155
  %v683 = vunpack.c.l.b16 %v156
  %v684 = vunpack.c.l.b16 %v157
  %v685 = vunpack.c.l.b16 %v158
  %v686 = vunpack.c.l.b16 %v159
  %v687 = vunpack.c.l.b16 %v160
  %v688 = vunpack.c.l.b16 %v161
  %v689 = vunpack.c.l.b16 %v162
  %v690 = vunpack.c.l.b16 %v163
  %v691 = vunpack.c.l.b16 %v164
  %v692 = vunpack.c.l.b16 %v165
  %v693 = vunpack.c.l.b16 %v166
  %v694 = vunpack.c.l.b16 %v167
  %v695 = vunpack.c.l.b16 %v168
  %v696 = vunpack.c.l.b16 %v169
  %v697 = vunpack.c.l.b16 %v170
  %v698 = vunpack.c.l.b16 %v171
  %v699 = vunpack.c.l.b16 %v172
  %v700 = vunpack.c.l.b16 %v173
  %v701 = vunpack.c.l.b16 %v174
  %v702 = vunpack.c.l.b16 %v175
  %v703 = vunpack.c.l.b16 %v176
  %v704 = vunpack.c.l.b16 %v177
  %v705 = vunpack.c.l.b16 %v178
  %v706 = vunpack.c.l.b16 %v179
  %v707 = vunpack.c.l.b16 %v180
  %v708 = vunpack.c.l.b16 %v181
  %v709 = vunpack.c.l.b16 %v182
  %v710 = vunpack.c.l.b16 %v183
  %v711 = vunpack.c.l.b16 %v184
  %v712 = vunpack.c.l.b16 %v185
  %v713 = vunpack.c.l.b16 %v186
  %v714 = vunpack.c.l.b16 %v187
  %v715 = vunpack.c.l.b16 %v188
  %v716 = vunpack.c.l.b16 %v189
  %v717 = vunpack.c.l.b16 %v190
  %v718 = vunpack.c.l.b16 %v191
  %v719 = vunpack.c.l.b16 %v192
  %v720 = vunpack.c.l.b16 %v193
  %v721 = vunpack.c.l.b16 %v194
  %v722 = vunpack.c.l.b16 %v195
  %v723 = vunpack.c.l.b16 %v196
  %v724 = vunpack.c.l.b16 %v197
  %v725 = vunpack.c.l.b16 %v198
  %v726 = vunpack.c.l.b16 %v199
  %v727 = vunpack.c.l.b16 %v200
  %v728 = vunpack.c.l.b16 %v201
  %v729 = vunpack.c.l.b16 %v202
  %v730 = vunpack.c.l.b16 %v203
  %v731 = vunpack.c.l.b16 %v204
  %v732 = vunpack.c.l.b16 %v205
  %v733 = vunpack.c.l.b16 %v206
  %v734 = vunpack.c.l.b16 %v207
  %v735 = vunpack.c.l.b16 %v208
  %v736 = vunpack.c.l.b16 %v209
  %v737 = vunpack.c.l.b16 %v210
  %v738 = vunpack.c.l.b16 %v211
  %v739 = vunpack.c.l.b16 %v212
  %v740 = vunpack.c.l.b16 %v213
  %v741 = vunpack.c.l.b16 %v214
  %v742 = vunpack.c.l.b16 %v215
  %v743 = vunpack.c.l.b16 %v216
  %v744 = vunpack.c.l.b16 %v217
  %v745 = vunpack.c.l.b16 %v218
  %v746 = vunpack.c.l.b16 %v219
  %v747 = vunpack.c.l.b16 %v220
  %v748 = vunpack.c.l.b16 %v221
  %v749 = vunpack.c.l.b16 %v222
  %v750 = vunpack.c.l.b16 %v223
  %v751 = vunpack.c.l.b16 %v224
  %v752 = vunpack.c.l.b16 %v225
  %v753 = vunpack.c.l.b16 %v226
  %v754 = vunpack.c.l.b16 %v227
  %v755 = vunpack.c.l.b16 %v228
  %v756 = vunpack.c.l.b16 %v229
  %v757 = vunpack.c.l.b16 %v230
  %v758 = vunpack.c.l.b16 %v231
  %v759 = vunpack.c.l.b16 %v232
  %v760 = vunpack.c.l.b16 %v233
  %v761 = vunpack.c.l.b16 %v234
  %v762 = vunpack.c.l.b16 %v235
  %v763 = vunpack.c.l.b16 %v236
  %v764 = vunpack.c.l.b16 %v237
  %v765 = vunpack.c.l.b16 %v238
  %v766 = vunpack.c.l.b16 %v239
  %v767 = vunpack.c.l.b16 %v240
  %v768 = vunpack.c.l.b16 %v241
  %v769 = vunpack.c.l.b16 %v242
  %v770 = vunpack.c.l.b16 %v243
  %v771 = vunpack.c.l.b16 %v244
  %v772 = vunpack.c.l.b16 %v245
  %v773 = vunpack.c.l.b16 %v246
  %v774 = vunpack.c.l.b16 %v247
  %v775 = vunpack.c.l.b16 %v248
  %v776 = vunpack.c.l.b16 %v249
  %v777 = vunpack.c.l.b16 %v250
  %v778 = vunpack.c.l.b16 %v251
  %v779 = vunpack.c.l.b16 %v252
  %v780 = vunpack.c.l.b16 %v253
  %v781 = vunpack.c.l.b16 %v254
  %v782 = vunpack.c.l.b16 %v255
  %v783 = vunpack.c.l.b16 %v256
  %v784 = vunpack.c.l.b16 %v257
  %v785 = vunpack.c.l.b16 %v258
  %v786 = vunpack.c.l.b16 %v259
  %v787 = vunpack.c.l.b16 %v260
  %v788 = vunpack.c.l.b16 %v261
  %v789 = vunpack.c.l.b16 %v262
  %v790 = vunpack.c.l.b16 %v263
  %v791 = vunpack.c.l.b16 %v264
  %v792 = vunpack.c.l.b16 %v265
  %v793 = vunpack.c.l.b16 %v266
  %v794 = vunpack.c.l.b16 %v267
  %v795 = vunpack.c.l.b16 %v268
  %v796 = vunpack.c.l.b16 %v269
  %v797 = vunpack.c.l.b16 %v270
  %v798 = vunpack.c.l.b16 %v271
  %v799 = vunpack.c.l.b16 %v272
  %v800 = vunpack.c.l.b16 %v273
  %v801 = vunpack.c.l.b16 %v274
  %v802 = vunpack.c.l.b16 %v275
  %v803 = vunpack.c.l.b16 %v276
  %v804 = vunpack.c.l.b16 %v277
  %v805 = vunpack.c.l.b16 %v278
  %v806 = vunpack.c.l.b16 %v279
  %v807 = vunpack.c.l.b16 %v280
  %v808 = vunpack.c.l.b16 %v281
  %v809 = vunpack.c.l.b16 %v282
  %v810 = vunpack.c.l.b16 %v283
  %v811 = vunpack.c.l.b16 %v284
  %v812 = vunpack.c.l.b16 %v285
  %v813 = vunpack.c.l.b16 %v286
  %v814 = vunpack.c.l.b16 %v287
  %v815 = vunpack.c.l.b16 %v288
  %v816 = vunpack.c.l.b16 %v289
  %v817 = vunpack.c.l.b16 %v290
  %v818 = vunpack.c.l.b16 %v291
  %v819 = vunpack.c.l.b16 %v292
  %v820 = vunpack.c.l.b16 %v293
  %v821 = vunpack.c.l.b16 %v294
  %v822 = vunpack.c.l.b16 %v295
  %v823 = vunpack.c.l.b16 %v296
  %v824 = vunpack.c.l.b16 %v297
  %v825 = vunpack.c.l.b16 %v298
  %v826 = vunpack.c.l.b16 %v299
  %v827 = vunpack.c.l.b16 %v300
  %v828 = vunpack.c.l.b16 %v301
  %v829 = vunpack.c.l.b16 %v302
  %v830 = vunpack.c.l.b16 %v303
  %v831 = vunpack.c.l.b16 %v304
  %v832 = vunpack.c.l.b16 %v305
  %v833 = vunpack.c.l.b16 %v306
  %v834 = vunpack.c.l.b16 %v307
  %v835 = vunpack.c.l.b16 %v308
  %v836 = vunpack.c.l.b16 %v309
  %v837 = vunpack.c.l.b16 %v310
  %v838 = vunpack.c.l.b16 %v311
  %v839 = vunpack.c.l.b16 %v312
  %v840 = vunpack.c.l.b16 %v313
  %v841 = vunpack.c.l.b16 %v314
  %v842 = vunpack.c.l.b16 %v315
  %v843 = vunpack.c.l.b16 %v316
  %v844 = vunpack.c.l.b16 %v317
  %v845 = vunpack.c.l.b16 %v318
  %v846 = vunpack.c.l.b16 %v319
  %v847 = vunpack.c.l.b16 %v320
  %v848 = vunpack.c.l.b16 %v321
  %v849 = vunpack.c.l.b16 %v322
  %v850 = vunpack.c.l.b16 %v323
  %v851 = vunpack.c.l.b16 %v324
  %v852 = vunpack.c.l.b16 %v325
  %v853 = vunpack.c.l.b16 %v326
  %v854 = vunpack.c.l.b16 %v327
  %v855 = vunpack.c.l.b16 %v328
  %v856 = vunpack.c.l.b16 %v329
  %v857 = vunpack.c.l.b16 %v330
  %v858 = vunpack.c.l.b16 %v331
  %v859 = vunpack.c.l.b16 %v332
  %v860 = vunpack.c.l.b16 %v333
  %v861 = vunpack.c.l.b16 %v334
  %v862 = vunpack.c.l.b16 %v335
  %v863 = vunpack.c.l.b16 %v336
  %v864 = vunpack.c.l.b16 %v337
  %v865 = vunpack.c.l.b16 %v338
  %v866 = vunpack.c.l.b16 %v339
  %v867 = vunpack.c.l.b16 %v340
  %v868 = vunpack.c.l.b16 %v341
  %v869 = vunpack.c.l.b16 %v342
  %v870 = vunpack.c.l.b16 %v343
  %v871 = vunpack.c.l.b16 %v344
  %v872 = vunpack.c.l.b16 %v345
  %v873 = vunpack.c.l.b16 %v346
  %v874 = vunpack.c.l.b16 %v347
  %v875 = vunpack.c.l.b16 %v348
  %v876 = vunpack.c.l.b16 %v349
  %v877 = vunpack.c.l.b16 %v350
  %v878 = vunpack.c.l.b16 %v351
  %v879 = vunpack.c.l.b16 %v352
  %v880 = vunpack.c.l.b16 %v353
  %v881 = vunpack.c.l.b16 %v354
  %v882 = vunpack.c.l.b16 %v355
  %v883 = vunpack.c.l.b16 %v356
  %v884 = vpack.c.b16 %v625, %v624
  %v885 = vpack.c.b16 %v627, %v626
  %v886 = vpack.c.b16 %v629, %v628
  %v887 = vpack.c.b16 %v631, %v630
  %v888 = vpack.c.b16 %v633, %v632
  %v889 = vpack.c.b16 %v635, %v634
  %v890 = vpack.c.b16 %v637, %v636
  %v891 = vpack.c.b16 %v639, %v638
  %v892 = vpack.c.b16 %v641, %v640
  %v893 = vpack.c.b16 %v643, %v642
  %v894 = vpack.c.b16 %v645, %v644
  %v895 = vpack.c.b16 %v647, %v646
  %v896 = vpack.c.b16 %v649, %v648
  %v897 = vpack.c.b16 %v651, %v650
  %v898 = vpack.c.b16 %v653, %v652
  %v899 = vpack.c.b16 %v655, %v654
  %v900 = vpack.c.b16 %v657, %v656
  %v901 = vpack.c.b16 %v659, %v658
  %v902 = vpack.c.b16 %v661, %v660
  %v903 = vpack.c.b16 %v663, %v662
  %v904 = vpack.c.b16 %v665, %v664
  %v905 = vpack.c.b16 %v667, %v666
  %v906 = vpack.c.b16 %v669, %v668
  %v907 = vpack.c.b16 %v671, %v670
  %v908 = vpack.c.b16 %v673, %v672
  %v909 = vpack.c.b16 %v675, %v674
  %v910 = vpack.c.b16 %v677, %v676
  %v911 = vpack.c.b16 %v679, %v678
  %v912 = vpack.c.b16 %v681, %v680
  %v913 = vpack.c.b16 %v683, %v682
  %v914 = vpack.c.b16 %v685, %v684
  %v915 = vpack.c.b16 %v687, %v686
  %v916 = vpack.c.b16 %v689, %v688
  %v917 = vpack.c.b16 %v691, %v690
  %v918 = vpack.c.b16 %v693, %v692
  %v919 = vpack.c.b16 %v695, %v694
  %v920 = vpack.c.b16 %v697, %v696
  %v921 = vpack.c.b16 %v699, %v698
  %v922 = vpack.c.b16 %v701, %v700
  %v923 = vpack.c.b16 %v703, %v702
  %v924 = vpack.c.b16 %v705, %v704
  %v925 = vpack.c.b16 %v707, %v706
  %v926 = vpack.c.b16 %v709, %v708
  %v927 = vpack.c.b16 %v711, %v710
  %v928 = vpack.c.b16 %v713, %v712
  %v929 = vpack.c.b16 %v715, %v714
  %v930 = vpack.c.b16 %v717, %v716
  %v931 = vpack.c.b16 %v719, %v718
  %v932 = vpack.c.b16 %v721, %v720
  %v933 = vpack.c.b16 %v723, %v722
  %v934 = vpack.c.b16 %v725, %v724
  %v935 = vpack.c.b16 %v727, %v726
  %v936 = vpack.c.b16 %v729, %v728
  %v937 = vpack.c.b16 %v731, %v730
  %v938 = vpack.c.b16 %v733, %v732
  %v939 = vpack.c.b16 %v735, %v734
  %v940 = vpack.c.b16 %v737, %v736
  %v941 = vpack.c.b16 %v739, %v738
  %v942 = vpack.c.b16 %v741, %v740
  %v943 = vpack.c.b16 %v743, %v742
  %v944 = vpack.c.b16 %v745, %v744
  %v945 = vpack.c.b16 %v747, %v746
  %v946 = vpack.c.b16 %v749, %v748
  %v947 = vpack.c.b16 %v751, %v750
  %v948 = vpack.c.b16 %v753, %v752
  %v949 = vpack.c.b16 %v755, %v754
  %v950 = vpack.c.b16 %v757, %v756
  %v951 = vpack.c.b16 %v759, %v758
  %v952 = vpack.c.b16 %v761, %v760
  %v953 = vpack.c.b16 %v763, %v762
  %v954 = vpack.c.b16 %v765, %v764
  %v955 = vpack.c.b16 %v767, %v766
  %v956 = vpack.c.b16 %v769, %v768
  %v957 = vpack.c.b16 %v771, %v770
  %v958 = vpack.c.b16 %v773, %v772
  %v959 = vpack.c.b16 %v775, %v774
  %v960 = vpack.c.b16 %v777, %v776
  %v961 = vpack.c.b16 %v779, %v778
  %v962 = vpack.c.b16 %v781, %v780
  %v963 = vpack.c.b16 %v783, %v782
  %v964 = vpack.c.b16 %v785, %v784
  %v965 = vpack.c.b16 %v787, %v786
  %v966 = vpack.c.b16 %v789, %v788
  %v967 = vpack.c.b16 %v791, %v790
  %v968 = vpack.c.b16 %v793, %v792
  %v969 = vpack.c.b16 %v795, %v794
  %v970 = vpack.c.b16 %v797, %v796
  %v971 = vpack.c.b16 %v799, %v798
  %v972 = vpack.c.b16 %v801, %v800
  %v973 = vpack.c.b16 %v803, %v802
  %v974 = vpack.c.b16 %v805, %v804
  %v975 = vpack.c.b16 %v807, %v806
  %v976 = vpack.c.b16 %v809, %v808
  %v977 = vpack.c.b16 %v811, %v810
  %v978 = vpack.c.b16 %v813, %v812
  %v979 = vpack.c.b16 %v815, %v814
  %v980 = vpack.c.b16 %v817, %v816
  %v981 = vpack.c.b16 %v819, %v818
  %v982 = vpack.c.b16 %v821, %v820
  %v983 = vpack.c.b16 %v823, %v822
  %v984 = vpack.c.b16 %v825, %v824
  %v985 = vpack.c.b16 %v827, %v826
  %v986 = vpack.c.b16 %v829, %v828
  %v987 = vpack.c.b16 %v831, %v830
  %v988 = vpack.c.b16 %v833, %v832
  %v989 = vpack.c.b16 %v835, %v834
  %v990 = vpack.c.b16 %v837, %v836
  %v991 = vpack.c.b16 %v839, %v838
  %v992 = vpack.c.b16 %v841, %v840
  %v993 = vpack.c.b16 %v843, %v842
  %v994 = vpack.c.b16 %v845, %v844
  %v995 = vpack.c.b16 %v847, %v846
  %v996 = vpack.c.b16 %v849, %v848
  %v997 = vpack.c.b16 %v851, %v850
  %v998 = vpack.c.b16 %v853, %v852
  %v999 = vpack.c.b16 %v855, %v854
  %v1000 = vpack.c.b16 %v857, %v856
  %v1001 = vpack.c.b16 %v859, %v858
  %v1002 = vpack.c.b16 %v861, %v860
  %v1003 = vpack.c.b16 %v863, %v862
  %v1004 = vpack.c.b16 %v865, %v864
  %v1005 = vpack.c.b16 %v867, %v866
  %v1006 = vpack.c.b16 %v869, %v868
  %v1007 = vpack.c.b16 %v871, %v870
  %v1008 = vpack.c.b16 %v873, %v872
  %v1009 = vpack.c.b16 %v875, %v874
  %v1010 = vpack.c.b16 %v877, %v876
  %v1011 = vpack.c.b16 %v879, %v878
  %v1012 = vpack.c.b16 %v881, %v880
  %v1013 = vpack.c.b16 %v883, %v882
  %vm1144 = vcmask 261120
  %v1146 = vsel %vm1144, %v96, 0
  %1148 = vmatprep.subr.bf16.mxu0 0
  %1149 = vmatpush1.bf16.msra.mxu0 %v884
  %1150 = vmatprep.subr.bf16.mxu0 0
  %1151 = vmatpush1.bf16.msra.mxu0 %v885
  %1152 = vmatprep.subr.bf16.mxu0 0
  %1153 = vmatpush1.bf16.msra.mxu0 %v886
  %1154 = vmatprep.subr.bf16.mxu0 0
  %1155 = vmatpush1.bf16.msra.mxu0 %v887
  %1156 = vmatprep.subr.bf16.mxu0 0
  %1157 = vmatpush1.bf16.msra.mxu0 %v888
  %1158 = vmatprep.subr.bf16.mxu0 0
  %1159 = vmatpush1.bf16.msra.mxu0 %v889
  %1160 = vmatprep.subr.bf16.mxu0 0
  %1161 = vmatpush1.bf16.msra.mxu0 %v890
  %1162 = vmatprep.subr.bf16.mxu0 0
  %1163 = vmatpush1.bf16.msra.mxu0 %v891
  %1164 = vmatprep.subr.bf16.mxu0 0
  %1165 = vmatpush1.bf16.msra.mxu0 %v892
  %1166 = vmatprep.subr.bf16.mxu0 0
  %1167 = vmatpush1.bf16.msra.mxu0 %v893
  %1168 = vmatprep.subr.bf16.mxu0 0
  %1169 = vmatpush1.bf16.msra.mxu0 %v894
  %1170 = vmatprep.subr.bf16.mxu0 0
  %1171 = vmatpush1.bf16.msra.mxu0 %v895
  %1172 = vmatprep.subr.bf16.mxu0 0
  %1173 = vmatpush1.bf16.msra.mxu0 %v896
  %1174 = vmatprep.subr.bf16.mxu0 0
  %1175 = vmatpush1.bf16.msra.mxu0 %v897
  %1176 = vmatprep.subr.bf16.mxu0 0
  %1177 = vmatpush1.bf16.msra.mxu0 %v898
  %1178 = vmatprep.subr.bf16.mxu0 0
  %1179 = vmatpush1.bf16.msra.mxu0 %v899
  %1180 = vmatprep.mubr.bf16.mxu0 %v81
  %1181 = vmatmul.mubr.bf16.gmra.mrb[0].mxu0 %v80
  %v1182 = vpop.f32.mrb[0].mxu0
  %v1183 = vadd.f32 %v362, %v1182
  %v1184 = vpop.f32.mrb[0].mxu0
  %v1185 = vpop.f32.mrb[0].mxu0
  %v1186 = vadd.f32 %v362, %v1185
  %v1187 = vpop.f32.mrb[0].mxu0
  %1188 = vdwg.mxu0
  %1189 = vmatprep.subr.bf16.mxu0 0
  %1190 = vmatpush1.bf16.msra.mxu0 %v900
  %1191 = vmatprep.subr.bf16.mxu0 0
  %1192 = vmatpush1.bf16.msra.mxu0 %v901
  %1193 = vmatprep.subr.bf16.mxu0 0
  %1194 = vmatpush1.bf16.msra.mxu0 %v902
  %1195 = vmatprep.subr.bf16.mxu0 0
  %1196 = vmatpush1.bf16.msra.mxu0 %v903
  %1197 = vmatprep.subr.bf16.mxu0 0
  %1198 = vmatpush1.bf16.msra.mxu0 %v904
  %1199 = vmatprep.subr.bf16.mxu0 0
  %1200 = vmatpush1.bf16.msra.mxu0 %v905
  %1201 = vmatprep.subr.bf16.mxu0 0
  %1202 = vmatpush1.bf16.msra.mxu0 %v906
  %1203 = vmatprep.subr.bf16.mxu0 0
  %1204 = vmatpush1.bf16.msra.mxu0 %v907
  %1205 = vmatprep.subr.bf16.mxu0 0
  %1206 = vmatpush1.bf16.msra.mxu0 %v908
  %1207 = vmatprep.subr.bf16.mxu0 0
  %1208 = vmatpush1.bf16.msra.mxu0 %v909
  %1209 = vmatprep.subr.bf16.mxu0 0
  %1210 = vmatpush1.bf16.msra.mxu0 %v910
  %1211 = vmatprep.subr.bf16.mxu0 0
  %1212 = vmatpush1.bf16.msra.mxu0 %v911
  %1213 = vmatprep.subr.bf16.mxu0 0
  %1214 = vmatpush1.bf16.msra.mxu0 %v912
  %1215 = vmatprep.subr.bf16.mxu0 0
  %1216 = vmatpush1.bf16.msra.mxu0 %v913
  %1217 = vmatprep.subr.bf16.mxu0 0
  %1218 = vmatpush1.bf16.msra.mxu0 %v914
  %1219 = vmatprep.subr.bf16.mxu0 0
  %1220 = vmatpush1.bf16.msra.mxu0 %v915
  %1221 = vmatprep.mubr.bf16.mxu0 %v83
  %1222 = vmatmul.mubr.bf16.gmra.mrb[0].mxu0 %v82
  %v1223 = vpop.f32.mrb[0].mxu0
  %v1224 = vadd.f32 %v1183, %v1223
  %v1225 = vpop.f32.mrb[0].mxu0
  %v1226 = vpop.f32.mrb[0].mxu0
  %v1227 = vadd.f32 %v1186, %v1226
  %v1228 = vpop.f32.mrb[0].mxu0
  %1229 = vdwg.mxu0
  %1230 = vmatprep.subr.bf16.mxu0 0
  %1231 = vmatpush1.bf16.msra.mxu0 %v916
  %1232 = vmatprep.subr.bf16.mxu0 0
  %1233 = vmatpush1.bf16.msra.mxu0 %v917
  %1234 = vmatprep.subr.bf16.mxu0 0
  %1235 = vmatpush1.bf16.msra.mxu0 %v918
  %1236 = vmatprep.subr.bf16.mxu0 0
  %1237 = vmatpush1.bf16.msra.mxu0 %v919
  %1238 = vmatprep.subr.bf16.mxu0 0
  %1239 = vmatpush1.bf16.msra.mxu0 %v920
  %1240 = vmatprep.subr.bf16.mxu0 0
  %1241 = vmatpush1.bf16.msra.mxu0 %v921
  %1242 = vmatprep.subr.bf16.mxu0 0
  %1243 = vmatpush1.bf16.msra.mxu0 %v922
  %1244 = vmatprep.subr.bf16.mxu0 0
  %1245 = vmatpush1.bf16.msra.mxu0 %v923
  %1246 = vmatprep.subr.bf16.mxu0 0
  %1247 = vmatpush1.bf16.msra.mxu0 %v924
  %1248 = vmatprep.subr.bf16.mxu0 0
  %1249 = vmatpush1.bf16.msra.mxu0 %v925
  %1250 = vmatprep.subr.bf16.mxu0 0
  %1251 = vmatpush1.bf16.msra.mxu0 %v926
  %1252 = vmatprep.subr.bf16.mxu0 0
  %1253 = vmatpush1.bf16.msra.mxu0 %v927
  %1254 = vmatprep.subr.bf16.mxu0 0
  %1255 = vmatpush1.bf16.msra.mxu0 %v928
  %1256 = vmatprep.subr.bf16.mxu0 0
  %1257 = vmatpush1.bf16.msra.mxu0 %v929
  %1258 = vmatprep.subr.bf16.mxu0 0
  %1259 = vmatpush1.bf16.msra.mxu0 %v930
  %1260 = vmatprep.subr.bf16.mxu0 0
  %1261 = vmatpush1.bf16.msra.mxu0 %v931
  %1262 = vmatprep.mubr.bf16.mxu0 %v85
  %1263 = vmatmul.mubr.bf16.gmra.mrb[0].mxu0 %v84
  %v1264 = vpop.f32.mrb[0].mxu0
  %v1265 = vadd.f32 %v1224, %v1264
  %v1266 = vpop.f32.mrb[0].mxu0
  %v1267 = vpop.f32.mrb[0].mxu0
  %v1268 = vadd.f32 %v1227, %v1267
  %v1269 = vpop.f32.mrb[0].mxu0
  %1270 = vdwg.mxu0
  %1271 = vmatprep.subr.bf16.mxu0 0
  %1272 = vmatpush1.bf16.msra.mxu0 %v932
  %1273 = vmatprep.subr.bf16.mxu0 0
  %1274 = vmatpush1.bf16.msra.mxu0 %v933
  %1275 = vmatprep.subr.bf16.mxu0 0
  %1276 = vmatpush1.bf16.msra.mxu0 %v934
  %1277 = vmatprep.subr.bf16.mxu0 0
  %1278 = vmatpush1.bf16.msra.mxu0 %v935
  %1279 = vmatprep.subr.bf16.mxu0 0
  %1280 = vmatpush1.bf16.msra.mxu0 %v936
  %1281 = vmatprep.subr.bf16.mxu0 0
  %1282 = vmatpush1.bf16.msra.mxu0 %v937
  %1283 = vmatprep.subr.bf16.mxu0 0
  %1284 = vmatpush1.bf16.msra.mxu0 %v938
  %1285 = vmatprep.subr.bf16.mxu0 0
  %1286 = vmatpush1.bf16.msra.mxu0 %v939
  %1287 = vmatprep.subr.bf16.mxu0 0
  %1288 = vmatpush1.bf16.msra.mxu0 %v940
  %1289 = vmatprep.subr.bf16.mxu0 0
  %1290 = vmatpush1.bf16.msra.mxu0 %v941
  %1291 = vmatprep.subr.bf16.mxu0 0
  %1292 = vmatpush1.bf16.msra.mxu0 %v942
  %1293 = vmatprep.subr.bf16.mxu0 0
  %1294 = vmatpush1.bf16.msra.mxu0 %v943
  %1295 = vmatprep.subr.bf16.mxu0 0
  %1296 = vmatpush1.bf16.msra.mxu0 %v944
  %1297 = vmatprep.subr.bf16.mxu0 0
  %1298 = vmatpush1.bf16.msra.mxu0 %v945
  %1299 = vmatprep.subr.bf16.mxu0 0
  %1300 = vmatpush1.bf16.msra.mxu0 %v946
  %1301 = vmatprep.subr.bf16.mxu0 0
  %1302 = vmatpush1.bf16.msra.mxu0 %v947
  %1303 = vmatprep.mubr.bf16.mxu0 %v87
  %1304 = vmatmul.mubr.bf16.gmra.mrb[0].mxu0 %v86
  %v1305 = vpop.f32.mrb[0].mxu0
  %v1306 = vadd.f32 %v1265, %v1305
  %v1307 = vpop.f32.mrb[0].mxu0
  %v1308 = vpop.f32.mrb[0].mxu0
  %v1309 = vadd.f32 %v1268, %v1308
  %v1310 = vpop.f32.mrb[0].mxu0
  %1311 = vdwg.mxu0
  %1312 = vmatprep.subr.bf16.mxu0 0
  %1313 = vmatpush1.bf16.msra.mxu0 %v948
  %1314 = vmatprep.subr.bf16.mxu0 0
  %1315 = vmatpush1.bf16.msra.mxu0 %v949
  %1316 = vmatprep.subr.bf16.mxu0 0
  %1317 = vmatpush1.bf16.msra.mxu0 %v950
  %1318 = vmatprep.subr.bf16.mxu0 0
  %1319 = vmatpush1.bf16.msra.mxu0 %v951
  %1320 = vmatprep.subr.bf16.mxu0 0
  %1321 = vmatpush1.bf16.msra.mxu0 %v952
  %1322 = vmatprep.subr.bf16.mxu0 0
  %1323 = vmatpush1.bf16.msra.mxu0 %v953
  %1324 = vmatprep.subr.bf16.mxu0 0
  %1325 = vmatpush1.bf16.msra.mxu0 %v954
  %1326 = vmatprep.subr.bf16.mxu0 0
  %1327 = vmatpush1.bf16.msra.mxu0 %v955
  %1328 = vmatprep.subr.bf16.mxu0 0
  %1329 = vmatpush1.bf16.msra.mxu0 %v956
  %1330 = vmatprep.subr.bf16.mxu0 0
  %1331 = vmatpush1.bf16.msra.mxu0 %v957
  %1332 = vmatprep.subr.bf16.mxu0 0
  %1333 = vmatpush1.bf16.msra.mxu0 %v958
  %1334 = vmatprep.subr.bf16.mxu0 0
  %1335 = vmatpush1.bf16.msra.mxu0 %v959
  %1336 = vmatprep.subr.bf16.mxu0 0
  %1337 = vmatpush1.bf16.msra.mxu0 %v960
  %1338 = vmatprep.subr.bf16.mxu0 0
  %1339 = vmatpush1.bf16.msra.mxu0 %v961
  %1340 = vmatprep.subr.bf16.mxu0 0
  %1341 = vmatpush1.bf16.msra.mxu0 %v962
  %1342 = vmatprep.subr.bf16.mxu0 0
  %1343 = vmatpush1.bf16.msra.mxu0 %v963
  %1344 = vmatprep.mubr.bf16.mxu0 %v89
  %1345 = vmatmul.mubr.bf16.gmra.mrb[0].mxu0 %v88
  %v1346 = vpop.f32.mrb[0].mxu0
  %v1347 = vadd.f32 %v1306, %v1346
  %v1348 = vpop.f32.mrb[0].mxu0
  %v1349 = vpop.f32.mrb[0].mxu0
  %v1350 = vadd.f32 %v1309, %v1349
  %v1351 = vpop.f32.mrb[0].mxu0
  %1352 = vdwg.mxu0
  %1353 = vmatprep.subr.bf16.mxu0 0
  %1354 = vmatpush1.bf16.msra.mxu0 %v964
  %1355 = vmatprep.subr.bf16.mxu0 0
  %1356 = vmatpush1.bf16.msra.mxu0 %v965
  %1357 = vmatprep.subr.bf16.mxu0 0
  %1358 = vmatpush1.bf16.msra.mxu0 %v966
  %1359 = vmatprep.subr.bf16.mxu0 0
  %1360 = vmatpush1.bf16.msra.mxu0 %v967
  %1361 = vmatprep.subr.bf16.mxu0 0
  %1362 = vmatpush1.bf16.msra.mxu0 %v968
  %1363 = vmatprep.subr.bf16.mxu0 0
  %1364 = vmatpush1.bf16.msra.mxu0 %v969
  %1365 = vmatprep.subr.bf16.mxu0 0
  %1366 = vmatpush1.bf16.msra.mxu0 %v970
  %1367 = vmatprep.subr.bf16.mxu0 0
  %1368 = vmatpush1.bf16.msra.mxu0 %v971
  %1369 = vmatprep.subr.bf16.mxu0 0
  %1370 = vmatpush1.bf16.msra.mxu0 %v972
  %1371 = vmatprep.subr.bf16.mxu0 0
  %1372 = vmatpush1.bf16.msra.mxu0 %v973
  %1373 = vmatprep.subr.bf16.mxu0 0
  %1374 = vmatpush1.bf16.msra.mxu0 %v974
  %1375 = vmatprep.subr.bf16.mxu0 0
  %1376 = vmatpush1.bf16.msra.mxu0 %v975
  %1377 = vmatprep.subr.bf16.mxu0 0
  %1378 = vmatpush1.bf16.msra.mxu0 %v976
  %1379 = vmatprep.subr.bf16.mxu0 0
  %1380 = vmatpush1.bf16.msra.mxu0 %v977
  %1381 = vmatprep.subr.bf16.mxu0 0
  %1382 = vmatpush1.bf16.msra.mxu0 %v978
  %1383 = vmatprep.subr.bf16.mxu0 0
  %1384 = vmatpush1.bf16.msra.mxu0 %v979
  %1385 = vmatprep.mubr.bf16.mxu0 %v91
  %1386 = vmatmul.mubr.bf16.gmra.mrb[0].mxu0 %v90
  %v1387 = vpop.f32.mrb[0].mxu0
  %v1388 = vadd.f32 %v1347, %v1387
  %v1389 = vpop.f32.mrb[0].mxu0
  %v1390 = vpop.f32.mrb[0].mxu0
  %v1391 = vadd.f32 %v1350, %v1390
  %v1392 = vpop.f32.mrb[0].mxu0
  %1393 = vdwg.mxu0
  %1394 = vmatprep.subr.bf16.mxu0 0
  %1395 = vmatpush1.bf16.msra.mxu0 %v980
  %1396 = vmatprep.subr.bf16.mxu0 0
  %1397 = vmatpush1.bf16.msra.mxu0 %v981
  %1398 = vmatprep.subr.bf16.mxu0 0
  %1399 = vmatpush1.bf16.msra.mxu0 %v982
  %1400 = vmatprep.subr.bf16.mxu0 0
  %1401 = vmatpush1.bf16.msra.mxu0 %v983
  %1402 = vmatprep.subr.bf16.mxu0 0
  %1403 = vmatpush1.bf16.msra.mxu0 %v984
  %1404 = vmatprep.subr.bf16.mxu0 0
  %1405 = vmatpush1.bf16.msra.mxu0 %v985
  %1406 = vmatprep.subr.bf16.mxu0 0
  %1407 = vmatpush1.bf16.msra.mxu0 %v986
  %1408 = vmatprep.subr.bf16.mxu0 0
  %1409 = vmatpush1.bf16.msra.mxu0 %v987
  %1410 = vmatprep.subr.bf16.mxu0 0
  %1411 = vmatpush1.bf16.msra.mxu0 %v988
  %1412 = vmatprep.subr.bf16.mxu0 0
  %1413 = vmatpush1.bf16.msra.mxu0 %v989
  %1414 = vmatprep.subr.bf16.mxu0 0
  %1415 = vmatpush1.bf16.msra.mxu0 %v990
  %1416 = vmatprep.subr.bf16.mxu0 0
  %1417 = vmatpush1.bf16.msra.mxu0 %v991
  %1418 = vmatprep.subr.bf16.mxu0 0
  %1419 = vmatpush1.bf16.msra.mxu0 %v992
  %1420 = vmatprep.subr.bf16.mxu0 0
  %1421 = vmatpush1.bf16.msra.mxu0 %v993
  %1422 = vmatprep.subr.bf16.mxu0 0
  %1423 = vmatpush1.bf16.msra.mxu0 %v994
  %1424 = vmatprep.subr.bf16.mxu0 0
  %1425 = vmatpush1.bf16.msra.mxu0 %v995
  %1426 = vmatprep.mubr.bf16.mxu0 %v93
  %1427 = vmatmul.mubr.bf16.gmra.mrb[0].mxu0 %v92
  %v1428 = vpop.f32.mrb[0].mxu0
  %v1429 = vadd.f32 %v1388, %v1428
  %v1430 = vpop.f32.mrb[0].mxu0
  %v1431 = vpop.f32.mrb[0].mxu0
  %v1432 = vadd.f32 %v1391, %v1431
  %v1433 = vpop.f32.mrb[0].mxu0
  %1434 = vdwg.mxu0
  %1435 = vmatprep.subr.bf16.mxu0 0
  %1436 = vmatpush1.bf16.msra.mxu0 %v996
  %1437 = vmatprep.subr.bf16.mxu0 0
  %1438 = vmatpush1.bf16.msra.mxu0 %v997
  %1439 = vmatprep.subr.bf16.mxu0 0
  %1440 = vmatpush1.bf16.msra.mxu0 %v998
  %1441 = vmatprep.subr.bf16.mxu0 0
  %1442 = vmatpush1.bf16.msra.mxu0 %v999
  %1443 = vmatprep.subr.bf16.mxu0 0
  %1444 = vmatpush1.bf16.msra.mxu0 %v1000
  %1445 = vmatprep.subr.bf16.mxu0 0
  %1446 = vmatpush1.bf16.msra.mxu0 %v1001
  %1447 = vmatprep.subr.bf16.mxu0 0
  %1448 = vmatpush1.bf16.msra.mxu0 %v1002
  %1449 = vmatprep.subr.bf16.mxu0 0
  %1450 = vmatpush1.bf16.msra.mxu0 %v1003
  %1451 = vmatprep.subr.bf16.mxu0 0
  %1452 = vmatpush1.bf16.msra.mxu0 %v1004
  %1453 = vmatprep.subr.bf16.mxu0 0
  %1454 = vmatpush1.bf16.msra.mxu0 %v1005
  %1455 = vmatprep.subr.bf16.mxu0 0
  %1456 = vmatpush1.bf16.msra.mxu0 %v1006
  %1457 = vmatprep.subr.bf16.mxu0 0
  %1458 = vmatpush1.bf16.msra.mxu0 %v1007
  %1459 = vmatprep.subr.bf16.mxu0 0
  %1460 = vmatpush1.bf16.msra.mxu0 %v1008
  %1461 = vmatprep.subr.bf16.mxu0 0
  %1462 = vmatpush1.bf16.msra.mxu0 %v1009
  %1463 = vmatprep.subr.bf16.mxu0 0
  %1464 = vmatpush1.bf16.msra.mxu0 %v1010
  %1465 = vmatprep.subr.bf16.mxu0 0
  %1466 = vmatpush1.bf16.msra.mxu0 %v1011
  %1467 = vmatprep.mubr.bf16.mxu0 %v95
  %1468 = vmatmul.mubr.bf16.gmra.mrb[0].mxu0 %v94
  %v1469 = vpop.f32.mrb[0].mxu0
  %v1470 = vadd.f32 %v1429, %v1469
  %v1471 = vpop.f32.mrb[0].mxu0
  %v1472 = vpop.f32.mrb[0].mxu0
  %v1473 = vadd.f32 %v1432, %v1472
  %v1474 = vpop.f32.mrb[0].mxu0
  %1475 = vdwg.mxu0
  %1476 = vmatprep.subr.bf16.mxu0 0
  %1477 = vmatpush1.bf16.msra.mxu0 %v1012
  %1478 = vmatprep.subr.bf16.mxu0 0
  %1479 = vmatpush1.bf16.msra.mxu0 %v1013
  %1480 = vmatprep.subr.bf16.mxu0 0
  %1481 = vmatpush1.bf16.msra.mxu0 0
  %1482 = vmatprep.subr.bf16.mxu0 0
  %1483 = vmatpush1.bf16.msra.mxu0 0
  %1484 = vmatprep.subr.bf16.mxu0 0
  %1485 = vmatpush1.bf16.msra.mxu0 0
  %1486 = vmatprep.subr.bf16.mxu0 0
  %1487 = vmatpush1.bf16.msra.mxu0 0
  %1488 = vmatprep.subr.bf16.mxu0 0
  %1489 = vmatpush1.bf16.msra.mxu0 0
  %1490 = vmatprep.subr.bf16.mxu0 0
  %1491 = vmatpush1.bf16.msra.mxu0 0
  %1492 = vmatprep.subr.bf16.mxu0 0
  %1493 = vmatpush1.bf16.msra.mxu0 0
  %1494 = vmatprep.subr.bf16.mxu0 0
  %1495 = vmatpush1.bf16.msra.mxu0 0
  %1496 = vmatprep.subr.bf16.mxu0 0
  %1497 = vmatpush1.bf16.msra.mxu0 0
  %1498 = vmatprep.subr.bf16.mxu0 0
  %1499 = vmatpush1.bf16.msra.mxu0 0
  %1500 = vmatprep.subr.bf16.mxu0 0
  %1501 = vmatpush1.bf16.msra.mxu0 0
  %1502 = vmatprep.subr.bf16.mxu0 0
  %1503 = vmatpush1.bf16.msra.mxu0 0
  %1504 = vmatprep.subr.bf16.mxu0 0
  %1505 = vmatpush1.bf16.msra.mxu0 0
  %1506 = vmatprep.subr.bf16.mxu0 0
  %1507 = vmatpush1.bf16.msra.mxu0 0
  %1508 = vmatprep.mubr.bf16.mxu0 0
  %1509 = vmatmul.mubr.bf16.gmra.mrb[0].mxu0 %v1146
  %v1510 = vpop.f32.mrb[0].mxu0
  %v1511 = vadd.f32 %v1470, %v1510
  %v1512 = vpop.f32.mrb[0].mxu0
  %v1513 = vpop.f32.mrb[0].mxu0
  %v1514 = vadd.f32 %v1473, %v1513
  %v1515 = vpop.f32.mrb[0].mxu0
  %1516 = vdwg.mxu0
  %1517 = vst [vmem:[#allocation4] sm:$0xff] %v1511
  %1518 = vst [vmem:[#allocation4 + $0x8] sm:$0x1] %v1514
  %v1519 = vld [vmem:[%s0] sm:$0x1]
  %v1520 = vld [vmem:[%s1] sm:$0xff]
  %v1521 = vld [vmem:[%s1 + $0x8] sm:$0xff]
  %v1522 = vld [vmem:[%s1 + $0x10] sm:$0xff]
  %v1523 = vld [vmem:[%s1 + $0x18] sm:$0xff]
  %v1524 = vld [vmem:[%s1 + $0x20] sm:$0xff]
  %v1525 = vld [vmem:[%s1 + $0x28] sm:$0xff]
  %v1526 = vld [vmem:[%s1 + $0x30] sm:$0xff]
  %v1527 = vld [vmem:[%s1 + $0x38] sm:$0xff]
  %v1528 = vld [vmem:[%s1 + $0x40] sm:$0xff]
  %v1529 = vld [vmem:[%s1 + $0x48] sm:$0xff]
  %v1530 = vld [vmem:[%s1 + $0x50] sm:$0xff]
  %v1531 = vld [vmem:[%s1 + $0x58] sm:$0xff]
  %v1532 = vld [vmem:[%s1 + $0x60] sm:$0xff]
  %v1533 = vld [vmem:[%s1 + $0x68] sm:$0xff]
  %v1534 = vld [vmem:[%s1 + $0x70] sm:$0xff]
  %v1535 = vld [vmem:[%s1 + $0x78] sm:$0xff]
  %v1536 = vld [vmem:[%s1 + $0x80] sm:$0xff]
  %v1537 = vld [vmem:[%s1 + $0x88] sm:$0xff]
  %v1538 = vld [vmem:[%s1 + $0x90] sm:$0xff]
  %v1539 = vld [vmem:[%s1 + $0x98] sm:$0xff]
  %v1540 = vld [vmem:[%s1 + $0xa0] sm:$0xff]
  %v1541 = vld [vmem:[%s1 + $0xa8] sm:$0xff]
  %v1542 = vld [vmem:[%s1 + $0xb0] sm:$0xff]
  %v1543 = vld [vmem:[%s1 + $0xb8] sm:$0xff]
  %v1544 = vld [vmem:[%s1 + $0xc0] sm:$0xff]
  %v1545 = vld [vmem:[%s1 + $0xc8] sm:$0xff]
  %v1546 = vld [vmem:[%s1 + $0xd0] sm:$0xff]
  %v1547 = vld [vmem:[%s1 + $0xd8] sm:$0xff]
  %v1548 = vld [vmem:[%s1 + $0xe0] sm:$0xff]
  %v1549 = vld [vmem:[%s1 + $0xe8] sm:$0xff]
  %v1550 = vld [vmem:[%s1 + $0xf0] sm:$0xff]
  %v1551 = vld [vmem:[%s1 + $0xf8] sm:$0xff]
  %v1552 = vld [vmem:[%s1 + $0x100] sm:$0xff]
  %v1553 = vld [vmem:[%s1 + $0x108] sm:$0xff]
  %v1554 = vld [vmem:[%s1 + $0x110] sm:$0xff]
  %v1555 = vld [vmem:[%s1 + $0x118] sm:$0xff]
  %v1556 = vld [vmem:[%s1 + $0x120] sm:$0xff]
  %v1557 = vld [vmem:[%s1 + $0x128] sm:$0xff]
  %v1558 = vld [vmem:[%s1 + $0x130] sm:$0xff]
  %v1559 = vld [vmem:[%s1 + $0x138] sm:$0xff]
  %v1560 = vld [vmem:[%s1 + $0x140] sm:$0xff]
  %v1561 = vld [vmem:[%s1 + $0x148] sm:$0xff]
  %v1562 = vld [vmem:[%s1 + $0x150] sm:$0xff]
  %v1563 = vld [vmem:[%s1 + $0x158] sm:$0xff]
  %v1564 = vld [vmem:[%s1 + $0x160] sm:$0xff]
  %v1565 = vld [vmem:[%s1 + $0x168] sm:$0xff]
  %v1566 = vld [vmem:[%s1 + $0x170] sm:$0xff]
  %v1567 = vld [vmem:[%s1 + $0x178] sm:$0xff]
  %v1568 = vld [vmem:[%s1 + $0x180] sm:$0x7f]
  %v1569 = vld [vmem:[%s1 + $0x188] sm:$0x7f]
  %v1570 = vld [vmem:[%s1 + $0x190] sm:$0x7f]
  %v1571 = vld [vmem:[%s1 + $0x198] sm:$0x7f]
  %v1572 = vld [vmem:[%s1 + $0x1a0] sm:$0x7f]
  %v1573 = vld [vmem:[%s1 + $0x1a8] sm:$0x7f]
  %v1574 = vld [vmem:[%s1 + $0x1b0] sm:$0x7f]
  %v1575 = vld [vmem:[%s1 + $0x1b8] sm:$0x7f]
  %v1576 = vld [vmem:[%s1 + $0x1c0] sm:$0x7f]
  %v1577 = vld [vmem:[%s1 + $0x1c8] sm:$0x7f]
  %v1578 = vld [vmem:[%s1 + $0x1d0] sm:$0x7f]
  %v1579 = vld [vmem:[%s1 + $0x1d8] sm:$0x7f]
  %v1580 = vld [vmem:[%s1 + $0x1e0] sm:$0x7f]
  %v1581 = vld [vmem:[%s1 + $0x1e8] sm:$0x7f]
  %v1582 = vld [vmem:[%s1 + $0x1f0] sm:$0x7f]
  %v1583 = vld [vmem:[%s1 + $0x1f8] sm:$0x7f]
  %v1584 = vld [vmem:[%s1 + $0x200] sm:$0x7f]
  %v1585 = vld [vmem:[%s1 + $0x208] sm:$0x7f]
  %v1586 = vld [vmem:[%s1 + $0x210] sm:$0x7f]
  %v1587 = vld [vmem:[%s1 + $0x218] sm:$0x7f]
  %v1588 = vld [vmem:[%s1 + $0x220] sm:$0x7f]
  %v1589 = vld [vmem:[%s1 + $0x228] sm:$0x7f]
  %v1590 = vld [vmem:[%s1 + $0x230] sm:$0x7f]
  %v1591 = vld [vmem:[%s1 + $0x238] sm:$0x7f]
  %v1592 = vld [vmem:[%s2] sm:$0xff]
  %v1593 = vld [vmem:[%s2 + $0x8] sm:$0xff]
  %v1594 = vld [vmem:[%s2 + $0x10] sm:$0xff]
  %v1598 = vlaneseq
  %v1599 = vshrl.u32 %v1598, 7
  %v1600 = vsub.s32 0, %v1599
  %v1601 = vrot.slane %v1592, %v1600
  %v1602 = vlaneseq
  %v1603 = vshrl.u32 %v1602, 7
  %v1604 = vsub.s32 1, %v1603
  %v1605 = vrot.slane %v1592, %v1604
  %v1606 = vlaneseq
  %v1607 = vshrl.u32 %v1606, 7
  %v1608 = vsub.s32 2, %v1607
  %v1609 = vrot.slane %v1592, %v1608
  %v1610 = vlaneseq
  %v1611 = vshrl.u32 %v1610, 7
  %v1612 = vsub.s32 3, %v1611
  %v1613 = vrot.slane %v1592, %v1612
  %v1614 = vlaneseq
  %v1615 = vshrl.u32 %v1614, 7
  %v1616 = vsub.s32 4, %v1615
  %v1617 = vrot.slane %v1592, %v1616
  %v1618 = vlaneseq
  %v1619 = vshrl.u32 %v1618, 7
  %v1620 = vsub.s32 5, %v1619
  %v1621 = vrot.slane %v1592, %v1620
  %v1622 = vlaneseq
  %v1623 = vshrl.u32 %v1622, 7
  %v1624 = vsub.s32 6, %v1623
  %v1625 = vrot.slane %v1592, %v1624
  %v1626 = vlaneseq
  %v1627 = vshrl.u32 %v1626, 7
  %v1628 = vsub.s32 7, %v1627
  %v1629 = vrot.slane %v1592, %v1628
  %v1630 = vlaneseq
  %v1631 = vshrl.u32 %v1630, 7
  %v1632 = vsub.s32 0, %v1631
  %v1633 = vrot.slane %v1593, %v1632
  %v1634 = vlaneseq
  %v1635 = vshrl.u32 %v1634, 7
  %v1636 = vsub.s32 1, %v1635
  %v1637 = vrot.slane %v1593, %v1636
  %v1638 = vlaneseq
  %v1639 = vshrl.u32 %v1638, 7
  %v1640 = vsub.s32 2, %v1639
  %v1641 = vrot.slane %v1593, %v1640
  %v1642 = vlaneseq
  %v1643 = vshrl.u32 %v1642, 7
  %v1644 = vsub.s32 3, %v1643
  %v1645 = vrot.slane %v1593, %v1644
  %v1646 = vlaneseq
  %v1647 = vshrl.u32 %v1646, 7
  %v1648 = vsub.s32 4, %v1647
  %v1649 = vrot.slane %v1593, %v1648
  %v1650 = vlaneseq
  %v1651 = vshrl.u32 %v1650, 7
  %v1652 = vsub.s32 5, %v1651
  %v1653 = vrot.slane %v1593, %v1652
  %v1654 = vlaneseq
  %v1655 = vshrl.u32 %v1654, 7
  %v1656 = vsub.s32 6, %v1655
  %v1657 = vrot.slane %v1593, %v1656
  %v1658 = vlaneseq
  %v1659 = vshrl.u32 %v1658, 7
  %v1660 = vsub.s32 7, %v1659
  %v1661 = vrot.slane %v1593, %v1660
  %v1662 = vlaneseq
  %v1663 = vshrl.u32 %v1662, 7
  %v1664 = vsub.s32 0, %v1663
  %v1665 = vrot.slane %v1594, %v1664
  %v1666 = vlaneseq
  %v1667 = vshrl.u32 %v1666, 7
  %v1668 = vsub.s32 1, %v1667
  %v1669 = vrot.slane %v1594, %v1668
  %v1670 = vlaneseq
  %v1671 = vshrl.u32 %v1670, 7
  %v1672 = vsub.s32 2, %v1671
  %v1673 = vrot.slane %v1594, %v1672
  %v1674 = vlaneseq
  %v1675 = vshrl.u32 %v1674, 7
  %v1676 = vsub.s32 3, %v1675
  %v1677 = vrot.slane %v1594, %v1676
  %v1678 = vlaneseq
  %v1679 = vshrl.u32 %v1678, 7
  %v1680 = vsub.s32 4, %v1679
  %v1681 = vrot.slane %v1594, %v1680
  %v1682 = vlaneseq
  %v1683 = vshrl.u32 %v1682, 7
  %v1684 = vsub.s32 5, %v1683
  %v1685 = vrot.slane %v1594, %v1684
  %v1686 = vlaneseq
  %v1687 = vshrl.u32 %v1686, 7
  %v1688 = vsub.s32 6, %v1687
  %v1689 = vrot.slane %v1594, %v1688
  %v1690 = vlaneseq
  %v1691 = vshrl.u32 %v1690, 7
  %v1692 = vsub.s32 7, %v1691
  %v1693 = vrot.slane %v1594, %v1692
  %vm1718 = vcmask 187392
  %v1720 = vsel %vm1718, %v1519, 0
  %vm1722 = vcmask 1046528
  %v1724 = vsel %vm1722, %v1568, 0
  %v1727 = vsel %vm1722, %v1569, 0
  %v1730 = vsel %vm1722, %v1570, 0
  %v1733 = vsel %vm1722, %v1571, 0
  %v1736 = vsel %vm1722, %v1572, 0
  %v1739 = vsel %vm1722, %v1573, 0
  %v1742 = vsel %vm1722, %v1574, 0
  %v1745 = vsel %vm1722, %v1575, 0
  %v1748 = vsel %vm1722, %v1576, 0
  %v1751 = vsel %vm1722, %v1577, 0
  %v1754 = vsel %vm1722, %v1578, 0
  %v1757 = vsel %vm1722, %v1579, 0
  %v1760 = vsel %vm1722, %v1580, 0
  %v1763 = vsel %vm1722, %v1581, 0
  %v1766 = vsel %vm1722, %v1582, 0
  %v1769 = vsel %vm1722, %v1583, 0
  %v1772 = vsel %vm1722, %v1584, 0
  %v1775 = vsel %vm1722, %v1585, 0
  %v1778 = vsel %vm1722, %v1586, 0
  %v1781 = vsel %vm1722, %v1587, 0
  %v1784 = vsel %vm1722, %v1588, 0
  %v1787 = vsel %vm1722, %v1589, 0
  %v1790 = vsel %vm1722, %v1590, 0
  %v1793 = vsel %vm1722, %v1591, 0
  %1795 = vmatprep.subr.mxu0 %v1521
  %1796 = vmatpush1.msra.mxu0 %v1520
  %1797 = vmatprep.subr.mxu0 %v1545
  %1798 = vmatpush1.msra.mxu0 %v1544
  %1799 = vmatprep.subr.mxu0 %v1727
  %1800 = vmatpush1.msra.mxu0 %v1724
  %1801 = vmatprep.subr.mxu0 0.0
  %1802 = vmatpush1.msra.mxu0 0.0
  %1803 = vmatprep.subr.mxu0 0.0
  %1804 = vmatpush1.msra.mxu0 0.0
  %1805 = vmatprep.subr.mxu0 0.0
  %1806 = vmatpush1.msra.mxu0 0.0
  %1807 = vmatprep.subr.mxu0 0.0
  %1808 = vmatpush1.msra.mxu0 0.0
  %1809 = vmatprep.subr.mxu0 0.0
  %1810 = vmatpush1.msra.mxu0 0.0
  %1811 = vmatprep.subr.mxu0 0.0
  %1812 = vmatpush1.msra.mxu0 0.0
  %1813 = vmatprep.subr.mxu0 0.0
  %1814 = vmatpush1.msra.mxu0 0.0
  %1815 = vmatprep.subr.mxu0 0.0
  %1816 = vmatpush1.msra.mxu0 0.0
  %1817 = vmatprep.subr.mxu0 0.0
  %1818 = vmatpush1.msra.mxu0 0.0
  %1819 = vmatprep.subr.mxu0 0.0
  %1820 = vmatpush1.msra.mxu0 0.0
  %1821 = vmatprep.subr.mxu0 0.0
  %1822 = vmatpush1.msra.mxu0 0.0
  %1823 = vmatprep.subr.mxu0 0.0
  %1824 = vmatpush1.msra.mxu0 0.0
  %1825 = vmatprep.subr.mxu0 0.0
  %1826 = vmatpush1.msra.mxu0 0.0
  %1827 = vmatprep.subr.mxu0 0.0
  %1828 = vmatpush1.msra.mxu0 0.0
  %1829 = vmatprep.subr.mxu0 0.0
  %1830 = vmatpush1.msra.mxu0 0.0
  %1831 = vmatprep.subr.mxu0 0.0
  %1832 = vmatpush1.msra.mxu0 0.0
  %1833 = vmatprep.subr.mxu0 0.0
  %1834 = vmatpush1.msra.mxu0 0.0
  %1835 = vmatprep.subr.mxu0 0.0
  %1836 = vmatpush1.msra.mxu0 0.0
  %1837 = vmatprep.subr.mxu0 0.0
  %1838 = vmatpush1.msra.mxu0 0.0
  %1839 = vmatprep.subr.mxu0 0.0
  %1840 = vmatpush1.msra.mxu0 0.0
  %1841 = vmatprep.subr.mxu0 0.0
  %1842 = vmatpush1.msra.mxu0 0.0
  %1843 = vmatprep.subr.mxu0 0.0
  %1844 = vmatpush1.msra.mxu0 0.0
  %1845 = vmatprep.subr.mxu0 0.0
  %1846 = vmatpush1.msra.mxu0 0.0
  %1847 = vmatprep.subr.mxu0 0.0
  %1848 = vmatpush1.msra.mxu0 0.0
  %1849 = vmatprep.subr.mxu0 0.0
  %1850 = vmatpush1.msra.mxu0 0.0
  %1851 = vmatprep.subr.mxu0 0.0
  %1852 = vmatpush1.msra.mxu0 0.0
  %1853 = vmatprep.subr.mxu0 0.0
  %1854 = vmatpush1.msra.mxu0 0.0
  %1855 = vmatprep.subr.mxu0 0.0
  %1856 = vmatpush1.msra.mxu0 0.0
  %1857 = vmatprep.subr.mxu0 0.0
  %1858 = vmatpush1.msra.mxu0 0.0
  %1859 = vmatprep.mubr.f32.mxu0 0.0
  %1860 = vmatmul.mubr.f32.gmra.mrb[0].mxu0 %v1720
  %v1861 = vpop.f32.mrb[0].mxu0
  %v1862 = vadd.f32 %v1601, %v1861
  %v1863 = vpop.f32.mrb[0].mxu0
  %v1864 = vadd.f32 %v1605, %v1863
  %1865 = vdwg.mxu0
  %1866 = vmatprep.subr.mxu0 %v1523
  %1867 = vmatpush1.msra.mxu0 %v1522
  %1868 = vmatprep.subr.mxu0 %v1547
  %1869 = vmatpush1.msra.mxu0 %v1546
  %1870 = vmatprep.subr.mxu0 %v1733
  %1871 = vmatpush1.msra.mxu0 %v1730
  %1872 = vmatprep.subr.mxu0 0.0
  %1873 = vmatpush1.msra.mxu0 0.0
  %1874 = vmatprep.subr.mxu0 0.0
  %1875 = vmatpush1.msra.mxu0 0.0
  %1876 = vmatprep.subr.mxu0 0.0
  %1877 = vmatpush1.msra.mxu0 0.0
  %1878 = vmatprep.subr.mxu0 0.0
  %1879 = vmatpush1.msra.mxu0 0.0
  %1880 = vmatprep.subr.mxu0 0.0
  %1881 = vmatpush1.msra.mxu0 0.0
  %1882 = vmatprep.subr.mxu0 0.0
  %1883 = vmatpush1.msra.mxu0 0.0
  %1884 = vmatprep.subr.mxu0 0.0
  %1885 = vmatpush1.msra.mxu0 0.0
  %1886 = vmatprep.subr.mxu0 0.0
  %1887 = vmatpush1.msra.mxu0 0.0
  %1888 = vmatprep.subr.mxu0 0.0
  %1889 = vmatpush1.msra.mxu0 0.0
  %1890 = vmatprep.subr.mxu0 0.0
  %1891 = vmatpush1.msra.mxu0 0.0
  %1892 = vmatprep.subr.mxu0 0.0
  %1893 = vmatpush1.msra.mxu0 0.0
  %1894 = vmatprep.subr.mxu0 0.0
  %1895 = vmatpush1.msra.mxu0 0.0
  %1896 = vmatprep.subr.mxu0 0.0
  %1897 = vmatpush1.msra.mxu0 0.0
  %1898 = vmatprep.subr.mxu0 0.0
  %1899 = vmatpush1.msra.mxu0 0.0
  %1900 = vmatprep.subr.mxu0 0.0
  %1901 = vmatpush1.msra.mxu0 0.0
  %1902 = vmatprep.subr.mxu0 0.0
  %1903 = vmatpush1.msra.mxu0 0.0
  %1904 = vmatprep.subr.mxu0 0.0
  %1905 = vmatpush1.msra.mxu0 0.0
  %1906 = vmatprep.subr.mxu0 0.0
  %1907 = vmatpush1.msra.mxu0 0.0
  %1908 = vmatprep.subr.mxu0 0.0
  %1909 = vmatpush1.msra.mxu0 0.0
  %1910 = vmatprep.subr.mxu0 0.0
  %1911 = vmatpush1.msra.mxu0 0.0
  %1912 = vmatprep.subr.mxu0 0.0
  %1913 = vmatpush1.msra.mxu0 0.0
  %1914 = vmatprep.subr.mxu0 0.0
  %1915 = vmatpush1.msra.mxu0 0.0
  %1916 = vmatprep.subr.mxu0 0.0
  %1917 = vmatpush1.msra.mxu0 0.0
  %1918 = vmatprep.subr.mxu0 0.0
  %1919 = vmatpush1.msra.mxu0 0.0
  %1920 = vmatprep.subr.mxu0 0.0
  %1921 = vmatpush1.msra.mxu0 0.0
  %1922 = vmatprep.subr.mxu0 0.0
  %1923 = vmatpush1.msra.mxu0 0.0
  %1924 = vmatprep.subr.mxu0 0.0
  %1925 = vmatpush1.msra.mxu0 0.0
  %1926 = vmatprep.subr.mxu0 0.0
  %1927 = vmatpush1.msra.mxu0 0.0
  %1928 = vmatprep.subr.mxu0 0.0
  %1929 = vmatpush1.msra.mxu0 0.0
  %1930 = vmatprep.mubr.f32.mxu0 0.0
  %1931 = vmatmul.mubr.f32.gmra.mrb[0].mxu0 %v1720
  %v1932 = vpop.f32.mrb[0].mxu0
  %v1933 = vadd.f32 %v1609, %v1932
  %v1934 = vpop.f32.mrb[0].mxu0
  %v1935 = vadd.f32 %v1613, %v1934
  %1936 = vdwg.mxu0
  %1937 = vmatprep.subr.mxu0 %v1525
  %1938 = vmatpush1.msra.mxu0 %v1524
  %1939 = vmatprep.subr.mxu0 %v1549
  %1940 = vmatpush1.msra.mxu0 %v1548
  %1941 = vmatprep.subr.mxu0 %v1739
  %1942 = vmatpush1.msra.mxu0 %v1736
  %1943 = vmatprep.subr.mxu0 0.0
  %1944 = vmatpush1.msra.mxu0 0.0
  %1945 = vmatprep.subr.mxu0 0.0
  %1946 = vmatpush1.msra.mxu0 0.0
  %1947 = vmatprep.subr.mxu0 0.0
  %1948 = vmatpush1.msra.mxu0 0.0
  %1949 = vmatprep.subr.mxu0 0.0
  %1950 = vmatpush1.msra.mxu0 0.0
  %1951 = vmatprep.subr.mxu0 0.0
  %1952 = vmatpush1.msra.mxu0 0.0
  %1953 = vmatprep.subr.mxu0 0.0
  %1954 = vmatpush1.msra.mxu0 0.0
  %1955 = vmatprep.subr.mxu0 0.0
  %1956 = vmatpush1.msra.mxu0 0.0
  %1957 = vmatprep.subr.mxu0 0.0
  %1958 = vmatpush1.msra.mxu0 0.0
  %1959 = vmatprep.subr.mxu0 0.0
  %1960 = vmatpush1.msra.mxu0 0.0
  %1961 = vmatprep.subr.mxu0 0.0
  %1962 = vmatpush1.msra.mxu0 0.0
  %1963 = vmatprep.subr.mxu0 0.0
  %1964 = vmatpush1.msra.mxu0 0.0
  %1965 = vmatprep.subr.mxu0 0.0
  %1966 = vmatpush1.msra.mxu0 0.0
  %1967 = vmatprep.subr.mxu0 0.0
  %1968 = vmatpush1.msra.mxu0 0.0
  %1969 = vmatprep.subr.mxu0 0.0
  %1970 = vmatpush1.msra.mxu0 0.0
  %1971 = vmatprep.subr.mxu0 0.0
  %1972 = vmatpush1.msra.mxu0 0.0
  %1973 = vmatprep.subr.mxu0 0.0
  %1974 = vmatpush1.msra.mxu0 0.0
  %1975 = vmatprep.subr.mxu0 0.0
  %1976 = vmatpush1.msra.mxu0 0.0
  %1977 = vmatprep.subr.mxu0 0.0
  %1978 = vmatpush1.msra.mxu0 0.0
  %1979 = vmatprep.subr.mxu0 0.0
  %1980 = vmatpush1.msra.mxu0 0.0
  %1981 = vmatprep.subr.mxu0 0.0
  %1982 = vmatpush1.msra.mxu0 0.0
  %1983 = vmatprep.subr.mxu0 0.0
  %1984 = vmatpush1.msra.mxu0 0.0
  %1985 = vmatprep.subr.mxu0 0.0
  %1986 = vmatpush1.msra.mxu0 0.0
  %1987 = vmatprep.subr.mxu0 0.0
  %1988 = vmatpush1.msra.mxu0 0.0
  %1989 = vmatprep.subr.mxu0 0.0
  %1990 = vmatpush1.msra.mxu0 0.0
  %1991 = vmatprep.subr.mxu0 0.0
  %1992 = vmatpush1.msra.mxu0 0.0
  %1993 = vmatprep.subr.mxu0 0.0
  %1994 = vmatpush1.msra.mxu0 0.0
  %1995 = vmatprep.subr.mxu0 0.0
  %1996 = vmatpush1.msra.mxu0 0.0
  %1997 = vmatprep.subr.mxu0 0.0
  %1998 = vmatpush1.msra.mxu0 0.0
  %1999 = vmatprep.subr.mxu0 0.0
  %2000 = vmatpush1.msra.mxu0 0.0
  %2001 = vmatprep.mubr.f32.mxu0 0.0
  %2002 = vmatmul.mubr.f32.gmra.mrb[0].mxu0 %v1720
  %v2003 = vpop.f32.mrb[0].mxu0
  %v2004 = vadd.f32 %v1617, %v2003
  %v2005 = vpop.f32.mrb[0].mxu0
  %v2006 = vadd.f32 %v1621, %v2005
  %2007 = vdwg.mxu0
  %2008 = vmatprep.subr.mxu0 %v1527
  %2009 = vmatpush1.msra.mxu0 %v1526
  %2010 = vmatprep.subr.mxu0 %v1551
  %2011 = vmatpush1.msra.mxu0 %v1550
  %2012 = vmatprep.subr.mxu0 %v1745
  %2013 = vmatpush1.msra.mxu0 %v1742
  %2014 = vmatprep.subr.mxu0 0.0
  %2015 = vmatpush1.msra.mxu0 0.0
  %2016 = vmatprep.subr.mxu0 0.0
  %2017 = vmatpush1.msra.mxu0 0.0
  %2018 = vmatprep.subr.mxu0 0.0
  %2019 = vmatpush1.msra.mxu0 0.0
  %2020 = vmatprep.subr.mxu0 0.0
  %2021 = vmatpush1.msra.mxu0 0.0
  %2022 = vmatprep.subr.mxu0 0.0
  %2023 = vmatpush1.msra.mxu0 0.0
  %2024 = vmatprep.subr.mxu0 0.0
  %2025 = vmatpush1.msra.mxu0 0.0
  %2026 = vmatprep.subr.mxu0 0.0
  %2027 = vmatpush1.msra.mxu0 0.0
  %2028 = vmatprep.subr.mxu0 0.0
  %2029 = vmatpush1.msra.mxu0 0.0
  %2030 = vmatprep.subr.mxu0 0.0
  %2031 = vmatpush1.msra.mxu0 0.0
  %2032 = vmatprep.subr.mxu0 0.0
  %2033 = vmatpush1.msra.mxu0 0.0
  %2034 = vmatprep.subr.mxu0 0.0
  %2035 = vmatpush1.msra.mxu0 0.0
  %2036 = vmatprep.subr.mxu0 0.0
  %2037 = vmatpush1.msra.mxu0 0.0
  %2038 = vmatprep.subr.mxu0 0.0
  %2039 = vmatpush1.msra.mxu0 0.0
  %2040 = vmatprep.subr.mxu0 0.0
  %2041 = vmatpush1.msra.mxu0 0.0
  %2042 = vmatprep.subr.mxu0 0.0
  %2043 = vmatpush1.msra.mxu0 0.0
  %2044 = vmatprep.subr.mxu0 0.0
  %2045 = vmatpush1.msra.mxu0 0.0
  %2046 = vmatprep.subr.mxu0 0.0
  %2047 = vmatpush1.msra.mxu0 0.0
  %2048 = vmatprep.subr.mxu0 0.0
  %2049 = vmatpush1.msra.mxu0 0.0
  %2050 = vmatprep.subr.mxu0 0.0
  %2051 = vmatpush1.msra.mxu0 0.0
  %2052 = vmatprep.subr.mxu0 0.0
  %2053 = vmatpush1.msra.mxu0 0.0
  %2054 = vmatprep.subr.mxu0 0.0
  %2055 = vmatpush1.msra.mxu0 0.0
  %2056 = vmatprep.subr.mxu0 0.0
  %2057 = vmatpush1.msra.mxu0 0.0
  %2058 = vmatprep.subr.mxu0 0.0
  %2059 = vmatpush1.msra.mxu0 0.0
  %2060 = vmatprep.subr.mxu0 0.0
  %2061 = vmatpush1.msra.mxu0 0.0
  %2062 = vmatprep.subr.mxu0 0.0
  %2063 = vmatpush1.msra.mxu0 0.0
  %2064 = vmatprep.subr.mxu0 0.0
  %2065 = vmatpush1.msra.mxu0 0.0
  %2066 = vmatprep.subr.mxu0 0.0
  %2067 = vmatpush1.msra.mxu0 0.0
  %2068 = vmatprep.subr.mxu0 0.0
  %2069 = vmatpush1.msra.mxu0 0.0
  %2070 = vmatprep.subr.mxu0 0.0
  %2071 = vmatpush1.msra.mxu0 0.0
  %2072 = vmatprep.mubr.f32.mxu0 0.0
  %2073 = vmatmul.mubr.f32.gmra.mrb[0].mxu0 %v1720
  %v2074 = vpop.f32.mrb[0].mxu0
  %v2075 = vadd.f32 %v1625, %v2074
  %v2076 = vpop.f32.mrb[0].mxu0
  %v2077 = vadd.f32 %v1629, %v2076
  %2078 = vdwg.mxu0
  %2079 = vmatprep.subr.mxu0 %v1529
  %2080 = vmatpush1.msra.mxu0 %v1528
  %2081 = vmatprep.subr.mxu0 %v1553
  %2082 = vmatpush1.msra.mxu0 %v1552
  %2083 = vmatprep.subr.mxu0 %v1751
  %2084 = vmatpush1.msra.mxu0 %v1748
  %2085 = vmatprep.subr.mxu0 0.0
  %2086 = vmatpush1.msra.mxu0 0.0
  %2087 = vmatprep.subr.mxu0 0.0
  %2088 = vmatpush1.msra.mxu0 0.0
  %2089 = vmatprep.subr.mxu0 0.0
  %2090 = vmatpush1.msra.mxu0 0.0
  %2091 = vmatprep.subr.mxu0 0.0
  %2092 = vmatpush1.msra.mxu0 0.0
  %2093 = vmatprep.subr.mxu0 0.0
  %2094 = vmatpush1.msra.mxu0 0.0
  %2095 = vmatprep.subr.mxu0 0.0
  %2096 = vmatpush1.msra.mxu0 0.0
  %2097 = vmatprep.subr.mxu0 0.0
  %2098 = vmatpush1.msra.mxu0 0.0
  %2099 = vmatprep.subr.mxu0 0.0
  %2100 = vmatpush1.msra.mxu0 0.0
  %2101 = vmatprep.subr.mxu0 0.0
  %2102 = vmatpush1.msra.mxu0 0.0
  %2103 = vmatprep.subr.mxu0 0.0
  %2104 = vmatpush1.msra.mxu0 0.0
  %2105 = vmatprep.subr.mxu0 0.0
  %2106 = vmatpush1.msra.mxu0 0.0
  %2107 = vmatprep.subr.mxu0 0.0
  %2108 = vmatpush1.msra.mxu0 0.0
  %2109 = vmatprep.subr.mxu0 0.0
  %2110 = vmatpush1.msra.mxu0 0.0
  %2111 = vmatprep.subr.mxu0 0.0
  %2112 = vmatpush1.msra.mxu0 0.0
  %2113 = vmatprep.subr.mxu0 0.0
  %2114 = vmatpush1.msra.mxu0 0.0
  %2115 = vmatprep.subr.mxu0 0.0
  %2116 = vmatpush1.msra.mxu0 0.0
  %2117 = vmatprep.subr.mxu0 0.0
  %2118 = vmatpush1.msra.mxu0 0.0
  %2119 = vmatprep.subr.mxu0 0.0
  %2120 = vmatpush1.msra.mxu0 0.0
  %2121 = vmatprep.subr.mxu0 0.0
  %2122 = vmatpush1.msra.mxu0 0.0
  %2123 = vmatprep.subr.mxu0 0.0
  %2124 = vmatpush1.msra.mxu0 0.0
  %2125 = vmatprep.subr.mxu0 0.0
  %2126 = vmatpush1.msra.mxu0 0.0
  %2127 = vmatprep.subr.mxu0 0.0
  %2128 = vmatpush1.msra.mxu0 0.0
  %2129 = vmatprep.subr.mxu0 0.0
  %2130 = vmatpush1.msra.mxu0 0.0
  %2131 = vmatprep.subr.mxu0 0.0
  %2132 = vmatpush1.msra.mxu0 0.0
  %2133 = vmatprep.subr.mxu0 0.0
  %2134 = vmatpush1.msra.mxu0 0.0
  %2135 = vmatprep.subr.mxu0 0.0
  %2136 = vmatpush1.msra.mxu0 0.0
  %2137 = vmatprep.subr.mxu0 0.0
  %2138 = vmatpush1.msra.mxu0 0.0
  %2139 = vmatprep.subr.mxu0 0.0
  %2140 = vmatpush1.msra.mxu0 0.0
  %2141 = vmatprep.subr.mxu0 0.0
  %2142 = vmatpush1.msra.mxu0 0.0
  %2143 = vmatprep.mubr.f32.mxu0 0.0
  %2144 = vmatmul.mubr.f32.gmra.mrb[0].mxu0 %v1720
  %v2145 = vpop.f32.mrb[0].mxu0
  %v2146 = vadd.f32 %v1633, %v2145
  %v2147 = vpop.f32.mrb[0].mxu0
  %v2148 = vadd.f32 %v1637, %v2147
  %2149 = vdwg.mxu0
  %2150 = vmatprep.subr.mxu0 %v1531
  %2151 = vmatpush1.msra.mxu0 %v1530
  %2152 = vmatprep.subr.mxu0 %v1555
  %2153 = vmatpush1.msra.mxu0 %v1554
  %2154 = vmatprep.subr.mxu0 %v1757
  %2155 = vmatpush1.msra.mxu0 %v1754
  %2156 = vmatprep.subr.mxu0 0.0
  %2157 = vmatpush1.msra.mxu0 0.0
  %2158 = vmatprep.subr.mxu0 0.0
  %2159 = vmatpush1.msra.mxu0 0.0
  %2160 = vmatprep.subr.mxu0 0.0
  %2161 = vmatpush1.msra.mxu0 0.0
  %2162 = vmatprep.subr.mxu0 0.0
  %2163 = vmatpush1.msra.mxu0 0.0
  %2164 = vmatprep.subr.mxu0 0.0
  %2165 = vmatpush1.msra.mxu0 0.0
  %2166 = vmatprep.subr.mxu0 0.0
  %2167 = vmatpush1.msra.mxu0 0.0
  %2168 = vmatprep.subr.mxu0 0.0
  %2169 = vmatpush1.msra.mxu0 0.0
  %2170 = vmatprep.subr.mxu0 0.0
  %2171 = vmatpush1.msra.mxu0 0.0
  %2172 = vmatprep.subr.mxu0 0.0
  %2173 = vmatpush1.msra.mxu0 0.0
  %2174 = vmatprep.subr.mxu0 0.0
  %2175 = vmatpush1.msra.mxu0 0.0
  %2176 = vmatprep.subr.mxu0 0.0
  %2177 = vmatpush1.msra.mxu0 0.0
  %2178 = vmatprep.subr.mxu0 0.0
  %2179 = vmatpush1.msra.mxu0 0.0
  %2180 = vmatprep.subr.mxu0 0.0
  %2181 = vmatpush1.msra.mxu0 0.0
  %2182 = vmatprep.subr.mxu0 0.0
  %2183 = vmatpush1.msra.mxu0 0.0
  %2184 = vmatprep.subr.mxu0 0.0
  %2185 = vmatpush1.msra.mxu0 0.0
  %2186 = vmatprep.subr.mxu0 0.0
  %2187 = vmatpush1.msra.mxu0 0.0
  %2188 = vmatprep.subr.mxu0 0.0
  %2189 = vmatpush1.msra.mxu0 0.0
  %2190 = vmatprep.subr.mxu0 0.0
  %2191 = vmatpush1.msra.mxu0 0.0
  %2192 = vmatprep.subr.mxu0 0.0
  %2193 = vmatpush1.msra.mxu0 0.0
  %2194 = vmatprep.subr.mxu0 0.0
  %2195 = vmatpush1.msra.mxu0 0.0
  %2196 = vmatprep.subr.mxu0 0.0
  %2197 = vmatpush1.msra.mxu0 0.0
  %2198 = vmatprep.subr.mxu0 0.0
  %2199 = vmatpush1.msra.mxu0 0.0
  %2200 = vmatprep.subr.mxu0 0.0
  %2201 = vmatpush1.msra.mxu0 0.0
  %2202 = vmatprep.subr.mxu0 0.0
  %2203 = vmatpush1.msra.mxu0 0.0
  %2204 = vmatprep.subr.mxu0 0.0
  %2205 = vmatpush1.msra.mxu0 0.0
  %2206 = vmatprep.subr.mxu0 0.0
  %2207 = vmatpush1.msra.mxu0 0.0
  %2208 = vmatprep.subr.mxu0 0.0
  %2209 = vmatpush1.msra.mxu0 0.0
  %2210 = vmatprep.subr.mxu0 0.0
  %2211 = vmatpush1.msra.mxu0 0.0
  %2212 = vmatprep.subr.mxu0 0.0
  %2213 = vmatpush1.msra.mxu0 0.0
  %2214 = vmatprep.mubr.f32.mxu0 0.0
  %2215 = vmatmul.mubr.f32.gmra.mrb[0].mxu0 %v1720
  %v2216 = vpop.f32.mrb[0].mxu0
  %v2217 = vadd.f32 %v1641, %v2216
  %v2218 = vpop.f32.mrb[0].mxu0
  %v2219 = vadd.f32 %v1645, %v2218
  %2220 = vdwg.mxu0
  %2221 = vmatprep.subr.mxu0 %v1533
  %2222 = vmatpush1.msra.mxu0 %v1532
  %2223 = vmatprep.subr.mxu0 %v1557
  %2224 = vmatpush1.msra.mxu0 %v1556
  %2225 = vmatprep.subr.mxu0 %v1763
  %2226 = vmatpush1.msra.mxu0 %v1760
  %2227 = vmatprep.subr.mxu0 0.0
  %2228 = vmatpush1.msra.mxu0 0.0
  %2229 = vmatprep.subr.mxu0 0.0
  %2230 = vmatpush1.msra.mxu0 0.0
  %2231 = vmatprep.subr.mxu0 0.0
  %2232 = vmatpush1.msra.mxu0 0.0
  %2233 = vmatprep.subr.mxu0 0.0
  %2234 = vmatpush1.msra.mxu0 0.0
  %2235 = vmatprep.subr.mxu0 0.0
  %2236 = vmatpush1.msra.mxu0 0.0
  %2237 = vmatprep.subr.mxu0 0.0
  %2238 = vmatpush1.msra.mxu0 0.0
  %2239 = vmatprep.subr.mxu0 0.0
  %2240 = vmatpush1.msra.mxu0 0.0
  %2241 = vmatprep.subr.mxu0 0.0
  %2242 = vmatpush1.msra.mxu0 0.0
  %2243 = vmatprep.subr.mxu0 0.0
  %2244 = vmatpush1.msra.mxu0 0.0
  %2245 = vmatprep.subr.mxu0 0.0
  %2246 = vmatpush1.msra.mxu0 0.0
  %2247 = vmatprep.subr.mxu0 0.0
  %2248 = vmatpush1.msra.mxu0 0.0
  %2249 = vmatprep.subr.mxu0 0.0
  %2250 = vmatpush1.msra.mxu0 0.0
  %2251 = vmatprep.subr.mxu0 0.0
  %2252 = vmatpush1.msra.mxu0 0.0
  %2253 = vmatprep.subr.mxu0 0.0
  %2254 = vmatpush1.msra.mxu0 0.0
  %2255 = vmatprep.subr.mxu0 0.0
  %2256 = vmatpush1.msra.mxu0 0.0
  %2257 = vmatprep.subr.mxu0 0.0
  %2258 = vmatpush1.msra.mxu0 0.0
  %2259 = vmatprep.subr.mxu0 0.0
  %2260 = vmatpush1.msra.mxu0 0.0
  %2261 = vmatprep.subr.mxu0 0.0
  %2262 = vmatpush1.msra.mxu0 0.0
  %2263 = vmatprep.subr.mxu0 0.0
  %2264 = vmatpush1.msra.mxu0 0.0
  %2265 = vmatprep.subr.mxu0 0.0
  %2266 = vmatpush1.msra.mxu0 0.0
  %2267 = vmatprep.subr.mxu0 0.0
  %2268 = vmatpush1.msra.mxu0 0.0
  %2269 = vmatprep.subr.mxu0 0.0
  %2270 = vmatpush1.msra.mxu0 0.0
  %2271 = vmatprep.subr.mxu0 0.0
  %2272 = vmatpush1.msra.mxu0 0.0
  %2273 = vmatprep.subr.mxu0 0.0
  %2274 = vmatpush1.msra.mxu0 0.0
  %2275 = vmatprep.subr.mxu0 0.0
  %2276 = vmatpush1.msra.mxu0 0.0
  %2277 = vmatprep.subr.mxu0 0.0
  %2278 = vmatpush1.msra.mxu0 0.0
  %2279 = vmatprep.subr.mxu0 0.0
  %2280 = vmatpush1.msra.mxu0 0.0
  %2281 = vmatprep.subr.mxu0 0.0
  %2282 = vmatpush1.msra.mxu0 0.0
  %2283 = vmatprep.subr.mxu0 0.0
  %2284 = vmatpush1.msra.mxu0 0.0
  %2285 = vmatprep.mubr.f32.mxu0 0.0
  %2286 = vmatmul.mubr.f32.gmra.mrb[0].mxu0 %v1720
  %v2287 = vpop.f32.mrb[0].mxu0
  %v2288 = vadd.f32 %v1649, %v2287
  %v2289 = vpop.f32.mrb[0].mxu0
  %v2290 = vadd.f32 %v1653, %v2289
  %2291 = vdwg.mxu0
  %2292 = vmatprep.subr.mxu0 %v1535
  %2293 = vmatpush1.msra.mxu0 %v1534
  %2294 = vmatprep.subr.mxu0 %v1559
  %2295 = vmatpush1.msra.mxu0 %v1558
  %2296 = vmatprep.subr.mxu0 %v1769
  %2297 = vmatpush1.msra.mxu0 %v1766
  %2298 = vmatprep.subr.mxu0 0.0
  %2299 = vmatpush1.msra.mxu0 0.0
  %2300 = vmatprep.subr.mxu0 0.0
  %2301 = vmatpush1.msra.mxu0 0.0
  %2302 = vmatprep.subr.mxu0 0.0
  %2303 = vmatpush1.msra.mxu0 0.0
  %2304 = vmatprep.subr.mxu0 0.0
  %2305 = vmatpush1.msra.mxu0 0.0
  %2306 = vmatprep.subr.mxu0 0.0
  %2307 = vmatpush1.msra.mxu0 0.0
  %2308 = vmatprep.subr.mxu0 0.0
  %2309 = vmatpush1.msra.mxu0 0.0
  %2310 = vmatprep.subr.mxu0 0.0
  %2311 = vmatpush1.msra.mxu0 0.0
  %2312 = vmatprep.subr.mxu0 0.0
  %2313 = vmatpush1.msra.mxu0 0.0
  %2314 = vmatprep.subr.mxu0 0.0
  %2315 = vmatpush1.msra.mxu0 0.0
  %2316 = vmatprep.subr.mxu0 0.0
  %2317 = vmatpush1.msra.mxu0 0.0
  %2318 = vmatprep.subr.mxu0 0.0
  %2319 = vmatpush1.msra.mxu0 0.0
  %2320 = vmatprep.subr.mxu0 0.0
  %2321 = vmatpush1.msra.mxu0 0.0
  %2322 = vmatprep.subr.mxu0 0.0
  %2323 = vmatpush1.msra.mxu0 0.0
  %2324 = vmatprep.subr.mxu0 0.0
  %2325 = vmatpush1.msra.mxu0 0.0
  %2326 = vmatprep.subr.mxu0 0.0
  %2327 = vmatpush1.msra.mxu0 0.0
  %2328 = vmatprep.subr.mxu0 0.0
  %2329 = vmatpush1.msra.mxu0 0.0
  %2330 = vmatprep.subr.mxu0 0.0
  %2331 = vmatpush1.msra.mxu0 0.0
  %2332 = vmatprep.subr.mxu0 0.0
  %2333 = vmatpush1.msra.mxu0 0.0
  %2334 = vmatprep.subr.mxu0 0.0
  %2335 = vmatpush1.msra.mxu0 0.0
  %2336 = vmatprep.subr.mxu0 0.0
  %2337 = vmatpush1.msra.mxu0 0.0
  %2338 = vmatprep.subr.mxu0 0.0
  %2339 = vmatpush1.msra.mxu0 0.0
  %2340 = vmatprep.subr.mxu0 0.0
  %2341 = vmatpush1.msra.mxu0 0.0
  %2342 = vmatprep.subr.mxu0 0.0
  %2343 = vmatpush1.msra.mxu0 0.0
  %2344 = vmatprep.subr.mxu0 0.0
  %2345 = vmatpush1.msra.mxu0 0.0
  %2346 = vmatprep.subr.mxu0 0.0
  %2347 = vmatpush1.msra.mxu0 0.0
  %2348 = vmatprep.subr.mxu0 0.0
  %2349 = vmatpush1.msra.mxu0 0.0
  %2350 = vmatprep.subr.mxu0 0.0
  %2351 = vmatpush1.msra.mxu0 0.0
  %2352 = vmatprep.subr.mxu0 0.0
  %2353 = vmatpush1.msra.mxu0 0.0
  %2354 = vmatprep.subr.mxu0 0.0
  %2355 = vmatpush1.msra.mxu0 0.0
  %2356 = vmatprep.mubr.f32.mxu0 0.0
  %2357 = vmatmul.mubr.f32.gmra.mrb[0].mxu0 %v1720
  %v2358 = vpop.f32.mrb[0].mxu0
  %v2359 = vadd.f32 %v1657, %v2358
  %v2360 = vpop.f32.mrb[0].mxu0
  %v2361 = vadd.f32 %v1661, %v2360
  %2362 = vdwg.mxu0
  %2363 = vmatprep.subr.mxu0 %v1537
  %2364 = vmatpush1.msra.mxu0 %v1536
  %2365 = vmatprep.subr.mxu0 %v1561
  %2366 = vmatpush1.msra.mxu0 %v1560
  %2367 = vmatprep.subr.mxu0 %v1775
  %2368 = vmatpush1.msra.mxu0 %v1772
  %2369 = vmatprep.subr.mxu0 0.0
  %2370 = vmatpush1.msra.mxu0 0.0
  %2371 = vmatprep.subr.mxu0 0.0
  %2372 = vmatpush1.msra.mxu0 0.0
  %2373 = vmatprep.subr.mxu0 0.0
  %2374 = vmatpush1.msra.mxu0 0.0
  %2375 = vmatprep.subr.mxu0 0.0
  %2376 = vmatpush1.msra.mxu0 0.0
  %2377 = vmatprep.subr.mxu0 0.0
  %2378 = vmatpush1.msra.mxu0 0.0
  %2379 = vmatprep.subr.mxu0 0.0
  %2380 = vmatpush1.msra.mxu0 0.0
  %2381 = vmatprep.subr.mxu0 0.0
  %2382 = vmatpush1.msra.mxu0 0.0
  %2383 = vmatprep.subr.mxu0 0.0
  %2384 = vmatpush1.msra.mxu0 0.0
  %2385 = vmatprep.subr.mxu0 0.0
  %2386 = vmatpush1.msra.mxu0 0.0
  %2387 = vmatprep.subr.mxu0 0.0
  %2388 = vmatpush1.msra.mxu0 0.0
  %2389 = vmatprep.subr.mxu0 0.0
  %2390 = vmatpush1.msra.mxu0 0.0
  %2391 = vmatprep.subr.mxu0 0.0
  %2392 = vmatpush1.msra.mxu0 0.0
  %2393 = vmatprep.subr.mxu0 0.0
  %2394 = vmatpush1.msra.mxu0 0.0
  %2395 = vmatprep.subr.mxu0 0.0
  %2396 = vmatpush1.msra.mxu0 0.0
  %2397 = vmatprep.subr.mxu0 0.0
  %2398 = vmatpush1.msra.mxu0 0.0
  %2399 = vmatprep.subr.mxu0 0.0
  %2400 = vmatpush1.msra.mxu0 0.0
  %2401 = vmatprep.subr.mxu0 0.0
  %2402 = vmatpush1.msra.mxu0 0.0
  %2403 = vmatprep.subr.mxu0 0.0
  %2404 = vmatpush1.msra.mxu0 0.0
  %2405 = vmatprep.subr.mxu0 0.0
  %2406 = vmatpush1.msra.mxu0 0.0
  %2407 = vmatprep.subr.mxu0 0.0
  %2408 = vmatpush1.msra.mxu0 0.0
  %2409 = vmatprep.subr.mxu0 0.0
  %2410 = vmatpush1.msra.mxu0 0.0
  %2411 = vmatprep.subr.mxu0 0.0
  %2412 = vmatpush1.msra.mxu0 0.0
  %2413 = vmatprep.subr.mxu0 0.0
  %2414 = vmatpush1.msra.mxu0 0.0
  %2415 = vmatprep.subr.mxu0 0.0
  %2416 = vmatpush1.msra.mxu0 0.0
  %2417 = vmatprep.subr.mxu0 0.0
  %2418 = vmatpush1.msra.mxu0 0.0
  %2419 = vmatprep.subr.mxu0 0.0
  %2420 = vmatpush1.msra.mxu0 0.0
  %2421 = vmatprep.subr.mxu0 0.0
  %2422 = vmatpush1.msra.mxu0 0.0
  %2423 = vmatprep.subr.mxu0 0.0
  %2424 = vmatpush1.msra.mxu0 0.0
  %2425 = vmatprep.subr.mxu0 0.0
  %2426 = vmatpush1.msra.mxu0 0.0
  %2427 = vmatprep.mubr.f32.mxu0 0.0
  %2428 = vmatmul.mubr.f32.gmra.mrb[0].mxu0 %v1720
  %v2429 = vpop.f32.mrb[0].mxu0
  %v2430 = vadd.f32 %v1665, %v2429
  %v2431 = vpop.f32.mrb[0].mxu0
  %v2432 = vadd.f32 %v1669, %v2431
  %2433 = vdwg.mxu0
  %2434 = vmatprep.subr.mxu0 %v1539
  %2435 = vmatpush1.msra.mxu0 %v1538
  %2436 = vmatprep.subr.mxu0 %v1563
  %2437 = vmatpush1.msra.mxu0 %v1562
  %2438 = vmatprep.subr.mxu0 %v1781
  %2439 = vmatpush1.msra.mxu0 %v1778
  %2440 = vmatprep.subr.mxu0 0.0
  %2441 = vmatpush1.msra.mxu0 0.0
  %2442 = vmatprep.subr.mxu0 0.0
  %2443 = vmatpush1.msra.mxu0 0.0
  %2444 = vmatprep.subr.mxu0 0.0
  %2445 = vmatpush1.msra.mxu0 0.0
  %2446 = vmatprep.subr.mxu0 0.0
  %2447 = vmatpush1.msra.mxu0 0.0
  %2448 = vmatprep.subr.mxu0 0.0
  %2449 = vmatpush1.msra.mxu0 0.0
  %2450 = vmatprep.subr.mxu0 0.0
  %2451 = vmatpush1.msra.mxu0 0.0
  %2452 = vmatprep.subr.mxu0 0.0
  %2453 = vmatpush1.msra.mxu0 0.0
  %2454 = vmatprep.subr.mxu0 0.0
  %2455 = vmatpush1.msra.mxu0 0.0
  %2456 = vmatprep.subr.mxu0 0.0
  %2457 = vmatpush1.msra.mxu0 0.0
  %2458 = vmatprep.subr.mxu0 0.0
  %2459 = vmatpush1.msra.mxu0 0.0
  %2460 = vmatprep.subr.mxu0 0.0
  %2461 = vmatpush1.msra.mxu0 0.0
  %2462 = vmatprep.subr.mxu0 0.0
  %2463 = vmatpush1.msra.mxu0 0.0
  %2464 = vmatprep.subr.mxu0 0.0
  %2465 = vmatpush1.msra.mxu0 0.0
  %2466 = vmatprep.subr.mxu0 0.0
  %2467 = vmatpush1.msra.mxu0 0.0
  %2468 = vmatprep.subr.mxu0 0.0
  %2469 = vmatpush1.msra.mxu0 0.0
  %2470 = vmatprep.subr.mxu0 0.0
  %2471 = vmatpush1.msra.mxu0 0.0
  %2472 = vmatprep.subr.mxu0 0.0
  %2473 = vmatpush1.msra.mxu0 0.0
  %2474 = vmatprep.subr.mxu0 0.0
  %2475 = vmatpush1.msra.mxu0 0.0
  %2476 = vmatprep.subr.mxu0 0.0
  %2477 = vmatpush1.msra.mxu0 0.0
  %2478 = vmatprep.subr.mxu0 0.0
  %2479 = vmatpush1.msra.mxu0 0.0
  %2480 = vmatprep.subr.mxu0 0.0
  %2481 = vmatpush1.msra.mxu0 0.0
  %2482 = vmatprep.subr.mxu0 0.0
  %2483 = vmatpush1.msra.mxu0 0.0
  %2484 = vmatprep.subr.mxu0 0.0
  %2485 = vmatpush1.msra.mxu0 0.0
  %2486 = vmatprep.subr.mxu0 0.0
  %2487 = vmatpush1.msra.mxu0 0.0
  %2488 = vmatprep.subr.mxu0 0.0
  %2489 = vmatpush1.msra.mxu0 0.0
  %2490 = vmatprep.subr.mxu0 0.0
  %2491 = vmatpush1.msra.mxu0 0.0
  %2492 = vmatprep.subr.mxu0 0.0
  %2493 = vmatpush1.msra.mxu0 0.0
  %2494 = vmatprep.subr.mxu0 0.0
  %2495 = vmatpush1.msra.mxu0 0.0
  %2496 = vmatprep.subr.mxu0 0.0
  %2497 = vmatpush1.msra.mxu0 0.0
  %2498 = vmatprep.mubr.f32.mxu0 0.0
  %2499 = vmatmul.mubr.f32.gmra.mrb[0].mxu0 %v1720
  %v2500 = vpop.f32.mrb[0].mxu0
  %v2501 = vadd.f32 %v1673, %v2500
  %v2502 = vpop.f32.mrb[0].mxu0
  %v2503 = vadd.f32 %v1677, %v2502
  %2504 = vdwg.mxu0
  %2505 = vmatprep.subr.mxu0 %v1541
  %2506 = vmatpush1.msra.mxu0 %v1540
  %2507 = vmatprep.subr.mxu0 %v1565
  %2508 = vmatpush1.msra.mxu0 %v1564
  %2509 = vmatprep.subr.mxu0 %v1787
  %2510 = vmatpush1.msra.mxu0 %v1784
  %2511 = vmatprep.subr.mxu0 0.0
  %2512 = vmatpush1.msra.mxu0 0.0
  %2513 = vmatprep.subr.mxu0 0.0
  %2514 = vmatpush1.msra.mxu0 0.0
  %2515 = vmatprep.subr.mxu0 0.0
  %2516 = vmatpush1.msra.mxu0 0.0
  %2517 = vmatprep.subr.mxu0 0.0
  %2518 = vmatpush1.msra.mxu0 0.0
  %2519 = vmatprep.subr.mxu0 0.0
  %2520 = vmatpush1.msra.mxu0 0.0
  %2521 = vmatprep.subr.mxu0 0.0
  %2522 = vmatpush1.msra.mxu0 0.0
  %2523 = vmatprep.subr.mxu0 0.0
  %2524 = vmatpush1.msra.mxu0 0.0
  %2525 = vmatprep.subr.mxu0 0.0
  %2526 = vmatpush1.msra.mxu0 0.0
  %2527 = vmatprep.subr.mxu0 0.0
  %2528 = vmatpush1.msra.mxu0 0.0
  %2529 = vmatprep.subr.mxu0 0.0
  %2530 = vmatpush1.msra.mxu0 0.0
  %2531 = vmatprep.subr.mxu0 0.0
  %2532 = vmatpush1.msra.mxu0 0.0
  %2533 = vmatprep.subr.mxu0 0.0
  %2534 = vmatpush1.msra.mxu0 0.0
  %2535 = vmatprep.subr.mxu0 0.0
  %2536 = vmatpush1.msra.mxu0 0.0
  %2537 = vmatprep.subr.mxu0 0.0
  %2538 = vmatpush1.msra.mxu0 0.0
  %2539 = vmatprep.subr.mxu0 0.0
  %2540 = vmatpush1.msra.mxu0 0.0
  %2541 = vmatprep.subr.mxu0 0.0
  %2542 = vmatpush1.msra.mxu0 0.0
  %2543 = vmatprep.subr.mxu0 0.0
  %2544 = vmatpush1.msra.mxu0 0.0
  %2545 = vmatprep.subr.mxu0 0.0
  %2546 = vmatpush1.msra.mxu0 0.0
  %2547 = vmatprep.subr.mxu0 0.0
  %2548 = vmatpush1.msra.mxu0 0.0
  %2549 = vmatprep.subr.mxu0 0.0
  %2550 = vmatpush1.msra.mxu0 0.0
  %2551 = vmatprep.subr.mxu0 0.0
  %2552 = vmatpush1.msra.mxu0 0.0
  %2553 = vmatprep.subr.mxu0 0.0
  %2554 = vmatpush1.msra.mxu0 0.0
  %2555 = vmatprep.subr.mxu0 0.0
  %2556 = vmatpush1.msra.mxu0 0.0
  %2557 = vmatprep.subr.mxu0 0.0
  %2558 = vmatpush1.msra.mxu0 0.0
  %2559 = vmatprep.subr.mxu0 0.0
  %2560 = vmatpush1.msra.mxu0 0.0
  %2561 = vmatprep.subr.mxu0 0.0
  %2562 = vmatpush1.msra.mxu0 0.0
  %2563 = vmatprep.subr.mxu0 0.0
  %2564 = vmatpush1.msra.mxu0 0.0
  %2565 = vmatprep.subr.mxu0 0.0
  %2566 = vmatpush1.msra.mxu0 0.0
  %2567 = vmatprep.subr.mxu0 0.0
  %2568 = vmatpush1.msra.mxu0 0.0
  %2569 = vmatprep.mubr.f32.mxu0 0.0
  %2570 = vmatmul.mubr.f32.gmra.mrb[0].mxu0 %v1720
  %v2571 = vpop.f32.mrb[0].mxu0
  %v2572 = vadd.f32 %v1681, %v2571
  %v2573 = vpop.f32.mrb[0].mxu0
  %v2574 = vadd.f32 %v1685, %v2573
  %2575 = vdwg.mxu0
  %2576 = vmatprep.subr.mxu0 %v1543
  %2577 = vmatpush1.msra.mxu0 %v1542
  %2578 = vmatprep.subr.mxu0 %v1567
  %2579 = vmatpush1.msra.mxu0 %v1566
  %2580 = vmatprep.subr.mxu0 %v1793
  %2581 = vmatpush1.msra.mxu0 %v1790
  %2582 = vmatprep.subr.mxu0 0.0
  %2583 = vmatpush1.msra.mxu0 0.0
  %2584 = vmatprep.subr.mxu0 0.0
  %2585 = vmatpush1.msra.mxu0 0.0
  %2586 = vmatprep.subr.mxu0 0.0
  %2587 = vmatpush1.msra.mxu0 0.0
  %2588 = vmatprep.subr.mxu0 0.0
  %2589 = vmatpush1.msra.mxu0 0.0
  %2590 = vmatprep.subr.mxu0 0.0
  %2591 = vmatpush1.msra.mxu0 0.0
  %2592 = vmatprep.subr.mxu0 0.0
  %2593 = vmatpush1.msra.mxu0 0.0
  %2594 = vmatprep.subr.mxu0 0.0
  %2595 = vmatpush1.msra.mxu0 0.0
  %2596 = vmatprep.subr.mxu0 0.0
  %2597 = vmatpush1.msra.mxu0 0.0
  %2598 = vmatprep.subr.mxu0 0.0
  %2599 = vmatpush1.msra.mxu0 0.0
  %2600 = vmatprep.subr.mxu0 0.0
  %2601 = vmatpush1.msra.mxu0 0.0
  %2602 = vmatprep.subr.mxu0 0.0
  %2603 = vmatpush1.msra.mxu0 0.0
  %2604 = vmatprep.subr.mxu0 0.0
  %2605 = vmatpush1.msra.mxu0 0.0
  %2606 = vmatprep.subr.mxu0 0.0
  %2607 = vmatpush1.msra.mxu0 0.0
  %2608 = vmatprep.subr.mxu0 0.0
  %2609 = vmatpush1.msra.mxu0 0.0
  %2610 = vmatprep.subr.mxu0 0.0
  %2611 = vmatpush1.msra.mxu0 0.0
  %2612 = vmatprep.subr.mxu0 0.0
  %2613 = vmatpush1.msra.mxu0 0.0
  %2614 = vmatprep.subr.mxu0 0.0
  %2615 = vmatpush1.msra.mxu0 0.0
  %2616 = vmatprep.subr.mxu0 0.0
  %2617 = vmatpush1.msra.mxu0 0.0
  %2618 = vmatprep.subr.mxu0 0.0
  %2619 = vmatpush1.msra.mxu0 0.0
  %2620 = vmatprep.subr.mxu0 0.0
  %2621 = vmatpush1.msra.mxu0 0.0
  %2622 = vmatprep.subr.mxu0 0.0
  %2623 = vmatpush1.msra.mxu0 0.0
  %2624 = vmatprep.subr.mxu0 0.0
  %2625 = vmatpush1.msra.mxu0 0.0
  %2626 = vmatprep.subr.mxu0 0.0
  %2627 = vmatpush1.msra.mxu0 0.0
  %2628 = vmatprep.subr.mxu0 0.0
  %2629 = vmatpush1.msra.mxu0 0.0
  %2630 = vmatprep.subr.mxu0 0.0
  %2631 = vmatpush1.msra.mxu0 0.0
  %2632 = vmatprep.subr.mxu0 0.0
  %2633 = vmatpush1.msra.mxu0 0.0
  %2634 = vmatprep.subr.mxu0 0.0
  %2635 = vmatpush1.msra.mxu0 0.0
  %2636 = vmatprep.subr.mxu0 0.0
  %2637 = vmatpush1.msra.mxu0 0.0
  %2638 = vmatprep.subr.mxu0 0.0
  %2639 = vmatpush1.msra.mxu0 0.0
  %2640 = vmatprep.mubr.f32.mxu0 0.0
  %2641 = vmatmul.mubr.f32.gmra.mrb[0].mxu0 %v1720
  %v2642 = vpop.f32.mrb[0].mxu0
  %v2643 = vadd.f32 %v1689, %v2642
  %v2644 = vpop.f32.mrb[0].mxu0
  %v2645 = vadd.f32 %v1693, %v2644
  %2646 = vdwg.mxu0
  %v2647 = vmax.f32 %v1862, 0.0
  %v2648 = vmax.f32 %v1864, 0.0
  %v2649 = vmax.f32 %v1933, 0.0
  %v2650 = vmax.f32 %v1935, 0.0
  %v2651 = vmax.f32 %v2004, 0.0
  %v2652 = vmax.f32 %v2006, 0.0
  %v2653 = vmax.f32 %v2075, 0.0
  %v2654 = vmax.f32 %v2077, 0.0
  %v2655 = vmax.f32 %v2146, 0.0
  %v2656 = vmax.f32 %v2148, 0.0
  %v2657 = vmax.f32 %v2217, 0.0
  %v2658 = vmax.f32 %v2219, 0.0
  %v2659 = vmax.f32 %v2288, 0.0
  %v2660 = vmax.f32 %v2290, 0.0
  %v2661 = vmax.f32 %v2359, 0.0
  %v2662 = vmax.f32 %v2361, 0.0
  %v2663 = vmax.f32 %v2430, 0.0
  %v2664 = vmax.f32 %v2432, 0.0
  %v2665 = vmax.f32 %v2501, 0.0
  %v2666 = vmax.f32 %v2503, 0.0
  %v2667 = vmax.f32 %v2572, 0.0
  %v2668 = vmax.f32 %v2574, 0.0
  %v2669 = vmax.f32 %v2643, 0.0
  %v2670 = vmax.f32 %v2645, 0.0
  %v2671 = vld [vmem:[%s3] sm:$0xff]
  %v2672 = vld [vmem:[%s3 + $0x8] sm:$0xff]
  %v2673 = vld [vmem:[%s3 + $0x10] sm:$0xff]
  %v2674 = vld [vmem:[%s3 + $0x18] sm:$0xff]
  %v2675 = vld [vmem:[%s3 + $0x20] sm:$0xff]
  %v2676 = vld [vmem:[%s3 + $0x28] sm:$0xff]
  %v2677 = vld [vmem:[%s3 + $0x30] sm:$0xff]
  %v2678 = vld [vmem:[%s3 + $0x38] sm:$0xff]
  %v2679 = vld [vmem:[%s3 + $0x40] sm:$0xff]
  %v2680 = vld [vmem:[%s3 + $0x48] sm:$0xff]
  %v2681 = vld [vmem:[%s3 + $0x50] sm:$0xff]
  %v2682 = vld [vmem:[%s3 + $0x58] sm:$0xff]
  %v2683 = vld [vmem:[%s3 + $0x60] sm:$0xff]
  %v2684 = vld [vmem:[%s3 + $0x68] sm:$0xff]
  %v2685 = vld [vmem:[%s3 + $0x70] sm:$0xff]
  %v2686 = vld [vmem:[%s3 + $0x78] sm:$0xff]
  %v2687 = vld [vmem:[%s3 + $0x80] sm:$0xff]
  %v2688 = vld [vmem:[%s3 + $0x88] sm:$0xff]
  %v2689 = vld [vmem:[%s3 + $0x90] sm:$0xff]
  %v2690 = vld [vmem:[%s3 + $0x98] sm:$0xff]
  %v2691 = vld [vmem:[%s3 + $0xa0] sm:$0xff]
  %v2692 = vld [vmem:[%s3 + $0xa8] sm:$0xff]
  %v2693 = vld [vmem:[%s3 + $0xb0] sm:$0xff]
  %v2694 = vld [vmem:[%s3 + $0xb8] sm:$0xff]
  %v2695 = vld [vmem:[%s3 + $0xc0] sm:$0xff]
  %v2696 = vld [vmem:[%s3 + $0xc8] sm:$0xff]
  %v2697 = vld [vmem:[%s3 + $0xd0] sm:$0xff]
  %v2698 = vld [vmem:[%s3 + $0xd8] sm:$0xff]
  %v2699 = vld [vmem:[%s3 + $0xe0] sm:$0xff]
  %v2700 = vld [vmem:[%s3 + $0xe8] sm:$0xff]
  %v2701 = vld [vmem:[%s3 + $0xf0] sm:$0xff]
  %v2702 = vld [vmem:[%s3 + $0xf8] sm:$0xff]
  %v2703 = vld [vmem:[%s3 + $0x100] sm:$0xff]
  %v2704 = vld [vmem:[%s3 + $0x108] sm:$0xff]
  %v2705 = vld [vmem:[%s3 + $0x110] sm:$0xff]
  %v2706 = vld [vmem:[%s3 + $0x118] sm:$0xff]
  %v2707 = vld [vmem:[%s3 + $0x120] sm:$0xff]
  %v2708 = vld [vmem:[%s3 + $0x128] sm:$0xff]
  %v2709 = vld [vmem:[%s3 + $0x130] sm:$0xff]
  %v2710 = vld [vmem:[%s3 + $0x138] sm:$0xff]
  %v2711 = vld [vmem:[%s3 + $0x140] sm:$0xff]
  %v2712 = vld [vmem:[%s3 + $0x148] sm:$0xff]
  %v2713 = vld [vmem:[%s3 + $0x150] sm:$0xff]
  %v2714 = vld [vmem:[%s3 + $0x158] sm:$0xff]
  %v2715 = vld [vmem:[%s3 + $0x160] sm:$0xff]
  %v2716 = vld [vmem:[%s3 + $0x168] sm:$0xff]
  %v2717 = vld [vmem:[%s3 + $0x170] sm:$0xff]
  %v2718 = vld [vmem:[%s3 + $0x178] sm:$0xff]
  %v2719 = vld [vmem:[%s3 + $0x180] sm:$0xff]
  %v2720 = vld [vmem:[%s3 + $0x188] sm:$0xff]
  %v2721 = vld [vmem:[%s3 + $0x190] sm:$0xff]
  %v2722 = vld [vmem:[%s3 + $0x198] sm:$0xff]
  %v2723 = vld [vmem:[%s3 + $0x1a0] sm:$0xff]
  %v2724 = vld [vmem:[%s3 + $0x1a8] sm:$0xff]
  %v2725 = vld [vmem:[%s3 + $0x1b0] sm:$0xff]
  %v2726 = vld [vmem:[%s3 + $0x1b8] sm:$0xff]
  %v2727 = vld [vmem:[%s3 + $0x1c0] sm:$0xff]
  %v2728 = vld [vmem:[%s3 + $0x1c8] sm:$0xff]
  %v2729 = vld [vmem:[%s3 + $0x1d0] sm:$0xff]
  %v2730 = vld [vmem:[%s3 + $0x1d8] sm:$0xff]
  %v2731 = vld [vmem:[%s3 + $0x1e0] sm:$0xff]
  %v2732 = vld [vmem:[%s3 + $0x1e8] sm:$0xff]
  %v2733 = vld [vmem:[%s3 + $0x1f0] sm:$0xff]
  %v2734 = vld [vmem:[%s3 + $0x1f8] sm:$0xff]
  %v2735 = vld [vmem:[%s3 + $0x200] sm:$0xff]
  %v2736 = vld [vmem:[%s3 + $0x208] sm:$0xff]
  %v2737 = vld [vmem:[%s3 + $0x210] sm:$0xff]
  %v2738 = vld [vmem:[%s3 + $0x218] sm:$0xff]
  %v2739 = vld [vmem:[%s3 + $0x220] sm:$0xff]
  %v2740 = vld [vmem:[%s3 + $0x228] sm:$0xff]
  %v2741 = vld [vmem:[%s3 + $0x230] sm:$0xff]
  %v2742 = vld [vmem:[%s3 + $0x238] sm:$0xff]
  %v2743 = vld [vmem:[%s3 + $0x240] sm:$0xff]
  %v2744 = vld [vmem:[%s3 + $0x248] sm:$0xff]
  %v2745 = vld [vmem:[%s3 + $0x250] sm:$0xff]
  %v2746 = vld [vmem:[%s3 + $0x258] sm:$0xff]
  %v2747 = vld [vmem:[%s3 + $0x260] sm:$0xff]
  %v2748 = vld [vmem:[%s3 + $0x268] sm:$0xff]
  %v2749 = vld [vmem:[%s3 + $0x270] sm:$0xff]
  %v2750 = vld [vmem:[%s3 + $0x278] sm:$0xff]
  %v2751 = vld [vmem:[%s3 + $0x280] sm:$0xff]
  %v2752 = vld [vmem:[%s3 + $0x288] sm:$0xff]
  %v2753 = vld [vmem:[%s3 + $0x290] sm:$0xff]
  %v2754 = vld [vmem:[%s3 + $0x298] sm:$0xff]
  %v2755 = vld [vmem:[%s3 + $0x2a0] sm:$0xff]
  %v2756 = vld [vmem:[%s3 + $0x2a8] sm:$0xff]
  %v2757 = vld [vmem:[%s3 + $0x2b0] sm:$0xff]
  %v2758 = vld [vmem:[%s3 + $0x2b8] sm:$0xff]
  %v2759 = vld [vmem:[%s3 + $0x2c0] sm:$0xff]
  %v2760 = vld [vmem:[%s3 + $0x2c8] sm:$0xff]
  %v2761 = vld [vmem:[%s3 + $0x2d0] sm:$0xff]
  %v2762 = vld [vmem:[%s3 + $0x2d8] sm:$0xff]
  %v2763 = vld [vmem:[%s3 + $0x2e0] sm:$0xff]
  %v2764 = vld [vmem:[%s3 + $0x2e8] sm:$0xff]
  %v2765 = vld [vmem:[%s3 + $0x2f0] sm:$0xff]
  %v2766 = vld [vmem:[%s3 + $0x2f8] sm:$0xff]
  %v2767 = vld [vmem:[%s3 + $0x300] sm:$0xff]
  %v2768 = vld [vmem:[%s3 + $0x308] sm:$0xff]
  %v2769 = vld [vmem:[%s3 + $0x310] sm:$0xff]
  %v2770 = vld [vmem:[%s3 + $0x318] sm:$0xff]
  %v2771 = vld [vmem:[%s3 + $0x320] sm:$0xff]
  %v2772 = vld [vmem:[%s3 + $0x328] sm:$0xff]
  %v2773 = vld [vmem:[%s3 + $0x330] sm:$0xff]
  %v2774 = vld [vmem:[%s3 + $0x338] sm:$0xff]
  %v2775 = vld [vmem:[%s3 + $0x340] sm:$0xff]
  %v2776 = vld [vmem:[%s3 + $0x348] sm:$0xff]
  %v2777 = vld [vmem:[%s3 + $0x350] sm:$0xff]
  %v2778 = vld [vmem:[%s3 + $0x358] sm:$0xff]
  %v2779 = vld [vmem:[%s3 + $0x360] sm:$0xff]
  %v2780 = vld [vmem:[%s3 + $0x368] sm:$0xff]
  %v2781 = vld [vmem:[%s3 + $0x370] sm:$0xff]
  %v2782 = vld [vmem:[%s3 + $0x378] sm:$0xff]
  %v2783 = vld [vmem:[%s3 + $0x380] sm:$0xff]
  %v2784 = vld [vmem:[%s3 + $0x388] sm:$0xff]
  %v2785 = vld [vmem:[%s3 + $0x390] sm:$0xff]
  %v2786 = vld [vmem:[%s3 + $0x398] sm:$0xff]
  %v2787 = vld [vmem:[%s3 + $0x3a0] sm:$0xff]
  %v2788 = vld [vmem:[%s3 + $0x3a8] sm:$0xff]
  %v2789 = vld [vmem:[%s3 + $0x3b0] sm:$0xff]
  %v2790 = vld [vmem:[%s3 + $0x3b8] sm:$0xff]
  %v2791 = vld [vmem:[%s3 + $0x3c0] sm:$0xff]
  %v2792 = vld [vmem:[%s3 + $0x3c8] sm:$0xff]
  %v2793 = vld [vmem:[%s3 + $0x3d0] sm:$0xff]
  %v2794 = vld [vmem:[%s3 + $0x3d8] sm:$0xff]
  %v2795 = vld [vmem:[%s3 + $0x3e0] sm:$0xff]
  %v2796 = vld [vmem:[%s3 + $0x3e8] sm:$0xff]
  %v2797 = vld [vmem:[%s3 + $0x3f0] sm:$0xff]
  %v2798 = vld [vmem:[%s3 + $0x3f8] sm:$0xff]
  %v2799 = vld [vmem:[%s3 + $0x400] sm:$0xff]
  %v2800 = vld [vmem:[%s3 + $0x408] sm:$0xff]
  %v2801 = vld [vmem:[%s3 + $0x410] sm:$0xff]
  %v2802 = vld [vmem:[%s3 + $0x418] sm:$0xff]
  %v2803 = vld [vmem:[%s3 + $0x420] sm:$0xff]
  %v2804 = vld [vmem:[%s3 + $0x428] sm:$0xff]
  %v2805 = vld [vmem:[%s3 + $0x430] sm:$0xff]
  %v2806 = vld [vmem:[%s3 + $0x438] sm:$0xff]
  %v2807 = vld [vmem:[%s3 + $0x440] sm:$0xff]
  %v2808 = vld [vmem:[%s3 + $0x448] sm:$0xff]
  %v2809 = vld [vmem:[%s3 + $0x450] sm:$0xff]
  %v2810 = vld [vmem:[%s3 + $0x458] sm:$0xff]
  %v2811 = vld [vmem:[%s3 + $0x460] sm:$0xff]
  %v2812 = vld [vmem:[%s3 + $0x468] sm:$0xff]
  %v2813 = vld [vmem:[%s3 + $0x470] sm:$0xff]
  %v2814 = vld [vmem:[%s3 + $0x478] sm:$0xff]
  %v2815 = vld [vmem:[%s3 + $0x480] sm:$0xff]
  %v2816 = vld [vmem:[%s3 + $0x488] sm:$0xff]
  %v2817 = vld [vmem:[%s3 + $0x490] sm:$0xff]
  %v2818 = vld [vmem:[%s3 + $0x498] sm:$0xff]
  %v2819 = vld [vmem:[%s3 + $0x4a0] sm:$0xff]
  %v2820 = vld [vmem:[%s3 + $0x4a8] sm:$0xff]
  %v2821 = vld [vmem:[%s3 + $0x4b0] sm:$0xff]
  %v2822 = vld [vmem:[%s3 + $0x4b8] sm:$0xff]
  %v2823 = vld [vmem:[%s3 + $0x4c0] sm:$0xff]
  %v2824 = vld [vmem:[%s3 + $0x4c8] sm:$0xff]
  %v2825 = vld [vmem:[%s3 + $0x4d0] sm:$0xff]
  %v2826 = vld [vmem:[%s3 + $0x4d8] sm:$0xff]
  %v2827 = vld [vmem:[%s3 + $0x4e0] sm:$0xff]
  %v2828 = vld [vmem:[%s3 + $0x4e8] sm:$0xff]
  %v2829 = vld [vmem:[%s3 + $0x4f0] sm:$0xff]
  %v2830 = vld [vmem:[%s3 + $0x4f8] sm:$0xff]
  %v2831 = vld [vmem:[%s3 + $0x500] sm:$0xff]
  %v2832 = vld [vmem:[%s3 + $0x508] sm:$0xff]
  %v2833 = vld [vmem:[%s3 + $0x510] sm:$0xff]
  %v2834 = vld [vmem:[%s3 + $0x518] sm:$0xff]
  %v2835 = vld [vmem:[%s3 + $0x520] sm:$0xff]
  %v2836 = vld [vmem:[%s3 + $0x528] sm:$0xff]
  %v2837 = vld [vmem:[%s3 + $0x530] sm:$0xff]
  %v2838 = vld [vmem:[%s3 + $0x538] sm:$0xff]
  %v2839 = vld [vmem:[%s3 + $0x540] sm:$0xff]
  %v2840 = vld [vmem:[%s3 + $0x548] sm:$0xff]
  %v2841 = vld [vmem:[%s3 + $0x550] sm:$0xff]
  %v2842 = vld [vmem:[%s3 + $0x558] sm:$0xff]
  %v2843 = vld [vmem:[%s3 + $0x560] sm:$0xff]
  %v2844 = vld [vmem:[%s3 + $0x568] sm:$0xff]
  %v2845 = vld [vmem:[%s3 + $0x570] sm:$0xff]
  %v2846 = vld [vmem:[%s3 + $0x578] sm:$0xff]
  %v2847 = vld [vmem:[%s3 + $0x580] sm:$0xff]
  %v2848 = vld [vmem:[%s3 + $0x588] sm:$0xff]
  %v2849 = vld [vmem:[%s3 + $0x590] sm:$0xff]
  %v2850 = vld [vmem:[%s3 + $0x598] sm:$0xff]
  %v2851 = vld [vmem:[%s3 + $0x5a0] sm:$0xff]
  %v2852 = vld [vmem:[%s3 + $0x5a8] sm:$0xff]
  %v2853 = vld [vmem:[%s3 + $0x5b0] sm:$0xff]
  %v2854 = vld [vmem:[%s3 + $0x5b8] sm:$0xff]
  %v2855 = vld [vmem:[%s3 + $0x5c0] sm:$0xff]
  %v2856 = vld [vmem:[%s3 + $0x5c8] sm:$0xff]
  %v2857 = vld [vmem:[%s3 + $0x5d0] sm:$0xff]
  %v2858 = vld [vmem:[%s3 + $0x5d8] sm:$0xff]
  %v2859 = vld [vmem:[%s3 + $0x5e0] sm:$0xff]
  %v2860 = vld [vmem:[%s3 + $0x5e8] sm:$0xff]
  %v2861 = vld [vmem:[%s3 + $0x5f0] sm:$0xff]
  %v2862 = vld [vmem:[%s3 + $0x5f8] sm:$0xff]
  %v2863 = vld [vmem:[%s3 + $0x600] sm:$0xff]
  %v2864 = vld [vmem:[%s3 + $0x608] sm:$0xff]
  %v2865 = vld [vmem:[%s3 + $0x610] sm:$0xff]
  %v2866 = vld [vmem:[%s3 + $0x618] sm:$0xff]
  %v2867 = vld [vmem:[%s3 + $0x620] sm:$0xff]
  %v2868 = vld [vmem:[%s3 + $0x628] sm:$0xff]
  %v2869 = vld [vmem:[%s3 + $0x630] sm:$0xff]
  %v2870 = vld [vmem:[%s3 + $0x638] sm:$0xff]
  %v2871 = vld [vmem:[%s3 + $0x640] sm:$0xff]
  %v2872 = vld [vmem:[%s3 + $0x648] sm:$0xff]
  %v2873 = vld [vmem:[%s3 + $0x650] sm:$0xff]
  %v2874 = vld [vmem:[%s3 + $0x658] sm:$0xff]
  %v2875 = vld [vmem:[%s3 + $0x660] sm:$0xff]
  %v2876 = vld [vmem:[%s3 + $0x668] sm:$0xff]
  %v2877 = vld [vmem:[%s3 + $0x670] sm:$0xff]
  %v2878 = vld [vmem:[%s3 + $0x678] sm:$0xff]
  %v2879 = vld [vmem:[%s3 + $0x680] sm:$0xff]
  %v2880 = vld [vmem:[%s3 + $0x688] sm:$0xff]
  %v2881 = vld [vmem:[%s3 + $0x690] sm:$0xff]
  %v2882 = vld [vmem:[%s3 + $0x698] sm:$0xff]
  %v2883 = vld [vmem:[%s3 + $0x6a0] sm:$0xff]
  %v2884 = vld [vmem:[%s3 + $0x6a8] sm:$0xff]
  %v2885 = vld [vmem:[%s3 + $0x6b0] sm:$0xff]
  %v2886 = vld [vmem:[%s3 + $0x6b8] sm:$0xff]
  %v2887 = vld [vmem:[%s3 + $0x6c0] sm:$0xff]
  %v2888 = vld [vmem:[%s3 + $0x6c8] sm:$0xff]
  %v2889 = vld [vmem:[%s3 + $0x6d0] sm:$0xff]
  %v2890 = vld [vmem:[%s3 + $0x6d8] sm:$0xff]
  %v2891 = vld [vmem:[%s3 + $0x6e0] sm:$0xff]
  %v2892 = vld [vmem:[%s3 + $0x6e8] sm:$0xff]
  %v2893 = vld [vmem:[%s3 + $0x6f0] sm:$0xff]
  %v2894 = vld [vmem:[%s3 + $0x6f8] sm:$0xff]
  %v2895 = vld [vmem:[%s3 + $0x700] sm:$0xff]
  %v2896 = vld [vmem:[%s3 + $0x708] sm:$0xff]
  %v2897 = vld [vmem:[%s3 + $0x710] sm:$0xff]
  %v2898 = vld [vmem:[%s3 + $0x718] sm:$0xff]
  %v2899 = vld [vmem:[%s3 + $0x720] sm:$0xff]
  %v2900 = vld [vmem:[%s3 + $0x728] sm:$0xff]
  %v2901 = vld [vmem:[%s3 + $0x730] sm:$0xff]
  %v2902 = vld [vmem:[%s3 + $0x738] sm:$0xff]
  %v2903 = vld [vmem:[%s3 + $0x740] sm:$0xff]
  %v2904 = vld [vmem:[%s3 + $0x748] sm:$0xff]
  %v2905 = vld [vmem:[%s3 + $0x750] sm:$0xff]
  %v2906 = vld [vmem:[%s3 + $0x758] sm:$0xff]
  %v2907 = vld [vmem:[%s3 + $0x760] sm:$0xff]
  %v2908 = vld [vmem:[%s3 + $0x768] sm:$0xff]
  %v2909 = vld [vmem:[%s3 + $0x770] sm:$0xff]
  %v2910 = vld [vmem:[%s3 + $0x778] sm:$0xff]
  %v2911 = vld [vmem:[%s3 + $0x780] sm:$0xff]
  %v2912 = vld [vmem:[%s3 + $0x788] sm:$0xff]
  %v2913 = vld [vmem:[%s3 + $0x790] sm:$0xff]
  %v2914 = vld [vmem:[%s3 + $0x798] sm:$0xff]
  %v2915 = vld [vmem:[%s3 + $0x7a0] sm:$0xff]
  %v2916 = vld [vmem:[%s3 + $0x7a8] sm:$0xff]
  %v2917 = vld [vmem:[%s3 + $0x7b0] sm:$0xff]
  %v2918 = vld [vmem:[%s3 + $0x7b8] sm:$0xff]
  %v2919 = vld [vmem:[%s3 + $0x7c0] sm:$0xff]
  %v2920 = vld [vmem:[%s3 + $0x7c8] sm:$0xff]
  %v2921 = vld [vmem:[%s3 + $0x7d0] sm:$0xff]
  %v2922 = vld [vmem:[%s3 + $0x7d8] sm:$0xff]
  %v2923 = vld [vmem:[%s3 + $0x7e0] sm:$0xff]
  %v2924 = vld [vmem:[%s3 + $0x7e8] sm:$0xff]
  %v2925 = vld [vmem:[%s3 + $0x7f0] sm:$0xff]
  %v2926 = vld [vmem:[%s3 + $0x7f8] sm:$0xff]
  %v2927 = vld [vmem:[%s3 + $0x800] sm:$0xff]
  %v2928 = vld [vmem:[%s3 + $0x808] sm:$0xff]
  %v2929 = vld [vmem:[%s3 + $0x810] sm:$0xff]
  %v2930 = vld [vmem:[%s3 + $0x818] sm:$0xff]
  %v2931 = vld [vmem:[%s3 + $0x820] sm:$0xff]
  %v2932 = vld [vmem:[%s3 + $0x828] sm:$0xff]
  %v2933 = vld [vmem:[%s3 + $0x830] sm:$0xff]
  %v2934 = vld [vmem:[%s3 + $0x838] sm:$0xff]
  %v2935 = vld [vmem:[%s3 + $0x840] sm:$0xff]
  %v2936 = vld [vmem:[%s3 + $0x848] sm:$0xff]
  %v2937 = vld [vmem:[%s3 + $0x850] sm:$0xff]
  %v2938 = vld [vmem:[%s3 + $0x858] sm:$0xff]
  %v2939 = vld [vmem:[%s3 + $0x860] sm:$0xff]
  %v2940 = vld [vmem:[%s3 + $0x868] sm:$0xff]
  %v2941 = vld [vmem:[%s3 + $0x870] sm:$0xff]
  %v2942 = vld [vmem:[%s3 + $0x878] sm:$0xff]
  %v2943 = vld [vmem:[%s3 + $0x880] sm:$0xff]
  %v2944 = vld [vmem:[%s3 + $0x888] sm:$0xff]
  %v2945 = vld [vmem:[%s3 + $0x890] sm:$0xff]
  %v2946 = vld [vmem:[%s3 + $0x898] sm:$0xff]
  %v2947 = vld [vmem:[%s3 + $0x8a0] sm:$0xff]
  %v2948 = vld [vmem:[%s3 + $0x8a8] sm:$0xff]
  %v2949 = vld [vmem:[%s3 + $0x8b0] sm:$0xff]
  %v2950 = vld [vmem:[%s3 + $0x8b8] sm:$0xff]
  %v2951 = vld [vmem:[%s3 + $0x8c0] sm:$0xff]
  %v2952 = vld [vmem:[%s3 + $0x8c8] sm:$0xff]
  %v2953 = vld [vmem:[%s3 + $0x8d0] sm:$0xff]
  %v2954 = vld [vmem:[%s3 + $0x8d8] sm:$0xff]
  %v2955 = vld [vmem:[%s3 + $0x8e0] sm:$0xff]
  %v2956 = vld [vmem:[%s3 + $0x8e8] sm:$0xff]
  %v2957 = vld [vmem:[%s3 + $0x8f0] sm:$0xff]
  %v2958 = vld [vmem:[%s3 + $0x8f8] sm:$0xff]
  %v2959 = vld [vmem:[%s3 + $0x900] sm:$0xff]
  %v2960 = vld [vmem:[%s3 + $0x908] sm:$0xff]
  %v2961 = vld [vmem:[%s3 + $0x910] sm:$0xff]
  %v2962 = vld [vmem:[%s3 + $0x918] sm:$0xff]
  %v2963 = vld [vmem:[%s3 + $0x920] sm:$0xff]
  %v2964 = vld [vmem:[%s3 + $0x928] sm:$0xff]
  %v2965 = vld [vmem:[%s3 + $0x930] sm:$0xff]
  %v2966 = vld [vmem:[%s3 + $0x938] sm:$0xff]
  %v2967 = vld [vmem:[%s3 + $0x940] sm:$0xff]
  %v2968 = vld [vmem:[%s3 + $0x948] sm:$0xff]
  %v2969 = vld [vmem:[%s3 + $0x950] sm:$0xff]
  %v2970 = vld [vmem:[%s3 + $0x958] sm:$0xff]
  %v2971 = vld [vmem:[%s3 + $0x960] sm:$0xff]
  %v2972 = vld [vmem:[%s3 + $0x968] sm:$0xff]
  %v2973 = vld [vmem:[%s3 + $0x970] sm:$0xff]
  %v2974 = vld [vmem:[%s3 + $0x978] sm:$0xff]
  %v2975 = vld [vmem:[%s3 + $0x980] sm:$0xff]
  %v2976 = vld [vmem:[%s3 + $0x988] sm:$0xff]
  %v2977 = vld [vmem:[%s3 + $0x990] sm:$0xff]
  %v2978 = vld [vmem:[%s3 + $0x998] sm:$0xff]
  %v2979 = vld [vmem:[%s3 + $0x9a0] sm:$0xff]
  %v2980 = vld [vmem:[%s3 + $0x9a8] sm:$0xff]
  %v2981 = vld [vmem:[%s3 + $0x9b0] sm:$0xff]
  %v2982 = vld [vmem:[%s3 + $0x9b8] sm:$0xff]
  %v2983 = vld [vmem:[%s3 + $0x9c0] sm:$0xff]
  %v2984 = vld [vmem:[%s3 + $0x9c8] sm:$0xff]
  %v2985 = vld [vmem:[%s3 + $0x9d0] sm:$0xff]
  %v2986 = vld [vmem:[%s3 + $0x9d8] sm:$0xff]
  %v2987 = vld [vmem:[%s3 + $0x9e0] sm:$0xff]
  %v2988 = vld [vmem:[%s3 + $0x9e8] sm:$0xff]
  %v2989 = vld [vmem:[%s3 + $0x9f0] sm:$0xff]
  %v2990 = vld [vmem:[%s3 + $0x9f8] sm:$0xff]
  %v2991 = vld [vmem:[%s3 + $0xa00] sm:$0xff]
  %v2992 = vld [vmem:[%s3 + $0xa08] sm:$0xff]
  %v2993 = vld [vmem:[%s3 + $0xa10] sm:$0xff]
  %v2994 = vld [vmem:[%s3 + $0xa18] sm:$0xff]
  %v2995 = vld [vmem:[%s3 + $0xa20] sm:$0xff]
  %v2996 = vld [vmem:[%s3 + $0xa28] sm:$0xff]
  %v2997 = vld [vmem:[%s3 + $0xa30] sm:$0xff]
  %v2998 = vld [vmem:[%s3 + $0xa38] sm:$0xff]
  %v2999 = vld [vmem:[%s3 + $0xa40] sm:$0xff]
  %v3000 = vld [vmem:[%s3 + $0xa48] sm:$0xff]
  %v3001 = vld [vmem:[%s3 + $0xa50] sm:$0xff]
  %v3002 = vld [vmem:[%s3 + $0xa58] sm:$0xff]
  %v3003 = vld [vmem:[%s3 + $0xa60] sm:$0xff]
  %v3004 = vld [vmem:[%s3 + $0xa68] sm:$0xff]
  %v3005 = vld [vmem:[%s3 + $0xa70] sm:$0xff]
  %v3006 = vld [vmem:[%s3 + $0xa78] sm:$0xff]
  %v3007 = vld [vmem:[%s3 + $0xa80] sm:$0xff]
  %v3008 = vld [vmem:[%s3 + $0xa88] sm:$0xff]
  %v3009 = vld [vmem:[%s3 + $0xa90] sm:$0xff]
  %v3010 = vld [vmem:[%s3 + $0xa98] sm:$0xff]
  %v3011 = vld [vmem:[%s3 + $0xaa0] sm:$0xff]
  %v3012 = vld [vmem:[%s3 + $0xaa8] sm:$0xff]
  %v3013 = vld [vmem:[%s3 + $0xab0] sm:$0xff]
  %v3014 = vld [vmem:[%s3 + $0xab8] sm:$0xff]
  %v3015 = vld [vmem:[%s3 + $0xac0] sm:$0xff]
  %v3016 = vld [vmem:[%s3 + $0xac8] sm:$0xff]
  %v3017 = vld [vmem:[%s3 + $0xad0] sm:$0xff]
  %v3018 = vld [vmem:[%s3 + $0xad8] sm:$0xff]
  %v3019 = vld [vmem:[%s3 + $0xae0] sm:$0xff]
  %v3020 = vld [vmem:[%s3 + $0xae8] sm:$0xff]
  %v3021 = vld [vmem:[%s3 + $0xaf0] sm:$0xff]
  %v3022 = vld [vmem:[%s3 + $0xaf8] sm:$0xff]
  %v3023 = vld [vmem:[%s3 + $0xb00] sm:$0xff]
  %v3024 = vld [vmem:[%s3 + $0xb08] sm:$0xff]
  %v3025 = vld [vmem:[%s3 + $0xb10] sm:$0xff]
  %v3026 = vld [vmem:[%s3 + $0xb18] sm:$0xff]
  %v3027 = vld [vmem:[%s3 + $0xb20] sm:$0xff]
  %v3028 = vld [vmem:[%s3 + $0xb28] sm:$0xff]
  %v3029 = vld [vmem:[%s3 + $0xb30] sm:$0xff]
  %v3030 = vld [vmem:[%s3 + $0xb38] sm:$0xff]
  %v3031 = vld [vmem:[%s3 + $0xb40] sm:$0xff]
  %v3032 = vld [vmem:[%s3 + $0xb48] sm:$0xff]
  %v3033 = vld [vmem:[%s3 + $0xb50] sm:$0xff]
  %v3034 = vld [vmem:[%s3 + $0xb58] sm:$0xff]
  %v3035 = vld [vmem:[%s3 + $0xb60] sm:$0xff]
  %v3036 = vld [vmem:[%s3 + $0xb68] sm:$0xff]
  %v3037 = vld [vmem:[%s3 + $0xb70] sm:$0xff]
  %v3038 = vld [vmem:[%s3 + $0xb78] sm:$0xff]
  %v3039 = vld [vmem:[%s3 + $0xb80] sm:$0xff]
  %v3040 = vld [vmem:[%s3 + $0xb88] sm:$0xff]
  %v3041 = vld [vmem:[%s3 + $0xb90] sm:$0xff]
  %v3042 = vld [vmem:[%s3 + $0xb98] sm:$0xff]
  %v3043 = vld [vmem:[%s3 + $0xba0] sm:$0xff]
  %v3044 = vld [vmem:[%s3 + $0xba8] sm:$0xff]
  %v3045 = vld [vmem:[%s3 + $0xbb0] sm:$0xff]
  %v3046 = vld [vmem:[%s3 + $0xbb8] sm:$0xff]
  %v3047 = vld [vmem:[%s3 + $0xbc0] sm:$0xff]
  %v3048 = vld [vmem:[%s3 + $0xbc8] sm:$0xff]
  %v3049 = vld [vmem:[%s3 + $0xbd0] sm:$0xff]
  %v3050 = vld [vmem:[%s3 + $0xbd8] sm:$0xff]
  %v3051 = vld [vmem:[%s3 + $0xbe0] sm:$0xff]
  %v3052 = vld [vmem:[%s3 + $0xbe8] sm:$0xff]
  %v3053 = vld [vmem:[%s3 + $0xbf0] sm:$0xff]
  %v3054 = vld [vmem:[%s3 + $0xbf8] sm:$0xff]
  %v3055 = vld [vmem:[%s4] sm:$0x1]
  %3056 = vmatprep.subr.mxu0 0.0
  %3057 = vmatpush1.msra.mxu0 %v2671
  %3058 = vmatprep.subr.mxu0 0.0
  %3059 = vmatpush1.msra.mxu0 %v2672
  %3060 = vmatprep.subr.mxu0 0.0
  %3061 = vmatpush1.msra.mxu0 %v2673
  %3062 = vmatprep.subr.mxu0 0.0
  %3063 = vmatpush1.msra.mxu0 %v2674
  %3064 = vmatprep.subr.mxu0 0.0
  %3065 = vmatpush1.msra.mxu0 %v2675
  %3066 = vmatprep.subr.mxu0 0.0
  %3067 = vmatpush1.msra.mxu0 %v2676
  %3068 = vmatprep.subr.mxu0 0.0
  %3069 = vmatpush1.msra.mxu0 %v2677
  %3070 = vmatprep.subr.mxu0 0.0
  %3071 = vmatpush1.msra.mxu0 %v2678
  %3072 = vmatprep.subr.mxu0 0.0
  %3073 = vmatpush1.msra.mxu0 %v2679
  %3074 = vmatprep.subr.mxu0 0.0
  %3075 = vmatpush1.msra.mxu0 %v2680
  %3076 = vmatprep.subr.mxu0 0.0
  %3077 = vmatpush1.msra.mxu0 %v2681
  %3078 = vmatprep.subr.mxu0 0.0
  %3079 = vmatpush1.msra.mxu0 %v2682
  %3080 = vmatprep.subr.mxu0 0.0
  %3081 = vmatpush1.msra.mxu0 %v2683
  %3082 = vmatprep.subr.mxu0 0.0
  %3083 = vmatpush1.msra.mxu0 %v2684
  %3084 = vmatprep.subr.mxu0 0.0
  %3085 = vmatpush1.msra.mxu0 %v2685
  %3086 = vmatprep.subr.mxu0 0.0
  %3087 = vmatpush1.msra.mxu0 %v2686
  %3088 = vmatprep.subr.mxu0 0.0
  %3089 = vmatpush1.msra.mxu0 %v2687
  %3090 = vmatprep.subr.mxu0 0.0
  %3091 = vmatpush1.msra.mxu0 %v2688
  %3092 = vmatprep.subr.mxu0 0.0
  %3093 = vmatpush1.msra.mxu0 %v2689
  %3094 = vmatprep.subr.mxu0 0.0
  %3095 = vmatpush1.msra.mxu0 %v2690
  %3096 = vmatprep.subr.mxu0 0.0
  %3097 = vmatpush1.msra.mxu0 %v2691
  %3098 = vmatprep.subr.mxu0 0.0
  %3099 = vmatpush1.msra.mxu0 %v2692
  %3100 = vmatprep.subr.mxu0 0.0
  %3101 = vmatpush1.msra.mxu0 %v2693
  %3102 = vmatprep.subr.mxu0 0.0
  %3103 = vmatpush1.msra.mxu0 %v2694
  %3104 = vmatprep.subr.mxu0 0.0
  %3105 = vmatpush1.msra.mxu0 %v2695
  %3106 = vmatprep.subr.mxu0 0.0
  %3107 = vmatpush1.msra.mxu0 %v2696
  %3108 = vmatprep.subr.mxu0 0.0
  %3109 = vmatpush1.msra.mxu0 %v2697
  %3110 = vmatprep.subr.mxu0 0.0
  %3111 = vmatpush1.msra.mxu0 %v2698
  %3112 = vmatprep.subr.mxu0 0.0
  %3113 = vmatpush1.msra.mxu0 %v2699
  %3114 = vmatprep.subr.mxu0 0.0
  %3115 = vmatpush1.msra.mxu0 %v2700
  %3116 = vmatprep.subr.mxu0 0.0
  %3117 = vmatpush1.msra.mxu0 %v2701
  %3118 = vmatprep.subr.mxu0 0.0
  %3119 = vmatpush1.msra.mxu0 %v2702
  %3120 = vmatprep.mubr.f32.mxu0 %v2648
  %3121 = vmatmul.mubr.f32.gmra.mrb[0].mxu0 %v2647
  %v3122 = vpop.f32.mrb[0].mxu0
  %v3123 = vadd.f32 %v3055, %v3122
  %v3124 = vpop.f32.mrb[0].mxu0
  %3125 = vdwg.mxu0
  %3126 = vmatprep.subr.mxu0 0.0
  %3127 = vmatpush1.msra.mxu0 %v2703
  %3128 = vmatprep.subr.mxu0 0.0
  %3129 = vmatpush1.msra.mxu0 %v2704
  %3130 = vmatprep.subr.mxu0 0.0
  %3131 = vmatpush1.msra.mxu0 %v2705
  %3132 = vmatprep.subr.mxu0 0.0
  %3133 = vmatpush1.msra.mxu0 %v2706
  %3134 = vmatprep.subr.mxu0 0.0
  %3135 = vmatpush1.msra.mxu0 %v2707
  %3136 = vmatprep.subr.mxu0 0.0
  %3137 = vmatpush1.msra.mxu0 %v2708
  %3138 = vmatprep.subr.mxu0 0.0
  %3139 = vmatpush1.msra.mxu0 %v2709
  %3140 = vmatprep.subr.mxu0 0.0
  %3141 = vmatpush1.msra.mxu0 %v2710
  %3142 = vmatprep.subr.mxu0 0.0
  %3143 = vmatpush1.msra.mxu0 %v2711
  %3144 = vmatprep.subr.mxu0 0.0
  %3145 = vmatpush1.msra.mxu0 %v2712
  %3146 = vmatprep.subr.mxu0 0.0
  %3147 = vmatpush1.msra.mxu0 %v2713
  %3148 = vmatprep.subr.mxu0 0.0
  %3149 = vmatpush1.msra.mxu0 %v2714
  %3150 = vmatprep.subr.mxu0 0.0
  %3151 = vmatpush1.msra.mxu0 %v2715
  %3152 = vmatprep.subr.mxu0 0.0
  %3153 = vmatpush1.msra.mxu0 %v2716
  %3154 = vmatprep.subr.mxu0 0.0
  %3155 = vmatpush1.msra.mxu0 %v2717
  %3156 = vmatprep.subr.mxu0 0.0
  %3157 = vmatpush1.msra.mxu0 %v2718
  %3158 = vmatprep.subr.mxu0 0.0
  %3159 = vmatpush1.msra.mxu0 %v2719
  %3160 = vmatprep.subr.mxu0 0.0
  %3161 = vmatpush1.msra.mxu0 %v2720
  %3162 = vmatprep.subr.mxu0 0.0
  %3163 = vmatpush1.msra.mxu0 %v2721
  %3164 = vmatprep.subr.mxu0 0.0
  %3165 = vmatpush1.msra.mxu0 %v2722
  %3166 = vmatprep.subr.mxu0 0.0
  %3167 = vmatpush1.msra.mxu0 %v2723
  %3168 = vmatprep.subr.mxu0 0.0
  %3169 = vmatpush1.msra.mxu0 %v2724
  %3170 = vmatprep.subr.mxu0 0.0
  %3171 = vmatpush1.msra.mxu0 %v2725
  %3172 = vmatprep.subr.mxu0 0.0
  %3173 = vmatpush1.msra.mxu0 %v2726
  %3174 = vmatprep.subr.mxu0 0.0
  %3175 = vmatpush1.msra.mxu0 %v2727
  %3176 = vmatprep.subr.mxu0 0.0
  %3177 = vmatpush1.msra.mxu0 %v2728
  %3178 = vmatprep.subr.mxu0 0.0
  %3179 = vmatpush1.msra.mxu0 %v2729
  %3180 = vmatprep.subr.mxu0 0.0
  %3181 = vmatpush1.msra.mxu0 %v2730
  %3182 = vmatprep.subr.mxu0 0.0
  %3183 = vmatpush1.msra.mxu0 %v2731
  %3184 = vmatprep.subr.mxu0 0.0
  %3185 = vmatpush1.msra.mxu0 %v2732
  %3186 = vmatprep.subr.mxu0 0.0
  %3187 = vmatpush1.msra.mxu0 %v2733
  %3188 = vmatprep.subr.mxu0 0.0
  %3189 = vmatpush1.msra.mxu0 %v2734
  %3190 = vmatprep.mubr.f32.mxu0 %v2650
  %3191 = vmatmul.mubr.f32.gmra.mrb[0].mxu0 %v2649
  %v3192 = vpop.f32.mrb[0].mxu0
  %v3193 = vadd.f32 %v3123, %v3192
  %v3194 = vpop.f32.mrb[0].mxu0
  %3195 = vdwg.mxu0
  %3196 = vmatprep.subr.mxu0 0.0
  %3197 = vmatpush1.msra.mxu0 %v2735
  %3198 = vmatprep.subr.mxu0 0.0
  %3199 = vmatpush1.msra.mxu0 %v2736
  %3200 = vmatprep.subr.mxu0 0.0
  %3201 = vmatpush1.msra.mxu0 %v2737
  %3202 = vmatprep.subr.mxu0 0.0
  %3203 = vmatpush1.msra.mxu0 %v2738
  %3204 = vmatprep.subr.mxu0 0.0
  %3205 = vmatpush1.msra.mxu0 %v2739
  %3206 = vmatprep.subr.mxu0 0.0
  %3207 = vmatpush1.msra.mxu0 %v2740
  %3208 = vmatprep.subr.mxu0 0.0
  %3209 = vmatpush1.msra.mxu0 %v2741
  %3210 = vmatprep.subr.mxu0 0.0
  %3211 = vmatpush1.msra.mxu0 %v2742
  %3212 = vmatprep.subr.mxu0 0.0
  %3213 = vmatpush1.msra.mxu0 %v2743
  %3214 = vmatprep.subr.mxu0 0.0
  %3215 = vmatpush1.msra.mxu0 %v2744
  %3216 = vmatprep.subr.mxu0 0.0
  %3217 = vmatpush1.msra.mxu0 %v2745
  %3218 = vmatprep.subr.mxu0 0.0
  %3219 = vmatpush1.msra.mxu0 %v2746
  %3220 = vmatprep.subr.mxu0 0.0
  %3221 = vmatpush1.msra.mxu0 %v2747
  %3222 = vmatprep.subr.mxu0 0.0
  %3223 = vmatpush1.msra.mxu0 %v2748
  %3224 = vmatprep.subr.mxu0 0.0
  %3225 = vmatpush1.msra.mxu0 %v2749
  %3226 = vmatprep.subr.mxu0 0.0
  %3227 = vmatpush1.msra.mxu0 %v2750
  %3228 = vmatprep.subr.mxu0 0.0
  %3229 = vmatpush1.msra.mxu0 %v2751
  %3230 = vmatprep.subr.mxu0 0.0
  %3231 = vmatpush1.msra.mxu0 %v2752
  %3232 = vmatprep.subr.mxu0 0.0
  %3233 = vmatpush1.msra.mxu0 %v2753
  %3234 = vmatprep.subr.mxu0 0.0
  %3235 = vmatpush1.msra.mxu0 %v2754
  %3236 = vmatprep.subr.mxu0 0.0
  %3237 = vmatpush1.msra.mxu0 %v2755
  %3238 = vmatprep.subr.mxu0 0.0
  %3239 = vmatpush1.msra.mxu0 %v2756
  %3240 = vmatprep.subr.mxu0 0.0
  %3241 = vmatpush1.msra.mxu0 %v2757
  %3242 = vmatprep.subr.mxu0 0.0
  %3243 = vmatpush1.msra.mxu0 %v2758
  %3244 = vmatprep.subr.mxu0 0.0
  %3245 = vmatpush1.msra.mxu0 %v2759
  %3246 = vmatprep.subr.mxu0 0.0
  %3247 = vmatpush1.msra.mxu0 %v2760
  %3248 = vmatprep.subr.mxu0 0.0
  %3249 = vmatpush1.msra.mxu0 %v2761
  %3250 = vmatprep.subr.mxu0 0.0
  %3251 = vmatpush1.msra.mxu0 %v2762
  %3252 = vmatprep.subr.mxu0 0.0
  %3253 = vmatpush1.msra.mxu0 %v2763
  %3254 = vmatprep.subr.mxu0 0.0
  %3255 = vmatpush1.msra.mxu0 %v2764
  %3256 = vmatprep.subr.mxu0 0.0
  %3257 = vmatpush1.msra.mxu0 %v2765
  %3258 = vmatprep.subr.mxu0 0.0
  %3259 = vmatpush1.msra.mxu0 %v2766
  %3260 = vmatprep.mubr.f32.mxu0 %v2652
  %3261 = vmatmul.mubr.f32.gmra.mrb[0].mxu0 %v2651
  %v3262 = vpop.f32.mrb[0].mxu0
  %v3263 = vadd.f32 %v3193, %v3262
  %v3264 = vpop.f32.mrb[0].mxu0
  %3265 = vdwg.mxu0
  %3266 = vmatprep.subr.mxu0 0.0
  %3267 = vmatpush1.msra.mxu0 %v2767
  %3268 = vmatprep.subr.mxu0 0.0
  %3269 = vmatpush1.msra.mxu0 %v2768
  %3270 = vmatprep.subr.mxu0 0.0
  %3271 = vmatpush1.msra.mxu0 %v2769
  %3272 = vmatprep.subr.mxu0 0.0
  %3273 = vmatpush1.msra.mxu0 %v2770
  %3274 = vmatprep.subr.mxu0 0.0
  %3275 = vmatpush1.msra.mxu0 %v2771
  %3276 = vmatprep.subr.mxu0 0.0
  %3277 = vmatpush1.msra.mxu0 %v2772
  %3278 = vmatprep.subr.mxu0 0.0
  %3279 = vmatpush1.msra.mxu0 %v2773
  %3280 = vmatprep.subr.mxu0 0.0
  %3281 = vmatpush1.msra.mxu0 %v2774
  %3282 = vmatprep.subr.mxu0 0.0
  %3283 = vmatpush1.msra.mxu0 %v2775
  %3284 = vmatprep.subr.mxu0 0.0
  %3285 = vmatpush1.msra.mxu0 %v2776
  %3286 = vmatprep.subr.mxu0 0.0
  %3287 = vmatpush1.msra.mxu0 %v2777
  %3288 = vmatprep.subr.mxu0 0.0
  %3289 = vmatpush1.msra.mxu0 %v2778
  %3290 = vmatprep.subr.mxu0 0.0
  %3291 = vmatpush1.msra.mxu0 %v2779
  %3292 = vmatprep.subr.mxu0 0.0
  %3293 = vmatpush1.msra.mxu0 %v2780
  %3294 = vmatprep.subr.mxu0 0.0
  %3295 = vmatpush1.msra.mxu0 %v2781
  %3296 = vmatprep.subr.mxu0 0.0
  %3297 = vmatpush1.msra.mxu0 %v2782
  %3298 = vmatprep.subr.mxu0 0.0
  %3299 = vmatpush1.msra.mxu0 %v2783
  %3300 = vmatprep.subr.mxu0 0.0
  %3301 = vmatpush1.msra.mxu0 %v2784
  %3302 = vmatprep.subr.mxu0 0.0
  %3303 = vmatpush1.msra.mxu0 %v2785
  %3304 = vmatprep.subr.mxu0 0.0
  %3305 = vmatpush1.msra.mxu0 %v2786
  %3306 = vmatprep.subr.mxu0 0.0
  %3307 = vmatpush1.msra.mxu0 %v2787
  %3308 = vmatprep.subr.mxu0 0.0
  %3309 = vmatpush1.msra.mxu0 %v2788
  %3310 = vmatprep.subr.mxu0 0.0
  %3311 = vmatpush1.msra.mxu0 %v2789
  %3312 = vmatprep.subr.mxu0 0.0
  %3313 = vmatpush1.msra.mxu0 %v2790
  %3314 = vmatprep.subr.mxu0 0.0
  %3315 = vmatpush1.msra.mxu0 %v2791
  %3316 = vmatprep.subr.mxu0 0.0
  %3317 = vmatpush1.msra.mxu0 %v2792
  %3318 = vmatprep.subr.mxu0 0.0
  %3319 = vmatpush1.msra.mxu0 %v2793
  %3320 = vmatprep.subr.mxu0 0.0
  %3321 = vmatpush1.msra.mxu0 %v2794
  %3322 = vmatprep.subr.mxu0 0.0
  %3323 = vmatpush1.msra.mxu0 %v2795
  %3324 = vmatprep.subr.mxu0 0.0
  %3325 = vmatpush1.msra.mxu0 %v2796
  %3326 = vmatprep.subr.mxu0 0.0
  %3327 = vmatpush1.msra.mxu0 %v2797
  %3328 = vmatprep.subr.mxu0 0.0
  %3329 = vmatpush1.msra.mxu0 %v2798
  %3330 = vmatprep.mubr.f32.mxu0 %v2654
  %3331 = vmatmul.mubr.f32.gmra.mrb[0].mxu0 %v2653
  %v3332 = vpop.f32.mrb[0].mxu0
  %v3333 = vadd.f32 %v3263, %v3332
  %v3334 = vpop.f32.mrb[0].mxu0
  %3335 = vdwg.mxu0
  %3336 = vmatprep.subr.mxu0 0.0
  %3337 = vmatpush1.msra.mxu0 %v2799
  %3338 = vmatprep.subr.mxu0 0.0
  %3339 = vmatpush1.msra.mxu0 %v2800
  %3340 = vmatprep.subr.mxu0 0.0
  %3341 = vmatpush1.msra.mxu0 %v2801
  %3342 = vmatprep.subr.mxu0 0.0
  %3343 = vmatpush1.msra.mxu0 %v2802
  %3344 = vmatprep.subr.mxu0 0.0
  %3345 = vmatpush1.msra.mxu0 %v2803
  %3346 = vmatprep.subr.mxu0 0.0
  %3347 = vmatpush1.msra.mxu0 %v2804
  %3348 = vmatprep.subr.mxu0 0.0
  %3349 = vmatpush1.msra.mxu0 %v2805
  %3350 = vmatprep.subr.mxu0 0.0
  %3351 = vmatpush1.msra.mxu0 %v2806
  %3352 = vmatprep.subr.mxu0 0.0
  %3353 = vmatpush1.msra.mxu0 %v2807
  %3354 = vmatprep.subr.mxu0 0.0
  %3355 = vmatpush1.msra.mxu0 %v2808
  %3356 = vmatprep.subr.mxu0 0.0
  %3357 = vmatpush1.msra.mxu0 %v2809
  %3358 = vmatprep.subr.mxu0 0.0
  %3359 = vmatpush1.msra.mxu0 %v2810
  %3360 = vmatprep.subr.mxu0 0.0
  %3361 = vmatpush1.msra.mxu0 %v2811
  %3362 = vmatprep.subr.mxu0 0.0
  %3363 = vmatpush1.msra.mxu0 %v2812
  %3364 = vmatprep.subr.mxu0 0.0
  %3365 = vmatpush1.msra.mxu0 %v2813
  %3366 = vmatprep.subr.mxu0 0.0
  %3367 = vmatpush1.msra.mxu0 %v2814
  %3368 = vmatprep.subr.mxu0 0.0
  %3369 = vmatpush1.msra.mxu0 %v2815
  %3370 = vmatprep.subr.mxu0 0.0
  %3371 = vmatpush1.msra.mxu0 %v2816
  %3372 = vmatprep.subr.mxu0 0.0
  %3373 = vmatpush1.msra.mxu0 %v2817
  %3374 = vmatprep.subr.mxu0 0.0
  %3375 = vmatpush1.msra.mxu0 %v2818
  %3376 = vmatprep.subr.mxu0 0.0
  %3377 = vmatpush1.msra.mxu0 %v2819
  %3378 = vmatprep.subr.mxu0 0.0
  %3379 = vmatpush1.msra.mxu0 %v2820
  %3380 = vmatprep.subr.mxu0 0.0
  %3381 = vmatpush1.msra.mxu0 %v2821
  %3382 = vmatprep.subr.mxu0 0.0
  %3383 = vmatpush1.msra.mxu0 %v2822
  %3384 = vmatprep.subr.mxu0 0.0
  %3385 = vmatpush1.msra.mxu0 %v2823
  %3386 = vmatprep.subr.mxu0 0.0
  %3387 = vmatpush1.msra.mxu0 %v2824
  %3388 = vmatprep.subr.mxu0 0.0
  %3389 = vmatpush1.msra.mxu0 %v2825
  %3390 = vmatprep.subr.mxu0 0.0
  %3391 = vmatpush1.msra.mxu0 %v2826
  %3392 = vmatprep.subr.mxu0 0.0
  %3393 = vmatpush1.msra.mxu0 %v2827
  %3394 = vmatprep.subr.mxu0 0.0
  %3395 = vmatpush1.msra.mxu0 %v2828
  %3396 = vmatprep.subr.mxu0 0.0
  %3397 = vmatpush1.msra.mxu0 %v2829
  %3398 = vmatprep.subr.mxu0 0.0
  %3399 = vmatpush1.msra.mxu0 %v2830
  %3400 = vmatprep.mubr.f32.mxu0 %v2656
  %3401 = vmatmul.mubr.f32.gmra.mrb[0].mxu0 %v2655
  %v3402 = vpop.f32.mrb[0].mxu0
  %v3403 = vadd.f32 %v3333, %v3402
  %v3404 = vpop.f32.mrb[0].mxu0
  %3405 = vdwg.mxu0
  %3406 = vmatprep.subr.mxu0 0.0
  %3407 = vmatpush1.msra.mxu0 %v2831
  %3408 = vmatprep.subr.mxu0 0.0
  %3409 = vmatpush1.msra.mxu0 %v2832
  %3410 = vmatprep.subr.mxu0 0.0
  %3411 = vmatpush1.msra.mxu0 %v2833
  %3412 = vmatprep.subr.mxu0 0.0
  %3413 = vmatpush1.msra.mxu0 %v2834
  %3414 = vmatprep.subr.mxu0 0.0
  %3415 = vmatpush1.msra.mxu0 %v2835
  %3416 = vmatprep.subr.mxu0 0.0
  %3417 = vmatpush1.msra.mxu0 %v2836
  %3418 = vmatprep.subr.mxu0 0.0
  %3419 = vmatpush1.msra.mxu0 %v2837
  %3420 = vmatprep.subr.mxu0 0.0
  %3421 = vmatpush1.msra.mxu0 %v2838
  %3422 = vmatprep.subr.mxu0 0.0
  %3423 = vmatpush1.msra.mxu0 %v2839
  %3424 = vmatprep.subr.mxu0 0.0
  %3425 = vmatpush1.msra.mxu0 %v2840
  %3426 = vmatprep.subr.mxu0 0.0
  %3427 = vmatpush1.msra.mxu0 %v2841
  %3428 = vmatprep.subr.mxu0 0.0
  %3429 = vmatpush1.msra.mxu0 %v2842
  %3430 = vmatprep.subr.mxu0 0.0
  %3431 = vmatpush1.msra.mxu0 %v2843
  %3432 = vmatprep.subr.mxu0 0.0
  %3433 = vmatpush1.msra.mxu0 %v2844
  %3434 = vmatprep.subr.mxu0 0.0
  %3435 = vmatpush1.msra.mxu0 %v2845
  %3436 = vmatprep.subr.mxu0 0.0
  %3437 = vmatpush1.msra.mxu0 %v2846
  %3438 = vmatprep.subr.mxu0 0.0
  %3439 = vmatpush1.msra.mxu0 %v2847
  %3440 = vmatprep.subr.mxu0 0.0
  %3441 = vmatpush1.msra.mxu0 %v2848
  %3442 = vmatprep.subr.mxu0 0.0
  %3443 = vmatpush1.msra.mxu0 %v2849
  %3444 = vmatprep.subr.mxu0 0.0
  %3445 = vmatpush1.msra.mxu0 %v2850
  %3446 = vmatprep.subr.mxu0 0.0
  %3447 = vmatpush1.msra.mxu0 %v2851
  %3448 = vmatprep.subr.mxu0 0.0
  %3449 = vmatpush1.msra.mxu0 %v2852
  %3450 = vmatprep.subr.mxu0 0.0
  %3451 = vmatpush1.msra.mxu0 %v2853
  %3452 = vmatprep.subr.mxu0 0.0
  %3453 = vmatpush1.msra.mxu0 %v2854
  %3454 = vmatprep.subr.mxu0 0.0
  %3455 = vmatpush1.msra.mxu0 %v2855
  %3456 = vmatprep.subr.mxu0 0.0
  %3457 = vmatpush1.msra.mxu0 %v2856
  %3458 = vmatprep.subr.mxu0 0.0
  %3459 = vmatpush1.msra.mxu0 %v2857
  %3460 = vmatprep.subr.mxu0 0.0
  %3461 = vmatpush1.msra.mxu0 %v2858
  %3462 = vmatprep.subr.mxu0 0.0
  %3463 = vmatpush1.msra.mxu0 %v2859
  %3464 = vmatprep.subr.mxu0 0.0
  %3465 = vmatpush1.msra.mxu0 %v2860
  %3466 = vmatprep.subr.mxu0 0.0
  %3467 = vmatpush1.msra.mxu0 %v2861
  %3468 = vmatprep.subr.mxu0 0.0
  %3469 = vmatpush1.msra.mxu0 %v2862
  %3470 = vmatprep.mubr.f32.mxu0 %v2658
  %3471 = vmatmul.mubr.f32.gmra.mrb[0].mxu0 %v2657
  %v3472 = vpop.f32.mrb[0].mxu0
  %v3473 = vadd.f32 %v3403, %v3472
  %v3474 = vpop.f32.mrb[0].mxu0
  %3475 = vdwg.mxu0
  %3476 = vmatprep.subr.mxu0 0.0
  %3477 = vmatpush1.msra.mxu0 %v2863
  %3478 = vmatprep.subr.mxu0 0.0
  %3479 = vmatpush1.msra.mxu0 %v2864
  %3480 = vmatprep.subr.mxu0 0.0
  %3481 = vmatpush1.msra.mxu0 %v2865
  %3482 = vmatprep.subr.mxu0 0.0
  %3483 = vmatpush1.msra.mxu0 %v2866
  %3484 = vmatprep.subr.mxu0 0.0
  %3485 = vmatpush1.msra.mxu0 %v2867
  %3486 = vmatprep.subr.mxu0 0.0
  %3487 = vmatpush1.msra.mxu0 %v2868
  %3488 = vmatprep.subr.mxu0 0.0
  %3489 = vmatpush1.msra.mxu0 %v2869
  %3490 = vmatprep.subr.mxu0 0.0
  %3491 = vmatpush1.msra.mxu0 %v2870
  %3492 = vmatprep.subr.mxu0 0.0
  %3493 = vmatpush1.msra.mxu0 %v2871
  %3494 = vmatprep.subr.mxu0 0.0
  %3495 = vmatpush1.msra.mxu0 %v2872
  %3496 = vmatprep.subr.mxu0 0.0
  %3497 = vmatpush1.msra.mxu0 %v2873
  %3498 = vmatprep.subr.mxu0 0.0
  %3499 = vmatpush1.msra.mxu0 %v2874
  %3500 = vmatprep.subr.mxu0 0.0
  %3501 = vmatpush1.msra.mxu0 %v2875
  %3502 = vmatprep.subr.mxu0 0.0
  %3503 = vmatpush1.msra.mxu0 %v2876
  %3504 = vmatprep.subr.mxu0 0.0
  %3505 = vmatpush1.msra.mxu0 %v2877
  %3506 = vmatprep.subr.mxu0 0.0
  %3507 = vmatpush1.msra.mxu0 %v2878
  %3508 = vmatprep.subr.mxu0 0.0
  %3509 = vmatpush1.msra.mxu0 %v2879
  %3510 = vmatprep.subr.mxu0 0.0
  %3511 = vmatpush1.msra.mxu0 %v2880
  %3512 = vmatprep.subr.mxu0 0.0
  %3513 = vmatpush1.msra.mxu0 %v2881
  %3514 = vmatprep.subr.mxu0 0.0
  %3515 = vmatpush1.msra.mxu0 %v2882
  %3516 = vmatprep.subr.mxu0 0.0
  %3517 = vmatpush1.msra.mxu0 %v2883
  %3518 = vmatprep.subr.mxu0 0.0
  %3519 = vmatpush1.msra.mxu0 %v2884
  %3520 = vmatprep.subr.mxu0 0.0
  %3521 = vmatpush1.msra.mxu0 %v2885
  %3522 = vmatprep.subr.mxu0 0.0
  %3523 = vmatpush1.msra.mxu0 %v2886
  %3524 = vmatprep.subr.mxu0 0.0
  %3525 = vmatpush1.msra.mxu0 %v2887
  %3526 = vmatprep.subr.mxu0 0.0
  %3527 = vmatpush1.msra.mxu0 %v2888
  %3528 = vmatprep.subr.mxu0 0.0
  %3529 = vmatpush1.msra.mxu0 %v2889
  %3530 = vmatprep.subr.mxu0 0.0
  %3531 = vmatpush1.msra.mxu0 %v2890
  %3532 = vmatprep.subr.mxu0 0.0
  %3533 = vmatpush1.msra.mxu0 %v2891
  %3534 = vmatprep.subr.mxu0 0.0
  %3535 = vmatpush1.msra.mxu0 %v2892
  %3536 = vmatprep.subr.mxu0 0.0
  %3537 = vmatpush1.msra.mxu0 %v2893
  %3538 = vmatprep.subr.mxu0 0.0
  %3539 = vmatpush1.msra.mxu0 %v2894
  %3540 = vmatprep.mubr.f32.mxu0 %v2660
  %3541 = vmatmul.mubr.f32.gmra.mrb[0].mxu0 %v2659
  %v3542 = vpop.f32.mrb[0].mxu0
  %v3543 = vadd.f32 %v3473, %v3542
  %v3544 = vpop.f32.mrb[0].mxu0
  %3545 = vdwg.mxu0
  %3546 = vmatprep.subr.mxu0 0.0
  %3547 = vmatpush1.msra.mxu0 %v2895
  %3548 = vmatprep.subr.mxu0 0.0
  %3549 = vmatpush1.msra.mxu0 %v2896
  %3550 = vmatprep.subr.mxu0 0.0
  %3551 = vmatpush1.msra.mxu0 %v2897
  %3552 = vmatprep.subr.mxu0 0.0
  %3553 = vmatpush1.msra.mxu0 %v2898
  %3554 = vmatprep.subr.mxu0 0.0
  %3555 = vmatpush1.msra.mxu0 %v2899
  %3556 = vmatprep.subr.mxu0 0.0
  %3557 = vmatpush1.msra.mxu0 %v2900
  %3558 = vmatprep.subr.mxu0 0.0
  %3559 = vmatpush1.msra.mxu0 %v2901
  %3560 = vmatprep.subr.mxu0 0.0
  %3561 = vmatpush1.msra.mxu0 %v2902
  %3562 = vmatprep.subr.mxu0 0.0
  %3563 = vmatpush1.msra.mxu0 %v2903
  %3564 = vmatprep.subr.mxu0 0.0
  %3565 = vmatpush1.msra.mxu0 %v2904
  %3566 = vmatprep.subr.mxu0 0.0
  %3567 = vmatpush1.msra.mxu0 %v2905
  %3568 = vmatprep.subr.mxu0 0.0
  %3569 = vmatpush1.msra.mxu0 %v2906
  %3570 = vmatprep.subr.mxu0 0.0
  %3571 = vmatpush1.msra.mxu0 %v2907
  %3572 = vmatprep.subr.mxu0 0.0
  %3573 = vmatpush1.msra.mxu0 %v2908
  %3574 = vmatprep.subr.mxu0 0.0
  %3575 = vmatpush1.msra.mxu0 %v2909
  %3576 = vmatprep.subr.mxu0 0.0
  %3577 = vmatpush1.msra.mxu0 %v2910
  %3578 = vmatprep.subr.mxu0 0.0
  %3579 = vmatpush1.msra.mxu0 %v2911
  %3580 = vmatprep.subr.mxu0 0.0
  %3581 = vmatpush1.msra.mxu0 %v2912
  %3582 = vmatprep.subr.mxu0 0.0
  %3583 = vmatpush1.msra.mxu0 %v2913
  %3584 = vmatprep.subr.mxu0 0.0
  %3585 = vmatpush1.msra.mxu0 %v2914
  %3586 = vmatprep.subr.mxu0 0.0
  %3587 = vmatpush1.msra.mxu0 %v2915
  %3588 = vmatprep.subr.mxu0 0.0
  %3589 = vmatpush1.msra.mxu0 %v2916
  %3590 = vmatprep.subr.mxu0 0.0
  %3591 = vmatpush1.msra.mxu0 %v2917
  %3592 = vmatprep.subr.mxu0 0.0
  %3593 = vmatpush1.msra.mxu0 %v2918
  %3594 = vmatprep.subr.mxu0 0.0
  %3595 = vmatpush1.msra.mxu0 %v2919
  %3596 = vmatprep.subr.mxu0 0.0
  %3597 = vmatpush1.msra.mxu0 %v2920
  %3598 = vmatprep.subr.mxu0 0.0
  %3599 = vmatpush1.msra.mxu0 %v2921
  %3600 = vmatprep.subr.mxu0 0.0
  %3601 = vmatpush1.msra.mxu0 %v2922
  %3602 = vmatprep.subr.mxu0 0.0
  %3603 = vmatpush1.msra.mxu0 %v2923
  %3604 = vmatprep.subr.mxu0 0.0
  %3605 = vmatpush1.msra.mxu0 %v2924
  %3606 = vmatprep.subr.mxu0 0.0
  %3607 = vmatpush1.msra.mxu0 %v2925
  %3608 = vmatprep.subr.mxu0 0.0
  %3609 = vmatpush1.msra.mxu0 %v2926
  %3610 = vmatprep.mubr.f32.mxu0 %v2662
  %3611 = vmatmul.mubr.f32.gmra.mrb[0].mxu0 %v2661
  %v3612 = vpop.f32.mrb[0].mxu0
  %v3613 = vadd.f32 %v3543, %v3612
  %v3614 = vpop.f32.mrb[0].mxu0
  %3615 = vdwg.mxu0
  %3616 = vmatprep.subr.mxu0 0.0
  %3617 = vmatpush1.msra.mxu0 %v2927
  %3618 = vmatprep.subr.mxu0 0.0
  %3619 = vmatpush1.msra.mxu0 %v2928
  %3620 = vmatprep.subr.mxu0 0.0
  %3621 = vmatpush1.msra.mxu0 %v2929
  %3622 = vmatprep.subr.mxu0 0.0
  %3623 = vmatpush1.msra.mxu0 %v2930
  %3624 = vmatprep.subr.mxu0 0.0
  %3625 = vmatpush1.msra.mxu0 %v2931
  %3626 = vmatprep.subr.mxu0 0.0
  %3627 = vmatpush1.msra.mxu0 %v2932
  %3628 = vmatprep.subr.mxu0 0.0
  %3629 = vmatpush1.msra.mxu0 %v2933
  %3630 = vmatprep.subr.mxu0 0.0
  %3631 = vmatpush1.msra.mxu0 %v2934
  %3632 = vmatprep.subr.mxu0 0.0
  %3633 = vmatpush1.msra.mxu0 %v2935
  %3634 = vmatprep.subr.mxu0 0.0
  %3635 = vmatpush1.msra.mxu0 %v2936
  %3636 = vmatprep.subr.mxu0 0.0
  %3637 = vmatpush1.msra.mxu0 %v2937
  %3638 = vmatprep.subr.mxu0 0.0
  %3639 = vmatpush1.msra.mxu0 %v2938
  %3640 = vmatprep.subr.mxu0 0.0
  %3641 = vmatpush1.msra.mxu0 %v2939
  %3642 = vmatprep.subr.mxu0 0.0
  %3643 = vmatpush1.msra.mxu0 %v2940
  %3644 = vmatprep.subr.mxu0 0.0
  %3645 = vmatpush1.msra.mxu0 %v2941
  %3646 = vmatprep.subr.mxu0 0.0
  %3647 = vmatpush1.msra.mxu0 %v2942
  %3648 = vmatprep.subr.mxu0 0.0
  %3649 = vmatpush1.msra.mxu0 %v2943
  %3650 = vmatprep.subr.mxu0 0.0
  %3651 = vmatpush1.msra.mxu0 %v2944
  %3652 = vmatprep.subr.mxu0 0.0
  %3653 = vmatpush1.msra.mxu0 %v2945
  %3654 = vmatprep.subr.mxu0 0.0
  %3655 = vmatpush1.msra.mxu0 %v2946
  %3656 = vmatprep.subr.mxu0 0.0
  %3657 = vmatpush1.msra.mxu0 %v2947
  %3658 = vmatprep.subr.mxu0 0.0
  %3659 = vmatpush1.msra.mxu0 %v2948
  %3660 = vmatprep.subr.mxu0 0.0
  %3661 = vmatpush1.msra.mxu0 %v2949
  %3662 = vmatprep.subr.mxu0 0.0
  %3663 = vmatpush1.msra.mxu0 %v2950
  %3664 = vmatprep.subr.mxu0 0.0
  %3665 = vmatpush1.msra.mxu0 %v2951
  %3666 = vmatprep.subr.mxu0 0.0
  %3667 = vmatpush1.msra.mxu0 %v2952
  %3668 = vmatprep.subr.mxu0 0.0
  %3669 = vmatpush1.msra.mxu0 %v2953
  %3670 = vmatprep.subr.mxu0 0.0
  %3671 = vmatpush1.msra.mxu0 %v2954
  %3672 = vmatprep.subr.mxu0 0.0
  %3673 = vmatpush1.msra.mxu0 %v2955
  %3674 = vmatprep.subr.mxu0 0.0
  %3675 = vmatpush1.msra.mxu0 %v2956
  %3676 = vmatprep.subr.mxu0 0.0
  %3677 = vmatpush1.msra.mxu0 %v2957
  %3678 = vmatprep.subr.mxu0 0.0
  %3679 = vmatpush1.msra.mxu0 %v2958
  %3680 = vmatprep.mubr.f32.mxu0 %v2664
  %3681 = vmatmul.mubr.f32.gmra.mrb[0].mxu0 %v2663
  %v3682 = vpop.f32.mrb[0].mxu0
  %v3683 = vadd.f32 %v3613, %v3682
  %v3684 = vpop.f32.mrb[0].mxu0
  %3685 = vdwg.mxu0
  %3686 = vmatprep.subr.mxu0 0.0
  %3687 = vmatpush1.msra.mxu0 %v2959
  %3688 = vmatprep.subr.mxu0 0.0
  %3689 = vmatpush1.msra.mxu0 %v2960
  %3690 = vmatprep.subr.mxu0 0.0
  %3691 = vmatpush1.msra.mxu0 %v2961
  %3692 = vmatprep.subr.mxu0 0.0
  %3693 = vmatpush1.msra.mxu0 %v2962
  %3694 = vmatprep.subr.mxu0 0.0
  %3695 = vmatpush1.msra.mxu0 %v2963
  %3696 = vmatprep.subr.mxu0 0.0
  %3697 = vmatpush1.msra.mxu0 %v2964
  %3698 = vmatprep.subr.mxu0 0.0
  %3699 = vmatpush1.msra.mxu0 %v2965
  %3700 = vmatprep.subr.mxu0 0.0
  %3701 = vmatpush1.msra.mxu0 %v2966
  %3702 = vmatprep.subr.mxu0 0.0
  %3703 = vmatpush1.msra.mxu0 %v2967
  %3704 = vmatprep.subr.mxu0 0.0
  %3705 = vmatpush1.msra.mxu0 %v2968
  %3706 = vmatprep.subr.mxu0 0.0
  %3707 = vmatpush1.msra.mxu0 %v2969
  %3708 = vmatprep.subr.mxu0 0.0
  %3709 = vmatpush1.msra.mxu0 %v2970
  %3710 = vmatprep.subr.mxu0 0.0
  %3711 = vmatpush1.msra.mxu0 %v2971
  %3712 = vmatprep.subr.mxu0 0.0
  %3713 = vmatpush1.msra.mxu0 %v2972
  %3714 = vmatprep.subr.mxu0 0.0
  %3715 = vmatpush1.msra.mxu0 %v2973
  %3716 = vmatprep.subr.mxu0 0.0
  %3717 = vmatpush1.msra.mxu0 %v2974
  %3718 = vmatprep.subr.mxu0 0.0
  %3719 = vmatpush1.msra.mxu0 %v2975
  %3720 = vmatprep.subr.mxu0 0.0
  %3721 = vmatpush1.msra.mxu0 %v2976
  %3722 = vmatprep.subr.mxu0 0.0
  %3723 = vmatpush1.msra.mxu0 %v2977
  %3724 = vmatprep.subr.mxu0 0.0
  %3725 = vmatpush1.msra.mxu0 %v2978
  %3726 = vmatprep.subr.mxu0 0.0
  %3727 = vmatpush1.msra.mxu0 %v2979
  %3728 = vmatprep.subr.mxu0 0.0
  %3729 = vmatpush1.msra.mxu0 %v2980
  %3730 = vmatprep.subr.mxu0 0.0
  %3731 = vmatpush1.msra.mxu0 %v2981
  %3732 = vmatprep.subr.mxu0 0.0
  %3733 = vmatpush1.msra.mxu0 %v2982
  %3734 = vmatprep.subr.mxu0 0.0
  %3735 = vmatpush1.msra.mxu0 %v2983
  %3736 = vmatprep.subr.mxu0 0.0
  %3737 = vmatpush1.msra.mxu0 %v2984
  %3738 = vmatprep.subr.mxu0 0.0
  %3739 = vmatpush1.msra.mxu0 %v2985
  %3740 = vmatprep.subr.mxu0 0.0
  %3741 = vmatpush1.msra.mxu0 %v2986
  %3742 = vmatprep.subr.mxu0 0.0
  %3743 = vmatpush1.msra.mxu0 %v2987
  %3744 = vmatprep.subr.mxu0 0.0
  %3745 = vmatpush1.msra.mxu0 %v2988
  %3746 = vmatprep.subr.mxu0 0.0
  %3747 = vmatpush1.msra.mxu0 %v2989
  %3748 = vmatprep.subr.mxu0 0.0
  %3749 = vmatpush1.msra.mxu0 %v2990
  %3750 = vmatprep.mubr.f32.mxu0 %v2666
  %3751 = vmatmul.mubr.f32.gmra.mrb[0].mxu0 %v2665
  %v3752 = vpop.f32.mrb[0].mxu0
  %v3753 = vadd.f32 %v3683, %v3752
  %v3754 = vpop.f32.mrb[0].mxu0
  %3755 = vdwg.mxu0
  %3756 = vmatprep.subr.mxu0 0.0
  %3757 = vmatpush1.msra.mxu0 %v2991
  %3758 = vmatprep.subr.mxu0 0.0
  %3759 = vmatpush1.msra.mxu0 %v2992
  %3760 = vmatprep.subr.mxu0 0.0
  %3761 = vmatpush1.msra.mxu0 %v2993
  %3762 = vmatprep.subr.mxu0 0.0
  %3763 = vmatpush1.msra.mxu0 %v2994
  %3764 = vmatprep.subr.mxu0 0.0
  %3765 = vmatpush1.msra.mxu0 %v2995
  %3766 = vmatprep.subr.mxu0 0.0
  %3767 = vmatpush1.msra.mxu0 %v2996
  %3768 = vmatprep.subr.mxu0 0.0
  %3769 = vmatpush1.msra.mxu0 %v2997
  %3770 = vmatprep.subr.mxu0 0.0
  %3771 = vmatpush1.msra.mxu0 %v2998
  %3772 = vmatprep.subr.mxu0 0.0
  %3773 = vmatpush1.msra.mxu0 %v2999
  %3774 = vmatprep.subr.mxu0 0.0
  %3775 = vmatpush1.msra.mxu0 %v3000
  %3776 = vmatprep.subr.mxu0 0.0
  %3777 = vmatpush1.msra.mxu0 %v3001
  %3778 = vmatprep.subr.mxu0 0.0
  %3779 = vmatpush1.msra.mxu0 %v3002
  %3780 = vmatprep.subr.mxu0 0.0
  %3781 = vmatpush1.msra.mxu0 %v3003
  %3782 = vmatprep.subr.mxu0 0.0
  %3783 = vmatpush1.msra.mxu0 %v3004
  %3784 = vmatprep.subr.mxu0 0.0
  %3785 = vmatpush1.msra.mxu0 %v3005
  %3786 = vmatprep.subr.mxu0 0.0
  %3787 = vmatpush1.msra.mxu0 %v3006
  %3788 = vmatprep.subr.mxu0 0.0
  %3789 = vmatpush1.msra.mxu0 %v3007
  %3790 = vmatprep.subr.mxu0 0.0
  %3791 = vmatpush1.msra.mxu0 %v3008
  %3792 = vmatprep.subr.mxu0 0.0
  %3793 = vmatpush1.msra.mxu0 %v3009
  %3794 = vmatprep.subr.mxu0 0.0
  %3795 = vmatpush1.msra.mxu0 %v3010
  %3796 = vmatprep.subr.mxu0 0.0
  %3797 = vmatpush1.msra.mxu0 %v3011
  %3798 = vmatprep.subr.mxu0 0.0
  %3799 = vmatpush1.msra.mxu0 %v3012
  %3800 = vmatprep.subr.mxu0 0.0
  %3801 = vmatpush1.msra.mxu0 %v3013
  %3802 = vmatprep.subr.mxu0 0.0
  %3803 = vmatpush1.msra.mxu0 %v3014
  %3804 = vmatprep.subr.mxu0 0.0
  %3805 = vmatpush1.msra.mxu0 %v3015
  %3806 = vmatprep.subr.mxu0 0.0
  %3807 = vmatpush1.msra.mxu0 %v3016
  %3808 = vmatprep.subr.mxu0 0.0
  %3809 = vmatpush1.msra.mxu0 %v3017
  %3810 = vmatprep.subr.mxu0 0.0
  %3811 = vmatpush1.msra.mxu0 %v3018
  %3812 = vmatprep.subr.mxu0 0.0
  %3813 = vmatpush1.msra.mxu0 %v3019
  %3814 = vmatprep.subr.mxu0 0.0
  %3815 = vmatpush1.msra.mxu0 %v3020
  %3816 = vmatprep.subr.mxu0 0.0
  %3817 = vmatpush1.msra.mxu0 %v3021
  %3818 = vmatprep.subr.mxu0 0.0
  %3819 = vmatpush1.msra.mxu0 %v3022
  %3820 = vmatprep.mubr.f32.mxu0 %v2668
  %3821 = vmatmul.mubr.f32.gmra.mrb[0].mxu0 %v2667
  %v3822 = vpop.f32.mrb[0].mxu0
  %v3823 = vadd.f32 %v3753, %v3822
  %v3824 = vpop.f32.mrb[0].mxu0
  %3825 = vdwg.mxu0
  %3826 = vmatprep.subr.mxu0 0.0
  %3827 = vmatpush1.msra.mxu0 %v3023
  %3828 = vmatprep.subr.mxu0 0.0
  %3829 = vmatpush1.msra.mxu0 %v3024
  %3830 = vmatprep.subr.mxu0 0.0
  %3831 = vmatpush1.msra.mxu0 %v3025
  %3832 = vmatprep.subr.mxu0 0.0
  %3833 = vmatpush1.msra.mxu0 %v3026
  %3834 = vmatprep.subr.mxu0 0.0
  %3835 = vmatpush1.msra.mxu0 %v3027
  %3836 = vmatprep.subr.mxu0 0.0
  %3837 = vmatpush1.msra.mxu0 %v3028
  %3838 = vmatprep.subr.mxu0 0.0
  %3839 = vmatpush1.msra.mxu0 %v3029
  %3840 = vmatprep.subr.mxu0 0.0
  %3841 = vmatpush1.msra.mxu0 %v3030
  %3842 = vmatprep.subr.mxu0 0.0
  %3843 = vmatpush1.msra.mxu0 %v3031
  %3844 = vmatprep.subr.mxu0 0.0
  %3845 = vmatpush1.msra.mxu0 %v3032
  %3846 = vmatprep.subr.mxu0 0.0
  %3847 = vmatpush1.msra.mxu0 %v3033
  %3848 = vmatprep.subr.mxu0 0.0
  %3849 = vmatpush1.msra.mxu0 %v3034
  %3850 = vmatprep.subr.mxu0 0.0
  %3851 = vmatpush1.msra.mxu0 %v3035
  %3852 = vmatprep.subr.mxu0 0.0
  %3853 = vmatpush1.msra.mxu0 %v3036
  %3854 = vmatprep.subr.mxu0 0.0
  %3855 = vmatpush1.msra.mxu0 %v3037
  %3856 = vmatprep.subr.mxu0 0.0
  %3857 = vmatpush1.msra.mxu0 %v3038
  %3858 = vmatprep.subr.mxu0 0.0
  %3859 = vmatpush1.msra.mxu0 %v3039
  %3860 = vmatprep.subr.mxu0 0.0
  %3861 = vmatpush1.msra.mxu0 %v3040
  %3862 = vmatprep.subr.mxu0 0.0
  %3863 = vmatpush1.msra.mxu0 %v3041
  %3864 = vmatprep.subr.mxu0 0.0
  %3865 = vmatpush1.msra.mxu0 %v3042
  %3866 = vmatprep.subr.mxu0 0.0
  %3867 = vmatpush1.msra.mxu0 %v3043
  %3868 = vmatprep.subr.mxu0 0.0
  %3869 = vmatpush1.msra.mxu0 %v3044
  %3870 = vmatprep.subr.mxu0 0.0
  %3871 = vmatpush1.msra.mxu0 %v3045
  %3872 = vmatprep.subr.mxu0 0.0
  %3873 = vmatpush1.msra.mxu0 %v3046
  %3874 = vmatprep.subr.mxu0 0.0
  %3875 = vmatpush1.msra.mxu0 %v3047
  %3876 = vmatprep.subr.mxu0 0.0
  %3877 = vmatpush1.msra.mxu0 %v3048
  %3878 = vmatprep.subr.mxu0 0.0
  %3879 = vmatpush1.msra.mxu0 %v3049
  %3880 = vmatprep.subr.mxu0 0.0
  %3881 = vmatpush1.msra.mxu0 %v3050
  %3882 = vmatprep.subr.mxu0 0.0
  %3883 = vmatpush1.msra.mxu0 %v3051
  %3884 = vmatprep.subr.mxu0 0.0
  %3885 = vmatpush1.msra.mxu0 %v3052
  %3886 = vmatprep.subr.mxu0 0.0
  %3887 = vmatpush1.msra.mxu0 %v3053
  %3888 = vmatprep.subr.mxu0 0.0
  %3889 = vmatpush1.msra.mxu0 %v3054
  %3890 = vmatprep.mubr.f32.mxu0 %v2670
  %3891 = vmatmul.mubr.f32.gmra.mrb[0].mxu0 %v2669
  %v3892 = vpop.f32.mrb[0].mxu0
  %v3893 = vadd.f32 %v3823, %v3892
  %v3894 = vpop.f32.mrb[0].mxu0
  %3895 = vdwg.mxu0
  // Predicated region
  $region50: #{mtlstm_forward.1} parent=0 // pred_check
    %p3896 = pneg %p39
  $region51: #{mtlstm_forward.1} parent=0 // pred_check_branch
    %3898 = sbr.rel (%p3896) target = $region53
  $region52: #{mtlstm_forward.1} parent=0 // pred_region
    %3899 = vst [vmem:[#allocation4] sm:$0x1] %v3893
  $region53: #{mtlstm_forward.1} parent=0 // pred_fallthru
    _
  %v3900 = vld [vmem:[#allocation2] sm:$0x1]
  %v3901 = vld [vmem:[#allocation3] sm:$0x1]
  %v3902 = vld [vmem:[#allocation4] sm:$0x1]
  %v3903 = vld [vmem:[%s8] sm:$0xff]
  %v3904 = vld [vmem:[%s8 + $0x8] sm:$0xff]
  %v3905 = vld [vmem:[%s8 + $0x10] sm:$0xff]
  %v3906 = vld [vmem:[%s8 + $0x18] sm:$0xff]
  %v3908 = vsel %vm1144, %v3900, 0
  %3910 = vmatprep.subr.mxu0 0.0
  %3911 = vmatpush1.msra.mxu0 %v3903
  %3912 = vmatprep.subr.mxu0 0.0
  %3913 = vmatpush1.msra.mxu0 %v3904
  %3914 = vmatprep.subr.mxu0 0.0
  %3915 = vmatpush1.msra.mxu0 %v3905
  %3916 = vmatprep.subr.mxu0 0.0
  %3917 = vmatpush1.msra.mxu0 %v3906
  %3918 = vmatprep.subr.mxu0 0.0
  %3919 = vmatpush1.msra.mxu0 0.0
  %3920 = vmatprep.subr.mxu0 0.0
  %3921 = vmatpush1.msra.mxu0 0.0
  %3922 = vmatprep.subr.mxu0 0.0
  %3923 = vmatpush1.msra.mxu0 0.0
  %3924 = vmatprep.subr.mxu0 0.0
  %3925 = vmatpush1.msra.mxu0 0.0
  %3926 = vmatprep.subr.mxu0 0.0
  %3927 = vmatpush1.msra.mxu0 0.0
  %3928 = vmatprep.subr.mxu0 0.0
  %3929 = vmatpush1.msra.mxu0 0.0
  %3930 = vmatprep.subr.mxu0 0.0
  %3931 = vmatpush1.msra.mxu0 0.0
  %3932 = vmatprep.subr.mxu0 0.0
  %3933 = vmatpush1.msra.mxu0 0.0
  %3934 = vmatprep.subr.mxu0 0.0
  %3935 = vmatpush1.msra.mxu0 0.0
  %3936 = vmatprep.subr.mxu0 0.0
  %3937 = vmatpush1.msra.mxu0 0.0
  %3938 = vmatprep.subr.mxu0 0.0
  %3939 = vmatpush1.msra.mxu0 0.0
  %3940 = vmatprep.subr.mxu0 0.0
  %3941 = vmatpush1.msra.mxu0 0.0
  %3942 = vmatprep.subr.mxu0 0.0
  %3943 = vmatpush1.msra.mxu0 0.0
  %3944 = vmatprep.subr.mxu0 0.0
  %3945 = vmatpush1.msra.mxu0 0.0
  %3946 = vmatprep.subr.mxu0 0.0
  %3947 = vmatpush1.msra.mxu0 0.0
  %3948 = vmatprep.subr.mxu0 0.0
  %3949 = vmatpush1.msra.mxu0 0.0
  %3950 = vmatprep.subr.mxu0 0.0
  %3951 = vmatpush1.msra.mxu0 0.0
  %3952 = vmatprep.subr.mxu0 0.0
  %3953 = vmatpush1.msra.mxu0 0.0
  %3954 = vmatprep.subr.mxu0 0.0
  %3955 = vmatpush1.msra.mxu0 0.0
  %3956 = vmatprep.subr.mxu0 0.0
  %3957 = vmatpush1.msra.mxu0 0.0
  %3958 = vmatprep.subr.mxu0 0.0
  %3959 = vmatpush1.msra.mxu0 0.0
  %3960 = vmatprep.subr.mxu0 0.0
  %3961 = vmatpush1.msra.mxu0 0.0
  %3962 = vmatprep.subr.mxu0 0.0
  %3963 = vmatpush1.msra.mxu0 0.0
  %3964 = vmatprep.subr.mxu0 0.0
  %3965 = vmatpush1.msra.mxu0 0.0
  %3966 = vmatprep.subr.mxu0 0.0
  %3967 = vmatpush1.msra.mxu0 0.0
  %3968 = vmatprep.subr.mxu0 0.0
  %3969 = vmatpush1.msra.mxu0 0.0
  %3970 = vmatprep.subr.mxu0 0.0
  %3971 = vmatpush1.msra.mxu0 0.0
  %3972 = vmatprep.subr.mxu0 0.0
  %3973 = vmatpush1.msra.mxu0 0.0
  %3974 = vmatprep.mubr.f32.mxu0 0.0
  %3975 = vmatmul.mubr.f32.gmra.mrb[0].mxu0 %v3908
  %v3976 = vpop.f32.mrb[0].mxu0
  %v3977 = vadd.f32 0.0, %v3976
  %v3978 = vpop.f32.mrb[0].mxu0
  %3979 = vdwg.mxu0
  %v3980 = vadd.f32 %v3902, %v3977
  %v3981 = vxor.u32 %v3980, 2147483648
  %v3982 = vmul.f32 %v3981, 1.442695
  %v3983 = vpow.pop %v3982
  %v3984 = vadd.f32 %v3983, 1.0
  %v3985 = vrcp.pop %v3984
  %v3986 = vmul.f32 1.0, %v3985
  %v3987 = vtanh.pop %v3980
  %v3989 = vlaneseq
  %v3990 = vshrl.u32 %v3989, 7
  %v3991 = vsub.s32 0, %v3990
  %v3992 = vrot.slane %v3901, %v3991
  %3993 = vrot.lane.b32.xlu0 %v3992, 32
  %v3994 = vpop.permute.xlu0 %3993
  %v3996 = vmul.f32 %v3986, %v3994
  %3998 = vrot.lane.b32.xlu0 %v3987, 64
  %v3999 = vpop.permute.xlu0 %3998
  %v4001 = vmul.f32 %v3986, %v3999
  %4003 = vrot.lane.b32.xlu0 %v4001, 32
  %v4004 = vpop.permute.xlu0 %4003
  %v4006 = vadd.f32 %v3996, %v4004
  %v4007 = vtanh.pop %v4006
  %4009 = vrot.lane.b32.xlu0 %v4007, 64
  %v4010 = vpop.permute.xlu0 %4009
  %v4012 = vmul.f32 %v3986, %v4010
  %4014 = vrot.lane.b32.xlu0 %v4006, 96
  %v4015 = vpop.permute.xlu0 %4014
  %vm4017 = vcmask 253952
  %4018 = vst.msk [vmem:[#allocation3] sm:$0x1] %vm4017, %v4015
  %4020 = vrot.lane.b32.xlu0 %v4012, 32
  %v4021 = vpop.permute.xlu0 %4020
  %4023 = vst.msk [vmem:[#allocation2] sm:$0x1] %vm4017, %v4021
  %4024 = vst.msk [vmem:[#allocation5] sm:$0x1] %vm4017, %v4021
  %v4025 = vld [vmem:[#allocation2] sm:$0x1]
  %v4026 = vld [vmem:[#allocation3] sm:$0x1]
  %v4027 = vld [vmem:[#allocation4 + $0x1] sm:$0x1]
  %v4028 = vld [vmem:[%s8] sm:$0xff]
  %v4029 = vld [vmem:[%s8 + $0x8] sm:$0xff]
  %v4030 = vld [vmem:[%s8 + $0x10] sm:$0xff]
  %v4031 = vld [vmem:[%s8 + $0x18] sm:$0xff]
  %v4033 = vsel %vm1144, %v4025, 0
  %4035 = vmatprep.subr.mxu0 0.0
  %4036 = vmatpush1.msra.mxu0 %v4028
  %4037 = vmatprep.subr.mxu0 0.0
  %4038 = vmatpush1.msra.mxu0 %v4029
  %4039 = vmatprep.subr.mxu0 0.0
  %4040 = vmatpush1.msra.mxu0 %v4030
  %4041 = vmatprep.subr.mxu0 0.0
  %4042 = vmatpush1.msra.mxu0 %v4031
  %4043 = vmatprep.subr.mxu0 0.0
  %4044 = vmatpush1.msra.mxu0 0.0
  %4045 = vmatprep.subr.mxu0 0.0
  %4046 = vmatpush1.msra.mxu0 0.0
  %4047 = vmatprep.subr.mxu0 0.0
  %4048 = vmatpush1.msra.mxu0 0.0
  %4049 = vmatprep.subr.mxu0 0.0
  %4050 = vmatpush1.msra.mxu0 0.0
  %4051 = vmatprep.subr.mxu0 0.0
  %4052 = vmatpush1.msra.mxu0 0.0
  %4053 = vmatprep.subr.mxu0 0.0
  %4054 = vmatpush1.msra.mxu0 0.0
  %4055 = vmatprep.subr.mxu0 0.0
  %4056 = vmatpush1.msra.mxu0 0.0
  %4057 = vmatprep.subr.mxu0 0.0
  %4058 = vmatpush1.msra.mxu0 0.0
  %4059 = vmatprep.subr.mxu0 0.0
  %4060 = vmatpush1.msra.mxu0 0.0
  %4061 = vmatprep.subr.mxu0 0.0
  %4062 = vmatpush1.msra.mxu0 0.0
  %4063 = vmatprep.subr.mxu0 0.0
  %4064 = vmatpush1.msra.mxu0 0.0
  %4065 = vmatprep.subr.mxu0 0.0
  %4066 = vmatpush1.msra.mxu0 0.0
  %4067 = vmatprep.subr.mxu0 0.0
  %4068 = vmatpush1.msra.mxu0 0.0
  %4069 = vmatprep.subr.mxu0 0.0
  %4070 = vmatpush1.msra.mxu0 0.0
  %4071 = vmatprep.subr.mxu0 0.0
  %4072 = vmatpush1.msra.mxu0 0.0
  %4073 = vmatprep.subr.mxu0 0.0
  %4074 = vmatpush1.msra.mxu0 0.0
  %4075 = vmatprep.subr.mxu0 0.0
  %4076 = vmatpush1.msra.mxu0 0.0
  %4077 = vmatprep.subr.mxu0 0.0
  %4078 = vmatpush1.msra.mxu0 0.0
  %4079 = vmatprep.subr.mxu0 0.0
  %4080 = vmatpush1.msra.mxu0 0.0
  %4081 = vmatprep.subr.mxu0 0.0
  %4082 = vmatpush1.msra.mxu0 0.0
  %4083 = vmatprep.subr.mxu0 0.0
  %4084 = vmatpush1.msra.mxu0 0.0
  %4085 = vmatprep.subr.mxu0 0.0
  %4086 = vmatpush1.msra.mxu0 0.0
  %4087 = vmatprep.subr.mxu0 0.0
  %4088 = vmatpush1.msra.mxu0 0.0
  %4089 = vmatprep.subr.mxu0 0.0
  %4090 = vmatpush1.msra.mxu0 0.0
  %4091 = vmatprep.subr.mxu0 0.0
  %4092 = vmatpush1.msra.mxu0 0.0
  %4093 = vmatprep.subr.mxu0 0.0
  %4094 = vmatpush1.msra.mxu0 0.0
  %4095 = vmatprep.subr.mxu0 0.0
  %4096 = vmatpush1.msra.mxu0 0.0
  %4097 = vmatprep.subr.mxu0 0.0
  %4098 = vmatpush1.msra.mxu0 0.0
  %4099 = vmatprep.mubr.f32.mxu0 0.0
  %4100 = vmatmul.mubr.f32.gmra.mrb[0].mxu0 %v4033
  %v4101 = vpop.f32.mrb[0].mxu0
  %v4102 = vadd.f32 0.0, %v4101
  %v4103 = vpop.f32.mrb[0].mxu0
  %4104 = vdwg.mxu0
  %v4105 = vadd.f32 %v4027, %v4102
  %v4106 = vxor.u32 %v4105, 2147483648
  %v4107 = vmul.f32 %v4106, 1.442695
  %v4108 = vpow.pop %v4107
  %v4109 = vadd.f32 %v4108, 1.0
  %v4110 = vrcp.pop %v4109
  %v4111 = vmul.f32 1.0, %v4110
  %v4112 = vtanh.pop %v4105
  %v4114 = vlaneseq
  %v4115 = vshrl.u32 %v4114, 7
  %v4116 = vsub.s32 0, %v4115
  %v4117 = vrot.slane %v4026, %v4116
  %4118 = vrot.lane.b32.xlu0 %v4117, 32
  %v4119 = vpop.permute.xlu0 %4118
  %v4121 = vmul.f32 %v4111, %v4119
  %4123 = vrot.lane.b32.xlu0 %v4112, 64
  %v4124 = vpop.permute.xlu0 %4123
  %v4126 = vmul.f32 %v4111, %v4124
  %4128 = vrot.lane.b32.xlu0 %v4126, 32
  %v4129 = vpop.permute.xlu0 %4128
  %v4131 = vadd.f32 %v4121, %v4129
  %v4132 = vtanh.pop %v4131
  %4134 = vrot.lane.b32.xlu0 %v4132, 64
  %v4135 = vpop.permute.xlu0 %4134
  %v4137 = vmul.f32 %v4111, %v4135
  %4139 = vrot.lane.b32.xlu0 %v4131, 96
  %v4140 = vpop.permute.xlu0 %4139
  %4142 = vst.msk [vmem:[#allocation3] sm:$0x1] %vm4017, %v4140
  %4144 = vrot.lane.b32.xlu0 %v4137, 32
  %v4145 = vpop.permute.xlu0 %4144
  %4147 = vst.msk [vmem:[#allocation2] sm:$0x1] %vm4017, %v4145
  %4148 = vst.msk [vmem:[#allocation5 + $0x1] sm:$0x1] %vm4017, %v4145
  %v4149 = vld [vmem:[#allocation2] sm:$0x1]
  %v4150 = vld [vmem:[#allocation3] sm:$0x1]
  %v4151 = vld [vmem:[#allocation4 + $0x2] sm:$0x1]
  %v4152 = vld [vmem:[%s8] sm:$0xff]
  %v4153 = vld [vmem:[%s8 + $0x8] sm:$0xff]
  %v4154 = vld [vmem:[%s8 + $0x10] sm:$0xff]
  %v4155 = vld [vmem:[%s8 + $0x18] sm:$0xff]
  %v4157 = vsel %vm1144, %v4149, 0
  %4159 = vmatprep.subr.mxu0 0.0
  %4160 = vmatpush1.msra.mxu0 %v4152
  %4161 = vmatprep.subr.mxu0 0.0
  %4162 = vmatpush1.msra.mxu0 %v4153
  %4163 = vmatprep.subr.mxu0 0.0
  %4164 = vmatpush1.msra.mxu0 %v4154
  %4165 = vmatprep.subr.mxu0 0.0
  %4166 = vmatpush1.msra.mxu0 %v4155
  %4167 = vmatprep.subr.mxu0 0.0
  %4168 = vmatpush1.msra.mxu0 0.0
  %4169 = vmatprep.subr.mxu0 0.0
  %4170 = vmatpush1.msra.mxu0 0.0
  %4171 = vmatprep.subr.mxu0 0.0
  %4172 = vmatpush1.msra.mxu0 0.0
  %4173 = vmatprep.subr.mxu0 0.0
  %4174 = vmatpush1.msra.mxu0 0.0
  %4175 = vmatprep.subr.mxu0 0.0
  %4176 = vmatpush1.msra.mxu0 0.0
  %4177 = vmatprep.subr.mxu0 0.0
  %4178 = vmatpush1.msra.mxu0 0.0
  %4179 = vmatprep.subr.mxu0 0.0
  %4180 = vmatpush1.msra.mxu0 0.0
  %4181 = vmatprep.subr.mxu0 0.0
  %4182 = vmatpush1.msra.mxu0 0.0
  %4183 = vmatprep.subr.mxu0 0.0
  %4184 = vmatpush1.msra.mxu0 0.0
  %4185 = vmatprep.subr.mxu0 0.0
  %4186 = vmatpush1.msra.mxu0 0.0
  %4187 = vmatprep.subr.mxu0 0.0
  %4188 = vmatpush1.msra.mxu0 0.0
  %4189 = vmatprep.subr.mxu0 0.0
  %4190 = vmatpush1.msra.mxu0 0.0
  %4191 = vmatprep.subr.mxu0 0.0
  %4192 = vmatpush1.msra.mxu0 0.0
  %4193 = vmatprep.subr.mxu0 0.0
  %4194 = vmatpush1.msra.mxu0 0.0
  %4195 = vmatprep.subr.mxu0 0.0
  %4196 = vmatpush1.msra.mxu0 0.0
  %4197 = vmatprep.subr.mxu0 0.0
  %4198 = vmatpush1.msra.mxu0 0.0
  %4199 = vmatprep.subr.mxu0 0.0
  %4200 = vmatpush1.msra.mxu0 0.0
  %4201 = vmatprep.subr.mxu0 0.0
  %4202 = vmatpush1.msra.mxu0 0.0
  %4203 = vmatprep.subr.mxu0 0.0
  %4204 = vmatpush1.msra.mxu0 0.0
  %4205 = vmatprep.subr.mxu0 0.0
  %4206 = vmatpush1.msra.mxu0 0.0
  %4207 = vmatprep.subr.mxu0 0.0
  %4208 = vmatpush1.msra.mxu0 0.0
  %4209 = vmatprep.subr.mxu0 0.0
  %4210 = vmatpush1.msra.mxu0 0.0
  %4211 = vmatprep.subr.mxu0 0.0
  %4212 = vmatpush1.msra.mxu0 0.0
  %4213 = vmatprep.subr.mxu0 0.0
  %4214 = vmatpush1.msra.mxu0 0.0
  %4215 = vmatprep.subr.mxu0 0.0
  %4216 = vmatpush1.msra.mxu0 0.0
  %4217 = vmatprep.subr.mxu0 0.0
  %4218 = vmatpush1.msra.mxu0 0.0
  %4219 = vmatprep.subr.mxu0 0.0
  %4220 = vmatpush1.msra.mxu0 0.0
  %4221 = vmatprep.subr.mxu0 0.0
  %4222 = vmatpush1.msra.mxu0 0.0
  %4223 = vmatprep.mubr.f32.mxu0 0.0
  %4224 = vmatmul.mubr.f32.gmra.mrb[0].mxu0 %v4157
  %v4225 = vpop.f32.mrb[0].mxu0
  %v4226 = vadd.f32 0.0, %v4225
  %v4227 = vpop.f32.mrb[0].mxu0
  %4228 = vdwg.mxu0
  %v4229 = vadd.f32 %v4151, %v4226
  %v4230 = vxor.u32 %v4229, 2147483648
  %v4231 = vmul.f32 %v4230, 1.442695
  %v4232 = vpow.pop %v4231
  %v4233 = vadd.f32 %v4232, 1.0
  %v4234 = vrcp.pop %v4233
  %v4235 = vmul.f32 1.0, %v4234
  %v4236 = vtanh.pop %v4229
  %v4238 = vlaneseq
  %v4239 = vshrl.u32 %v4238, 7
  %v4240 = vsub.s32 0, %v4239
  %v4241 = vrot.slane %v4150, %v4240
  %4242 = vrot.lane.b32.xlu0 %v4241, 32
  %v4243 = vpop.permute.xlu0 %4242
  %v4245 = vmul.f32 %v4235, %v4243
  %4247 = vrot.lane.b32.xlu0 %v4236, 64
  %v4248 = vpop.permute.xlu0 %4247
  %v4250 = vmul.f32 %v4235, %v4248
  %4252 = vrot.lane.b32.xlu0 %v4250, 32
  %v4253 = vpop.permute.xlu0 %4252
  %v4255 = vadd.f32 %v4245, %v4253
  %v4256 = vtanh.pop %v4255
  %4258 = vrot.lane.b32.xlu0 %v4256, 64
  %v4259 = vpop.permute.xlu0 %4258
  %v4261 = vmul.f32 %v4235, %v4259
  %4263 = vrot.lane.b32.xlu0 %v4255, 96
  %v4264 = vpop.permute.xlu0 %4263
  %4266 = vst.msk [vmem:[#allocation3] sm:$0x1] %vm4017, %v4264
  %4268 = vrot.lane.b32.xlu0 %v4261, 32
  %v4269 = vpop.permute.xlu0 %4268
  %4271 = vst.msk [vmem:[#allocation2] sm:$0x1] %vm4017, %v4269
  %4272 = vst.msk [vmem:[#allocation5 + $0x2] sm:$0x1] %vm4017, %v4269
  %v4273 = vld [vmem:[#allocation2] sm:$0x1]
  %v4274 = vld [vmem:[#allocation3] sm:$0x1]
  %v4275 = vld [vmem:[#allocation4 + $0x3] sm:$0x1]
  %v4276 = vld [vmem:[%s8] sm:$0xff]
  %v4277 = vld [vmem:[%s8 + $0x8] sm:$0xff]
  %v4278 = vld [vmem:[%s8 + $0x10] sm:$0xff]
  %v4279 = vld [vmem:[%s8 + $0x18] sm:$0xff]
  %v4281 = vsel %vm1144, %v4273, 0
  %4283 = vmatprep.subr.mxu0 0.0
  %4284 = vmatpush1.msra.mxu0 %v4276
  %4285 = vmatprep.subr.mxu0 0.0
  %4286 = vmatpush1.msra.mxu0 %v4277
  %4287 = vmatprep.subr.mxu0 0.0
  %4288 = vmatpush1.msra.mxu0 %v4278
  %4289 = vmatprep.subr.mxu0 0.0
  %4290 = vmatpush1.msra.mxu0 %v4279
  %4291 = vmatprep.subr.mxu0 0.0
  %4292 = vmatpush1.msra.mxu0 0.0
  %4293 = vmatprep.subr.mxu0 0.0
  %4294 = vmatpush1.msra.mxu0 0.0
  %4295 = vmatprep.subr.mxu0 0.0
  %4296 = vmatpush1.msra.mxu0 0.0
  %4297 = vmatprep.subr.mxu0 0.0
  %4298 = vmatpush1.msra.mxu0 0.0
  %4299 = vmatprep.subr.mxu0 0.0
  %4300 = vmatpush1.msra.mxu0 0.0
  %4301 = vmatprep.subr.mxu0 0.0
  %4302 = vmatpush1.msra.mxu0 0.0
  %4303 = vmatprep.subr.mxu0 0.0
  %4304 = vmatpush1.msra.mxu0 0.0
  %4305 = vmatprep.subr.mxu0 0.0
  %4306 = vmatpush1.msra.mxu0 0.0
  %4307 = vmatprep.subr.mxu0 0.0
  %4308 = vmatpush1.msra.mxu0 0.0
  %4309 = vmatprep.subr.mxu0 0.0
  %4310 = vmatpush1.msra.mxu0 0.0
  %4311 = vmatprep.subr.mxu0 0.0
  %4312 = vmatpush1.msra.mxu0 0.0
  %4313 = vmatprep.subr.mxu0 0.0
  %4314 = vmatpush1.msra.mxu0 0.0
  %4315 = vmatprep.subr.mxu0 0.0
  %4316 = vmatpush1.msra.mxu0 0.0
  %4317 = vmatprep.subr.mxu0 0.0
  %4318 = vmatpush1.msra.mxu0 0.0
  %4319 = vmatprep.subr.mxu0 0.0
  %4320 = vmatpush1.msra.mxu0 0.0
  %4321 = vmatprep.subr.mxu0 0.0
  %4322 = vmatpush1.msra.mxu0 0.0
  %4323 = vmatprep.subr.mxu0 0.0
  %4324 = vmatpush1.msra.mxu0 0.0
  %4325 = vmatprep.subr.mxu0 0.0
  %4326 = vmatpush1.msra.mxu0 0.0
  %4327 = vmatprep.subr.mxu0 0.0
  %4328 = vmatpush1.msra.mxu0 0.0
  %4329 = vmatprep.subr.mxu0 0.0
  %4330 = vmatpush1.msra.mxu0 0.0
  %4331 = vmatprep.subr.mxu0 0.0
  %4332 = vmatpush1.msra.mxu0 0.0
  %4333 = vmatprep.subr.mxu0 0.0
  %4334 = vmatpush1.msra.mxu0 0.0
  %4335 = vmatprep.subr.mxu0 0.0
  %4336 = vmatpush1.msra.mxu0 0.0
  %4337 = vmatprep.subr.mxu0 0.0
  %4338 = vmatpush1.msra.mxu0 0.0
  %4339 = vmatprep.subr.mxu0 0.0
  %4340 = vmatpush1.msra.mxu0 0.0
  %4341 = vmatprep.subr.mxu0 0.0
  %4342 = vmatpush1.msra.mxu0 0.0
  %4343 = vmatprep.subr.mxu0 0.0
  %4344 = vmatpush1.msra.mxu0 0.0
  %4345 = vmatprep.subr.mxu0 0.0
  %4346 = vmatpush1.msra.mxu0 0.0
  %4347 = vmatprep.mubr.f32.mxu0 0.0
  %4348 = vmatmul.mubr.f32.gmra.mrb[0].mxu0 %v4281
  %v4349 = vpop.f32.mrb[0].mxu0
  %v4350 = vadd.f32 0.0, %v4349
  %v4351 = vpop.f32.mrb[0].mxu0
  %4352 = vdwg.mxu0
  %v4353 = vadd.f32 %v4275, %v4350
  %v4354 = vxor.u32 %v4353, 2147483648
  %v4355 = vmul.f32 %v4354, 1.442695
  %v4356 = vpow.pop %v4355
  %v4357 = vadd.f32 %v4356, 1.0
  %v4358 = vrcp.pop %v4357
  %v4359 = vmul.f32 1.0, %v4358
  %v4360 = vtanh.pop %v4353
  %v4362 = vlaneseq
  %v4363 = vshrl.u32 %v4362, 7
  %v4364 = vsub.s32 0, %v4363
  %v4365 = vrot.slane %v4274, %v4364
  %4366 = vrot.lane.b32.xlu0 %v4365, 32
  %v4367 = vpop.permute.xlu0 %4366
  %v4369 = vmul.f32 %v4359, %v4367
  %4371 = vrot.lane.b32.xlu0 %v4360, 64
  %v4372 = vpop.permute.xlu0 %4371
  %v4374 = vmul.f32 %v4359, %v4372
  %4376 = vrot.lane.b32.xlu0 %v4374, 32
  %v4377 = vpop.permute.xlu0 %4376
  %v4379 = vadd.f32 %v4369, %v4377
  %v4380 = vtanh.pop %v4379
  %4382 = vrot.lane.b32.xlu0 %v4380, 64
  %v4383 = vpop.permute.xlu0 %4382
  %v4385 = vmul.f32 %v4359, %v4383
  %4387 = vrot.lane.b32.xlu0 %v4379, 96
  %v4388 = vpop.permute.xlu0 %4387
  %4390 = vst.msk [vmem:[#allocation3] sm:$0x1] %vm4017, %v4388
  %4392 = vrot.lane.b32.xlu0 %v4385, 32
  %v4393 = vpop.permute.xlu0 %4392
  %4395 = vst.msk [vmem:[#allocation2] sm:$0x1] %vm4017, %v4393
  %4396 = vst.msk [vmem:[#allocation5 + $0x3] sm:$0x1] %vm4017, %v4393
  %v4397 = vld [vmem:[#allocation2] sm:$0x1]
  %v4398 = vld [vmem:[#allocation3] sm:$0x1]
  %v4399 = vld [vmem:[#allocation4 + $0x4] sm:$0x1]
  %v4400 = vld [vmem:[%s8] sm:$0xff]
  %v4401 = vld [vmem:[%s8 + $0x8] sm:$0xff]
  %v4402 = vld [vmem:[%s8 + $0x10] sm:$0xff]
  %v4403 = vld [vmem:[%s8 + $0x18] sm:$0xff]
  %v4405 = vsel %vm1144, %v4397, 0
  %4407 = vmatprep.subr.mxu0 0.0
  %4408 = vmatpush1.msra.mxu0 %v4400
  %4409 = vmatprep.subr.mxu0 0.0
  %4410 = vmatpush1.msra.mxu0 %v4401
  %4411 = vmatprep.subr.mxu0 0.0
  %4412 = vmatpush1.msra.mxu0 %v4402
  %4413 = vmatprep.subr.mxu0 0.0
  %4414 = vmatpush1.msra.mxu0 %v4403
  %4415 = vmatprep.subr.mxu0 0.0
  %4416 = vmatpush1.msra.mxu0 0.0
  %4417 = vmatprep.subr.mxu0 0.0
  %4418 = vmatpush1.msra.mxu0 0.0
  %4419 = vmatprep.subr.mxu0 0.0
  %4420 = vmatpush1.msra.mxu0 0.0
  %4421 = vmatprep.subr.mxu0 0.0
  %4422 = vmatpush1.msra.mxu0 0.0
  %4423 = vmatprep.subr.mxu0 0.0
  %4424 = vmatpush1.msra.mxu0 0.0
  %4425 = vmatprep.subr.mxu0 0.0
  %4426 = vmatpush1.msra.mxu0 0.0
  %4427 = vmatprep.subr.mxu0 0.0
  %4428 = vmatpush1.msra.mxu0 0.0
  %4429 = vmatprep.subr.mxu0 0.0
  %4430 = vmatpush1.msra.mxu0 0.0
  %4431 = vmatprep.subr.mxu0 0.0
  %4432 = vmatpush1.msra.mxu0 0.0
  %4433 = vmatprep.subr.mxu0 0.0
  %4434 = vmatpush1.msra.mxu0 0.0
  %4435 = vmatprep.subr.mxu0 0.0
  %4436 = vmatpush1.msra.mxu0 0.0
  %4437 = vmatprep.subr.mxu0 0.0
  %4438 = vmatpush1.msra.mxu0 0.0
  %4439 = vmatprep.subr.mxu0 0.0
  %4440 = vmatpush1.msra.mxu0 0.0
  %4441 = vmatprep.subr.mxu0 0.0
  %4442 = vmatpush1.msra.mxu0 0.0
  %4443 = vmatprep.subr.mxu0 0.0
  %4444 = vmatpush1.msra.mxu0 0.0
  %4445 = vmatprep.subr.mxu0 0.0
  %4446 = vmatpush1.msra.mxu0 0.0
  %4447 = vmatprep.subr.mxu0 0.0
  %4448 = vmatpush1.msra.mxu0 0.0
  %4449 = vmatprep.subr.mxu0 0.0
  %4450 = vmatpush1.msra.mxu0 0.0
  %4451 = vmatprep.subr.mxu0 0.0
  %4452 = vmatpush1.msra.mxu0 0.0
  %4453 = vmatprep.subr.mxu0 0.0
  %4454 = vmatpush1.msra.mxu0 0.0
  %4455 = vmatprep.subr.mxu0 0.0
  %4456 = vmatpush1.msra.mxu0 0.0
  %4457 = vmatprep.subr.mxu0 0.0
  %4458 = vmatpush1.msra.mxu0 0.0
  %4459 = vmatprep.subr.mxu0 0.0
  %4460 = vmatpush1.msra.mxu0 0.0
  %4461 = vmatprep.subr.mxu0 0.0
  %4462 = vmatpush1.msra.mxu0 0.0
  %4463 = vmatprep.subr.mxu0 0.0
  %4464 = vmatpush1.msra.mxu0 0.0
  %4465 = vmatprep.subr.mxu0 0.0
  %4466 = vmatpush1.msra.mxu0 0.0
  %4467 = vmatprep.subr.mxu0 0.0
  %4468 = vmatpush1.msra.mxu0 0.0
  %4469 = vmatprep.subr.mxu0 0.0
  %4470 = vmatpush1.msra.mxu0 0.0
  %4471 = vmatprep.mubr.f32.mxu0 0.0
  %4472 = vmatmul.mubr.f32.gmra.mrb[0].mxu0 %v4405
  %v4473 = vpop.f32.mrb[0].mxu0
  %v4474 = vadd.f32 0.0, %v4473
  %v4475 = vpop.f32.mrb[0].mxu0
  %4476 = vdwg.mxu0
  %v4477 = vadd.f32 %v4399, %v4474
  %v4478 = vxor.u32 %v4477, 2147483648
  %v4479 = vmul.f32 %v4478, 1.442695
  %v4480 = vpow.pop %v4479
  %v4481 = vadd.f32 %v4480, 1.0
  %v4482 = vrcp.pop %v4481
  %v4483 = vmul.f32 1.0, %v4482
  %v4484 = vtanh.pop %v4477
  %v4486 = vlaneseq
  %v4487 = vshrl.u32 %v4486, 7
  %v4488 = vsub.s32 0, %v4487
  %v4489 = vrot.slane %v4398, %v4488
  %4490 = vrot.lane.b32.xlu0 %v4489, 32
  %v4491 = vpop.permute.xlu0 %4490
  %v4493 = vmul.f32 %v4483, %v4491
  %4495 = vrot.lane.b32.xlu0 %v4484, 64
  %v4496 = vpop.permute.xlu0 %4495
  %v4498 = vmul.f32 %v4483, %v4496
  %4500 = vrot.lane.b32.xlu0 %v4498, 32
  %v4501 = vpop.permute.xlu0 %4500
  %v4503 = vadd.f32 %v4493, %v4501
  %v4504 = vtanh.pop %v4503
  %4506 = vrot.lane.b32.xlu0 %v4504, 64
  %v4507 = vpop.permute.xlu0 %4506
  %v4509 = vmul.f32 %v4483, %v4507
  %4511 = vrot.lane.b32.xlu0 %v4503, 96
  %v4512 = vpop.permute.xlu0 %4511
  %4514 = vst.msk [vmem:[#allocation3] sm:$0x1] %vm4017, %v4512
  %4516 = vrot.lane.b32.xlu0 %v4509, 32
  %v4517 = vpop.permute.xlu0 %4516
  %4519 = vst.msk [vmem:[#allocation2] sm:$0x1] %vm4017, %v4517
  %4520 = vst.msk [vmem:[#allocation5 + $0x4] sm:$0x1] %vm4017, %v4517
  %v4521 = vld [vmem:[#allocation2] sm:$0x1]
  %v4522 = vld [vmem:[#allocation3] sm:$0x1]
  %v4523 = vld [vmem:[#allocation4 + $0x5] sm:$0x1]
  %v4524 = vld [vmem:[%s8] sm:$0xff]
  %v4525 = vld [vmem:[%s8 + $0x8] sm:$0xff]
  %v4526 = vld [vmem:[%s8 + $0x10] sm:$0xff]
  %v4527 = vld [vmem:[%s8 + $0x18] sm:$0xff]
  %v4529 = vsel %vm1144, %v4521, 0
  %4531 = vmatprep.subr.mxu0 0.0
  %4532 = vmatpush1.msra.mxu0 %v4524
  %4533 = vmatprep.subr.mxu0 0.0
  %4534 = vmatpush1.msra.mxu0 %v4525
  %4535 = vmatprep.subr.mxu0 0.0
  %4536 = vmatpush1.msra.mxu0 %v4526
  %4537 = vmatprep.subr.mxu0 0.0
  %4538 = vmatpush1.msra.mxu0 %v4527
  %4539 = vmatprep.subr.mxu0 0.0
  %4540 = vmatpush1.msra.mxu0 0.0
  %4541 = vmatprep.subr.mxu0 0.0
  %4542 = vmatpush1.msra.mxu0 0.0
  %4543 = vmatprep.subr.mxu0 0.0
  %4544 = vmatpush1.msra.mxu0 0.0
  %4545 = vmatprep.subr.mxu0 0.0
  %4546 = vmatpush1.msra.mxu0 0.0
  %4547 = vmatprep.subr.mxu0 0.0
  %4548 = vmatpush1.msra.mxu0 0.0
  %4549 = vmatprep.subr.mxu0 0.0
  %4550 = vmatpush1.msra.mxu0 0.0
  %4551 = vmatprep.subr.mxu0 0.0
  %4552 = vmatpush1.msra.mxu0 0.0
  %4553 = vmatprep.subr.mxu0 0.0
  %4554 = vmatpush1.msra.mxu0 0.0
  %4555 = vmatprep.subr.mxu0 0.0
  %4556 = vmatpush1.msra.mxu0 0.0
  %4557 = vmatprep.subr.mxu0 0.0
  %4558 = vmatpush1.msra.mxu0 0.0
  %4559 = vmatprep.subr.mxu0 0.0
  %4560 = vmatpush1.msra.mxu0 0.0
  %4561 = vmatprep.subr.mxu0 0.0
  %4562 = vmatpush1.msra.mxu0 0.0
  %4563 = vmatprep.subr.mxu0 0.0
  %4564 = vmatpush1.msra.mxu0 0.0
  %4565 = vmatprep.subr.mxu0 0.0
  %4566 = vmatpush1.msra.mxu0 0.0
  %4567 = vmatprep.subr.mxu0 0.0
  %4568 = vmatpush1.msra.mxu0 0.0
  %4569 = vmatprep.subr.mxu0 0.0
  %4570 = vmatpush1.msra.mxu0 0.0
  %4571 = vmatprep.subr.mxu0 0.0
  %4572 = vmatpush1.msra.mxu0 0.0
  %4573 = vmatprep.subr.mxu0 0.0
  %4574 = vmatpush1.msra.mxu0 0.0
  %4575 = vmatprep.subr.mxu0 0.0
  %4576 = vmatpush1.msra.mxu0 0.0
  %4577 = vmatprep.subr.mxu0 0.0
  %4578 = vmatpush1.msra.mxu0 0.0
  %4579 = vmatprep.subr.mxu0 0.0
  %4580 = vmatpush1.msra.mxu0 0.0
  %4581 = vmatprep.subr.mxu0 0.0
  %4582 = vmatpush1.msra.mxu0 0.0
  %4583 = vmatprep.subr.mxu0 0.0
  %4584 = vmatpush1.msra.mxu0 0.0
  %4585 = vmatprep.subr.mxu0 0.0
  %4586 = vmatpush1.msra.mxu0 0.0
  %4587 = vmatprep.subr.mxu0 0.0
  %4588 = vmatpush1.msra.mxu0 0.0
  %4589 = vmatprep.subr.mxu0 0.0
  %4590 = vmatpush1.msra.mxu0 0.0
  %4591 = vmatprep.subr.mxu0 0.0
  %4592 = vmatpush1.msra.mxu0 0.0
  %4593 = vmatprep.subr.mxu0 0.0
  %4594 = vmatpush1.msra.mxu0 0.0
  %4595 = vmatprep.mubr.f32.mxu0 0.0
  %4596 = vmatmul.mubr.f32.gmra.mrb[0].mxu0 %v4529
  %v4597 = vpop.f32.mrb[0].mxu0
  %v4598 = vadd.f32 0.0, %v4597
  %v4599 = vpop.f32.mrb[0].mxu0
  %4600 = vdwg.mxu0
  %v4601 = vadd.f32 %v4523, %v4598
  %v4602 = vxor.u32 %v4601, 2147483648
  %v4603 = vmul.f32 %v4602, 1.442695
  %v4604 = vpow.pop %v4603
  %v4605 = vadd.f32 %v4604, 1.0
  %v4606 = vrcp.pop %v4605
  %v4607 = vmul.f32 1.0, %v4606
  %v4608 = vtanh.pop %v4601
  %v4610 = vlaneseq
  %v4611 = vshrl.u32 %v4610, 7
  %v4612 = vsub.s32 0, %v4611
  %v4613 = vrot.slane %v4522, %v4612
  %4614 = vrot.lane.b32.xlu0 %v4613, 32
  %v4615 = vpop.permute.xlu0 %4614
  %v4617 = vmul.f32 %v4607, %v4615
  %4619 = vrot.lane.b32.xlu0 %v4608, 64
  %v4620 = vpop.permute.xlu0 %4619
  %v4622 = vmul.f32 %v4607, %v4620
  %4624 = vrot.lane.b32.xlu0 %v4622, 32
  %v4625 = vpop.permute.xlu0 %4624
  %v4627 = vadd.f32 %v4617, %v4625
  %v4628 = vtanh.pop %v4627
  %4630 = vrot.lane.b32.xlu0 %v4628, 64
  %v4631 = vpop.permute.xlu0 %4630
  %v4633 = vmul.f32 %v4607, %v4631
  %4635 = vrot.lane.b32.xlu0 %v4627, 96
  %v4636 = vpop.permute.xlu0 %4635
  %4638 = vst.msk [vmem:[#allocation3] sm:$0x1] %vm4017, %v4636
  %4640 = vrot.lane.b32.xlu0 %v4633, 32
  %v4641 = vpop.permute.xlu0 %4640
  %4643 = vst.msk [vmem:[#allocation2] sm:$0x1] %vm4017, %v4641
  %4644 = vst.msk [vmem:[#allocation5 + $0x5] sm:$0x1] %vm4017, %v4641
  %v4645 = vld [vmem:[#allocation2] sm:$0x1]
  %v4646 = vld [vmem:[#allocation3] sm:$0x1]
  %v4647 = vld [vmem:[#allocation4 + $0x6] sm:$0x1]
  %v4648 = vld [vmem:[%s8] sm:$0xff]
  %v4649 = vld [vmem:[%s8 + $0x8] sm:$0xff]
  %v4650 = vld [vmem:[%s8 + $0x10] sm:$0xff]
  %v4651 = vld [vmem:[%s8 + $0x18] sm:$0xff]
  %v4653 = vsel %vm1144, %v4645, 0
  %4655 = vmatprep.subr.mxu0 0.0
  %4656 = vmatpush1.msra.mxu0 %v4648
  %4657 = vmatprep.subr.mxu0 0.0
  %4658 = vmatpush1.msra.mxu0 %v4649
  %4659 = vmatprep.subr.mxu0 0.0
  %4660 = vmatpush1.msra.mxu0 %v4650
  %4661 = vmatprep.subr.mxu0 0.0
  %4662 = vmatpush1.msra.mxu0 %v4651
  %4663 = vmatprep.subr.mxu0 0.0
  %4664 = vmatpush1.msra.mxu0 0.0
  %4665 = vmatprep.subr.mxu0 0.0
  %4666 = vmatpush1.msra.mxu0 0.0
  %4667 = vmatprep.subr.mxu0 0.0
  %4668 = vmatpush1.msra.mxu0 0.0
  %4669 = vmatprep.subr.mxu0 0.0
  %4670 = vmatpush1.msra.mxu0 0.0
  %4671 = vmatprep.subr.mxu0 0.0
  %4672 = vmatpush1.msra.mxu0 0.0
  %4673 = vmatprep.subr.mxu0 0.0
  %4674 = vmatpush1.msra.mxu0 0.0
  %4675 = vmatprep.subr.mxu0 0.0
  %4676 = vmatpush1.msra.mxu0 0.0
  %4677 = vmatprep.subr.mxu0 0.0
  %4678 = vmatpush1.msra.mxu0 0.0
  %4679 = vmatprep.subr.mxu0 0.0
  %4680 = vmatpush1.msra.mxu0 0.0
  %4681 = vmatprep.subr.mxu0 0.0
  %4682 = vmatpush1.msra.mxu0 0.0
  %4683 = vmatprep.subr.mxu0 0.0
  %4684 = vmatpush1.msra.mxu0 0.0
  %4685 = vmatprep.subr.mxu0 0.0
  %4686 = vmatpush1.msra.mxu0 0.0
  %4687 = vmatprep.subr.mxu0 0.0
  %4688 = vmatpush1.msra.mxu0 0.0
  %4689 = vmatprep.subr.mxu0 0.0
  %4690 = vmatpush1.msra.mxu0 0.0
  %4691 = vmatprep.subr.mxu0 0.0
  %4692 = vmatpush1.msra.mxu0 0.0
  %4693 = vmatprep.subr.mxu0 0.0
  %4694 = vmatpush1.msra.mxu0 0.0
  %4695 = vmatprep.subr.mxu0 0.0
  %4696 = vmatpush1.msra.mxu0 0.0
  %4697 = vmatprep.subr.mxu0 0.0
  %4698 = vmatpush1.msra.mxu0 0.0
  %4699 = vmatprep.subr.mxu0 0.0
  %4700 = vmatpush1.msra.mxu0 0.0
  %4701 = vmatprep.subr.mxu0 0.0
  %4702 = vmatpush1.msra.mxu0 0.0
  %4703 = vmatprep.subr.mxu0 0.0
  %4704 = vmatpush1.msra.mxu0 0.0
  %4705 = vmatprep.subr.mxu0 0.0
  %4706 = vmatpush1.msra.mxu0 0.0
  %4707 = vmatprep.subr.mxu0 0.0
  %4708 = vmatpush1.msra.mxu0 0.0
  %4709 = vmatprep.subr.mxu0 0.0
  %4710 = vmatpush1.msra.mxu0 0.0
  %4711 = vmatprep.subr.mxu0 0.0
  %4712 = vmatpush1.msra.mxu0 0.0
  %4713 = vmatprep.subr.mxu0 0.0
  %4714 = vmatpush1.msra.mxu0 0.0
  %4715 = vmatprep.subr.mxu0 0.0
  %4716 = vmatpush1.msra.mxu0 0.0
  %4717 = vmatprep.subr.mxu0 0.0
  %4718 = vmatpush1.msra.mxu0 0.0
  %4719 = vmatprep.mubr.f32.mxu0 0.0
  %4720 = vmatmul.mubr.f32.gmra.mrb[0].mxu0 %v4653
  %v4721 = vpop.f32.mrb[0].mxu0
  %v4722 = vadd.f32 0.0, %v4721
  %v4723 = vpop.f32.mrb[0].mxu0
  %4724 = vdwg.mxu0
  %v4725 = vadd.f32 %v4647, %v4722
  %v4726 = vxor.u32 %v4725, 2147483648
  %v4727 = vmul.f32 %v4726, 1.442695
  %v4728 = vpow.pop %v4727
  %v4729 = vadd.f32 %v4728, 1.0
  %v4730 = vrcp.pop %v4729
  %v4731 = vmul.f32 1.0, %v4730
  %v4732 = vtanh.pop %v4725
  %v4734 = vlaneseq
  %v4735 = vshrl.u32 %v4734, 7
  %v4736 = vsub.s32 0, %v4735
  %v4737 = vrot.slane %v4646, %v4736
  %4738 = vrot.lane.b32.xlu0 %v4737, 32
  %v4739 = vpop.permute.xlu0 %4738
  %v4741 = vmul.f32 %v4731, %v4739
  %4743 = vrot.lane.b32.xlu0 %v4732, 64
  %v4744 = vpop.permute.xlu0 %4743
  %v4746 = vmul.f32 %v4731, %v4744
  %4748 = vrot.lane.b32.xlu0 %v4746, 32
  %v4749 = vpop.permute.xlu0 %4748
  %v4751 = vadd.f32 %v4741, %v4749
  %v4752 = vtanh.pop %v4751
  %4754 = vrot.lane.b32.xlu0 %v4752, 64
  %v4755 = vpop.permute.xlu0 %4754
  %v4757 = vmul.f32 %v4731, %v4755
  %4759 = vrot.lane.b32.xlu0 %v4751, 96
  %v4760 = vpop.permute.xlu0 %4759
  %4762 = vst.msk [vmem:[#allocation3] sm:$0x1] %vm4017, %v4760
  %4764 = vrot.lane.b32.xlu0 %v4757, 32
  %v4765 = vpop.permute.xlu0 %4764
  %4767 = vst.msk [vmem:[#allocation2] sm:$0x1] %vm4017, %v4765
  %4768 = vst.msk [vmem:[#allocation5 + $0x6] sm:$0x1] %vm4017, %v4765
  %v4769 = vld [vmem:[#allocation2] sm:$0x1]
  %v4770 = vld [vmem:[#allocation3] sm:$0x1]
  %v4771 = vld [vmem:[#allocation4 + $0x7] sm:$0x1]
  %v4772 = vld [vmem:[%s8] sm:$0xff]
  %v4773 = vld [vmem:[%s8 + $0x8] sm:$0xff]
  %v4774 = vld [vmem:[%s8 + $0x10] sm:$0xff]
  %v4775 = vld [vmem:[%s8 + $0x18] sm:$0xff]
  %v4777 = vsel %vm1144, %v4769, 0
  %4779 = vmatprep.subr.mxu0 0.0
  %4780 = vmatpush1.msra.mxu0 %v4772
  %4781 = vmatprep.subr.mxu0 0.0
  %4782 = vmatpush1.msra.mxu0 %v4773
  %4783 = vmatprep.subr.mxu0 0.0
  %4784 = vmatpush1.msra.mxu0 %v4774
  %4785 = vmatprep.subr.mxu0 0.0
  %4786 = vmatpush1.msra.mxu0 %v4775
  %4787 = vmatprep.subr.mxu0 0.0
  %4788 = vmatpush1.msra.mxu0 0.0
  %4789 = vmatprep.subr.mxu0 0.0
  %4790 = vmatpush1.msra.mxu0 0.0
  %4791 = vmatprep.subr.mxu0 0.0
  %4792 = vmatpush1.msra.mxu0 0.0
  %4793 = vmatprep.subr.mxu0 0.0
  %4794 = vmatpush1.msra.mxu0 0.0
  %4795 = vmatprep.subr.mxu0 0.0
  %4796 = vmatpush1.msra.mxu0 0.0
  %4797 = vmatprep.subr.mxu0 0.0
  %4798 = vmatpush1.msra.mxu0 0.0
  %4799 = vmatprep.subr.mxu0 0.0
  %4800 = vmatpush1.msra.mxu0 0.0
  %4801 = vmatprep.subr.mxu0 0.0
  %4802 = vmatpush1.msra.mxu0 0.0
  %4803 = vmatprep.subr.mxu0 0.0
  %4804 = vmatpush1.msra.mxu0 0.0
  %4805 = vmatprep.subr.mxu0 0.0
  %4806 = vmatpush1.msra.mxu0 0.0
  %4807 = vmatprep.subr.mxu0 0.0
  %4808 = vmatpush1.msra.mxu0 0.0
  %4809 = vmatprep.subr.mxu0 0.0
  %4810 = vmatpush1.msra.mxu0 0.0
  %4811 = vmatprep.subr.mxu0 0.0
  %4812 = vmatpush1.msra.mxu0 0.0
  %4813 = vmatprep.subr.mxu0 0.0
  %4814 = vmatpush1.msra.mxu0 0.0
  %4815 = vmatprep.subr.mxu0 0.0
  %4816 = vmatpush1.msra.mxu0 0.0
  %4817 = vmatprep.subr.mxu0 0.0
  %4818 = vmatpush1.msra.mxu0 0.0
  %4819 = vmatprep.subr.mxu0 0.0
  %4820 = vmatpush1.msra.mxu0 0.0
  %4821 = vmatprep.subr.mxu0 0.0
  %4822 = vmatpush1.msra.mxu0 0.0
  %4823 = vmatprep.subr.mxu0 0.0
  %4824 = vmatpush1.msra.mxu0 0.0
  %4825 = vmatprep.subr.mxu0 0.0
  %4826 = vmatpush1.msra.mxu0 0.0
  %4827 = vmatprep.subr.mxu0 0.0
  %4828 = vmatpush1.msra.mxu0 0.0
  %4829 = vmatprep.subr.mxu0 0.0
  %4830 = vmatpush1.msra.mxu0 0.0
  %4831 = vmatprep.subr.mxu0 0.0
  %4832 = vmatpush1.msra.mxu0 0.0
  %4833 = vmatprep.subr.mxu0 0.0
  %4834 = vmatpush1.msra.mxu0 0.0
  %4835 = vmatprep.subr.mxu0 0.0
  %4836 = vmatpush1.msra.mxu0 0.0
  %4837 = vmatprep.subr.mxu0 0.0
  %4838 = vmatpush1.msra.mxu0 0.0
  %4839 = vmatprep.subr.mxu0 0.0
  %4840 = vmatpush1.msra.mxu0 0.0
  %4841 = vmatprep.subr.mxu0 0.0
  %4842 = vmatpush1.msra.mxu0 0.0
  %4843 = vmatprep.mubr.f32.mxu0 0.0
  %4844 = vmatmul.mubr.f32.gmra.mrb[0].mxu0 %v4777
  %v4845 = vpop.f32.mrb[0].mxu0
  %v4846 = vadd.f32 0.0, %v4845
  %v4847 = vpop.f32.mrb[0].mxu0
  %4848 = vdwg.mxu0
  %v4849 = vadd.f32 %v4771, %v4846
  %v4850 = vxor.u32 %v4849, 2147483648
  %v4851 = vmul.f32 %v4850, 1.442695
  %v4852 = vpow.pop %v4851
  %v4853 = vadd.f32 %v4852, 1.0
  %v4854 = vrcp.pop %v4853
  %v4855 = vmul.f32 1.0, %v4854
  %v4856 = vtanh.pop %v4849
  %v4858 = vlaneseq
  %v4859 = vshrl.u32 %v4858, 7
  %v4860 = vsub.s32 0, %v4859
  %v4861 = vrot.slane %v4770, %v4860
  %4862 = vrot.lane.b32.xlu0 %v4861, 32
  %v4863 = vpop.permute.xlu0 %4862
  %v4865 = vmul.f32 %v4855, %v4863
  %4867 = vrot.lane.b32.xlu0 %v4856, 64
  %v4868 = vpop.permute.xlu0 %4867
  %v4870 = vmul.f32 %v4855, %v4868
  %4872 = vrot.lane.b32.xlu0 %v4870, 32
  %v4873 = vpop.permute.xlu0 %4872
  %v4875 = vadd.f32 %v4865, %v4873
  %v4876 = vtanh.pop %v4875
  %4878 = vrot.lane.b32.xlu0 %v4876, 64
  %v4879 = vpop.permute.xlu0 %4878
  %v4881 = vmul.f32 %v4855, %v4879
  %4883 = vrot.lane.b32.xlu0 %v4875, 96
  %v4884 = vpop.permute.xlu0 %4883
  %4886 = vst.msk [vmem:[#allocation3] sm:$0x1] %vm4017, %v4884
  %4888 = vrot.lane.b32.xlu0 %v4881, 32
  %v4889 = vpop.permute.xlu0 %4888
  %4891 = vst.msk [vmem:[#allocation2] sm:$0x1] %vm4017, %v4889
  %4892 = vst.msk [vmem:[#allocation5 + $0x7] sm:$0x1] %vm4017, %v4889
  %v4893 = vld [vmem:[#allocation2] sm:$0x1]
  %v4894 = vld [vmem:[#allocation3] sm:$0x1]
  %v4895 = vld [vmem:[#allocation4 + $0x8] sm:$0x1]
  %v4896 = vld [vmem:[%s8] sm:$0xff]
  %v4897 = vld [vmem:[%s8 + $0x8] sm:$0xff]
  %v4898 = vld [vmem:[%s8 + $0x10] sm:$0xff]
  %v4899 = vld [vmem:[%s8 + $0x18] sm:$0xff]
  %v4901 = vsel %vm1144, %v4893, 0
  %4903 = vmatprep.subr.mxu0 0.0
  %4904 = vmatpush1.msra.mxu0 %v4896
  %4905 = vmatprep.subr.mxu0 0.0
  %4906 = vmatpush1.msra.mxu0 %v4897
  %4907 = vmatprep.subr.mxu0 0.0
  %4908 = vmatpush1.msra.mxu0 %v4898
  %4909 = vmatprep.subr.mxu0 0.0
  %4910 = vmatpush1.msra.mxu0 %v4899
  %4911 = vmatprep.subr.mxu0 0.0
  %4912 = vmatpush1.msra.mxu0 0.0
  %4913 = vmatprep.subr.mxu0 0.0
  %4914 = vmatpush1.msra.mxu0 0.0
  %4915 = vmatprep.subr.mxu0 0.0
  %4916 = vmatpush1.msra.mxu0 0.0
  %4917 = vmatprep.subr.mxu0 0.0
  %4918 = vmatpush1.msra.mxu0 0.0
  %4919 = vmatprep.subr.mxu0 0.0
  %4920 = vmatpush1.msra.mxu0 0.0
  %4921 = vmatprep.subr.mxu0 0.0
  %4922 = vmatpush1.msra.mxu0 0.0
  %4923 = vmatprep.subr.mxu0 0.0
  %4924 = vmatpush1.msra.mxu0 0.0
  %4925 = vmatprep.subr.mxu0 0.0
  %4926 = vmatpush1.msra.mxu0 0.0
  %4927 = vmatprep.subr.mxu0 0.0
  %4928 = vmatpush1.msra.mxu0 0.0
  %4929 = vmatprep.subr.mxu0 0.0
  %4930 = vmatpush1.msra.mxu0 0.0
  %4931 = vmatprep.subr.mxu0 0.0
  %4932 = vmatpush1.msra.mxu0 0.0
  %4933 = vmatprep.subr.mxu0 0.0
  %4934 = vmatpush1.msra.mxu0 0.0
  %4935 = vmatprep.subr.mxu0 0.0
  %4936 = vmatpush1.msra.mxu0 0.0
  %4937 = vmatprep.subr.mxu0 0.0
  %4938 = vmatpush1.msra.mxu0 0.0
  %4939 = vmatprep.subr.mxu0 0.0
  %4940 = vmatpush1.msra.mxu0 0.0
  %4941 = vmatprep.subr.mxu0 0.0
  %4942 = vmatpush1.msra.mxu0 0.0
  %4943 = vmatprep.subr.mxu0 0.0
  %4944 = vmatpush1.msra.mxu0 0.0
  %4945 = vmatprep.subr.mxu0 0.0
  %4946 = vmatpush1.msra.mxu0 0.0
  %4947 = vmatprep.subr.mxu0 0.0
  %4948 = vmatpush1.msra.mxu0 0.0
  %4949 = vmatprep.subr.mxu0 0.0
  %4950 = vmatpush1.msra.mxu0 0.0
  %4951 = vmatprep.subr.mxu0 0.0
  %4952 = vmatpush1.msra.mxu0 0.0
  %4953 = vmatprep.subr.mxu0 0.0
  %4954 = vmatpush1.msra.mxu0 0.0
  %4955 = vmatprep.subr.mxu0 0.0
  %4956 = vmatpush1.msra.mxu0 0.0
  %4957 = vmatprep.subr.mxu0 0.0
  %4958 = vmatpush1.msra.mxu0 0.0
  %4959 = vmatprep.subr.mxu0 0.0
  %4960 = vmatpush1.msra.mxu0 0.0
  %4961 = vmatprep.subr.mxu0 0.0
  %4962 = vmatpush1.msra.mxu0 0.0
  %4963 = vmatprep.subr.mxu0 0.0
  %4964 = vmatpush1.msra.mxu0 0.0
  %4965 = vmatprep.subr.mxu0 0.0
  %4966 = vmatpush1.msra.mxu0 0.0
  %4967 = vmatprep.mubr.f32.mxu0 0.0
  %4968 = vmatmul.mubr.f32.gmra.mrb[0].mxu0 %v4901
  %v4969 = vpop.f32.mrb[0].mxu0
  %v4970 = vadd.f32 0.0, %v4969
  %v4971 = vpop.f32.mrb[0].mxu0
  %4972 = vdwg.mxu0
  %v4973 = vadd.f32 %v4895, %v4970
  %v4974 = vxor.u32 %v4973, 2147483648
  %v4975 = vmul.f32 %v4974, 1.442695
  %v4976 = vpow.pop %v4975
  %v4977 = vadd.f32 %v4976, 1.0
  %v4978 = vrcp.pop %v4977
  %v4979 = vmul.f32 1.0, %v4978
  %v4980 = vtanh.pop %v4973
  %v4982 = vlaneseq
  %v4983 = vshrl.u32 %v4982, 7
  %v4984 = vsub.s32 0, %v4983
  %v4985 = vrot.slane %v4894, %v4984
  %4986 = vrot.lane.b32.xlu0 %v4985, 32
  %v4987 = vpop.permute.xlu0 %4986
  %v4989 = vmul.f32 %v4979, %v4987
  %4991 = vrot.lane.b32.xlu0 %v4980, 64
  %v4992 = vpop.permute.xlu0 %4991
  %v4994 = vmul.f32 %v4979, %v4992
  %4996 = vrot.lane.b32.xlu0 %v4994, 32
  %v4997 = vpop.permute.xlu0 %4996
  %v4999 = vadd.f32 %v4989, %v4997
  %v5000 = vtanh.pop %v4999
  %5002 = vrot.lane.b32.xlu0 %v5000, 64
  %v5003 = vpop.permute.xlu0 %5002
  %v5005 = vmul.f32 %v4979, %v5003
  %5007 = vrot.lane.b32.xlu0 %v4999, 96
  %v5008 = vpop.permute.xlu0 %5007
  %5010 = vst.msk [vmem:[#allocation3] sm:$0x1] %vm4017, %v5008
  %5012 = vrot.lane.b32.xlu0 %v5005, 32
  %v5013 = vpop.permute.xlu0 %5012
  %5015 = vst.msk [vmem:[#allocation2] sm:$0x1] %vm4017, %v5013
  %5016 = vst.msk [vmem:[#allocation5 + $0x8] sm:$0x1] %vm4017, %v5013
  %v5017 = vld [vmem:[#allocation5] sm:$0xff]
  %v5018 = vld [vmem:[#allocation5 + $0x8] sm:$0x1]
  %v5019 = vpack.c.bf16 %v5018, %v5017
  %v5020 = vld [vmem:[%s9] sm:$0xff]
  %v5021 = vld [vmem:[%s9 + $0x8] sm:$0xff]
  %v5022 = vld [vmem:[%s9 + $0x10] sm:$0xff]
  %v5023 = vld [vmem:[%s9 + $0x18] sm:$0xff]
  %v5024 = vld [vmem:[%s9 + $0x20] sm:$0xf]
  %v5025 = vld [vmem:[%s9 + $0x24] sm:$0xff]
  %v5026 = vld [vmem:[%s9 + $0x2c] sm:$0xff]
  %v5027 = vld [vmem:[%s9 + $0x34] sm:$0xff]
  %v5028 = vld [vmem:[%s9 + $0x3c] sm:$0xff]
  %v5029 = vld [vmem:[%s9 + $0x44] sm:$0xf]
  %v5030 = vld [vmem:[%s9 + $0x48] sm:$0xff]
  %v5031 = vld [vmem:[%s9 + $0x50] sm:$0xff]
  %v5032 = vld [vmem:[%s9 + $0x58] sm:$0xff]
  %v5033 = vld [vmem:[%s9 + $0x60] sm:$0xff]
  %v5034 = vld [vmem:[%s9 + $0x68] sm:$0xf]
  %v5035 = vld [vmem:[%s9 + $0x6c] sm:$0xff]
  %v5036 = vld [vmem:[%s9 + $0x74] sm:$0xff]
  %v5037 = vld [vmem:[%s9 + $0x7c] sm:$0xff]
  %v5038 = vld [vmem:[%s9 + $0x84] sm:$0xff]
  %v5039 = vld [vmem:[%s9 + $0x8c] sm:$0xf]
  %v5040 = vld [vmem:[%s10] sm:$0xff]
  %v5041 = vld [vmem:[%s10 + $0x8] sm:$0x1]
  %v5044 = vlaneseq
  %v5045 = vshrl.u32 %v5044, 7
  %v5046 = vsub.s32 0, %v5045
  %v5047 = vrot.slane %v5040, %v5046
  %v5048 = vlaneseq
  %v5049 = vshrl.u32 %v5048, 7
  %v5050 = vsub.s32 1, %v5049
  %v5051 = vrot.slane %v5040, %v5050
  %v5052 = vlaneseq
  %v5053 = vshrl.u32 %v5052, 7
  %v5054 = vsub.s32 2, %v5053
  %v5055 = vrot.slane %v5040, %v5054
  %v5056 = vlaneseq
  %v5057 = vshrl.u32 %v5056, 7
  %v5058 = vsub.s32 3, %v5057
  %v5059 = vrot.slane %v5040, %v5058
  %v5060 = vlaneseq
  %v5061 = vshrl.u32 %v5060, 7
  %v5062 = vsub.s32 4, %v5061
  %v5063 = vrot.slane %v5040, %v5062
  %v5064 = vlaneseq
  %v5065 = vshrl.u32 %v5064, 7
  %v5066 = vsub.s32 5, %v5065
  %v5067 = vrot.slane %v5040, %v5066
  %v5068 = vlaneseq
  %v5069 = vshrl.u32 %v5068, 7
  %v5070 = vsub.s32 6, %v5069
  %v5071 = vrot.slane %v5040, %v5070
  %v5072 = vlaneseq
  %v5073 = vshrl.u32 %v5072, 7
  %v5074 = vsub.s32 7, %v5073
  %v5075 = vrot.slane %v5040, %v5074
  %v5076 = vlaneseq
  %v5077 = vshrl.u32 %v5076, 7
  %v5078 = vsub.s32 0, %v5077
  %v5079 = vrot.slane %v5041, %v5078
  %v5109 = vunpack.c.l.b16 %v5020
  %v5110 = vunpack.c.h.b16 %v5020
  %v5111 = vunpack.c.l.b16 %v5021
  %v5112 = vunpack.c.h.b16 %v5021
  %v5113 = vunpack.c.l.b16 %v5022
  %v5114 = vunpack.c.h.b16 %v5022
  %v5115 = vunpack.c.l.b16 %v5023
  %v5116 = vunpack.c.h.b16 %v5023
  %v5117 = vunpack.c.l.b16 %v5024
  %v5118 = vunpack.c.l.b16 %v5025
  %v5119 = vunpack.c.h.b16 %v5025
  %v5120 = vunpack.c.l.b16 %v5026
  %v5121 = vunpack.c.h.b16 %v5026
  %v5122 = vunpack.c.l.b16 %v5027
  %v5123 = vunpack.c.h.b16 %v5027
  %v5124 = vunpack.c.l.b16 %v5028
  %v5125 = vunpack.c.h.b16 %v5028
  %v5126 = vunpack.c.l.b16 %v5029
  %v5127 = vunpack.c.l.b16 %v5030
  %v5128 = vunpack.c.h.b16 %v5030
  %v5129 = vunpack.c.l.b16 %v5031
  %v5130 = vunpack.c.h.b16 %v5031
  %v5131 = vunpack.c.l.b16 %v5032
  %v5132 = vunpack.c.h.b16 %v5032
  %v5133 = vunpack.c.l.b16 %v5033
  %v5134 = vunpack.c.h.b16 %v5033
  %v5135 = vunpack.c.l.b16 %v5034
  %v5136 = vunpack.c.l.b16 %v5035
  %v5137 = vunpack.c.h.b16 %v5035
  %v5138 = vunpack.c.l.b16 %v5036
  %v5139 = vunpack.c.h.b16 %v5036
  %v5140 = vunpack.c.l.b16 %v5037
  %v5141 = vunpack.c.h.b16 %v5037
  %v5142 = vunpack.c.l.b16 %v5038
  %v5143 = vunpack.c.h.b16 %v5038
  %v5144 = vunpack.c.l.b16 %v5039
  %v5145 = vpack.c.b16 %v5118, %v5109
  %v5146 = vpack.c.b16 %v5119, %v5110
  %v5147 = vpack.c.b16 %v5120, %v5111
  %v5148 = vpack.c.b16 %v5121, %v5112
  %v5149 = vpack.c.b16 %v5122, %v5113
  %v5150 = vpack.c.b16 %v5123, %v5114
  %v5151 = vpack.c.b16 %v5124, %v5115
  %v5152 = vpack.c.b16 %v5125, %v5116
  %v5153 = vpack.c.b16 %v5126, %v5117
  %v5154 = vpack.c.b16 %v5136, %v5127
  %v5155 = vpack.c.b16 %v5137, %v5128
  %v5156 = vpack.c.b16 %v5138, %v5129
  %v5157 = vpack.c.b16 %v5139, %v5130
  %v5158 = vpack.c.b16 %v5140, %v5131
  %v5159 = vpack.c.b16 %v5141, %v5132
  %v5160 = vpack.c.b16 %v5142, %v5133
  %v5161 = vpack.c.b16 %v5143, %v5134
  %v5162 = vpack.c.b16 %v5144, %v5135
  %v5182 = vsel %vm1144, %v5019, 0
  %5184 = vmatprep.subr.bf16.mxu0 %v5146
  %5185 = vmatpush1.bf16.msra.mxu0 %v5145
  %5186 = vmatprep.subr.bf16.mxu0 %v5155
  %5187 = vmatpush1.bf16.msra.mxu0 %v5154
  %5188 = vmatprep.subr.bf16.mxu0 0
  %5189 = vmatpush1.bf16.msra.mxu0 0
  %5190 = vmatprep.subr.bf16.mxu0 0
  %5191 = vmatpush1.bf16.msra.mxu0 0
  %5192 = vmatprep.subr.bf16.mxu0 0
  %5193 = vmatpush1.bf16.msra.mxu0 0
  %5194 = vmatprep.subr.bf16.mxu0 0
  %5195 = vmatpush1.bf16.msra.mxu0 0
  %5196 = vmatprep.subr.bf16.mxu0 0
  %5197 = vmatpush1.bf16.msra.mxu0 0
  %5198 = vmatprep.subr.bf16.mxu0 0
  %5199 = vmatpush1.bf16.msra.mxu0 0
  %5200 = vmatprep.subr.bf16.mxu0 0
  %5201 = vmatpush1.bf16.msra.mxu0 0
  %5202 = vmatprep.subr.bf16.mxu0 0
  %5203 = vmatpush1.bf16.msra.mxu0 0
  %5204 = vmatprep.subr.bf16.mxu0 0
  %5205 = vmatpush1.bf16.msra.mxu0 0
  %5206 = vmatprep.subr.bf16.mxu0 0
  %5207 = vmatpush1.bf16.msra.mxu0 0
  %5208 = vmatprep.subr.bf16.mxu0 0
  %5209 = vmatpush1.bf16.msra.mxu0 0
  %5210 = vmatprep.subr.bf16.mxu0 0
  %5211 = vmatpush1.bf16.msra.mxu0 0
  %5212 = vmatprep.subr.bf16.mxu0 0
  %5213 = vmatpush1.bf16.msra.mxu0 0
  %5214 = vmatprep.subr.bf16.mxu0 0
  %5215 = vmatpush1.bf16.msra.mxu0 0
  %5216 = vmatprep.mubr.bf16.mxu0 0
  %5217 = vmatmul.mubr.bf16.gmra.mrb[0].mxu0 %v5182
  %v5218 = vpop.f32.mrb[0].mxu0
  %v5219 = vadd.f32 %v5047, %v5218
  %v5220 = vpop.f32.mrb[0].mxu0
  %v5221 = vadd.f32 %v5051, %v5220
  %v5222 = vpop.f32.mrb[0].mxu0
  %v5223 = vadd.f32 %v5047, %v5222
  %v5224 = vpop.f32.mrb[0].mxu0
  %v5225 = vadd.f32 %v5051, %v5224
  %5226 = vdwg.mxu0
  %5227 = vmatprep.subr.bf16.mxu0 %v5148
  %5228 = vmatpush1.bf16.msra.mxu0 %v5147
  %5229 = vmatprep.subr.bf16.mxu0 %v5157
  %5230 = vmatpush1.bf16.msra.mxu0 %v5156
  %5231 = vmatprep.subr.bf16.mxu0 0
  %5232 = vmatpush1.bf16.msra.mxu0 0
  %5233 = vmatprep.subr.bf16.mxu0 0
  %5234 = vmatpush1.bf16.msra.mxu0 0
  %5235 = vmatprep.subr.bf16.mxu0 0
  %5236 = vmatpush1.bf16.msra.mxu0 0
  %5237 = vmatprep.subr.bf16.mxu0 0
  %5238 = vmatpush1.bf16.msra.mxu0 0
  %5239 = vmatprep.subr.bf16.mxu0 0
  %5240 = vmatpush1.bf16.msra.mxu0 0
  %5241 = vmatprep.subr.bf16.mxu0 0
  %5242 = vmatpush1.bf16.msra.mxu0 0
  %5243 = vmatprep.subr.bf16.mxu0 0
  %5244 = vmatpush1.bf16.msra.mxu0 0
  %5245 = vmatprep.subr.bf16.mxu0 0
  %5246 = vmatpush1.bf16.msra.mxu0 0
  %5247 = vmatprep.subr.bf16.mxu0 0
  %5248 = vmatpush1.bf16.msra.mxu0 0
  %5249 = vmatprep.subr.bf16.mxu0 0
  %5250 = vmatpush1.bf16.msra.mxu0 0
  %5251 = vmatprep.subr.bf16.mxu0 0
  %5252 = vmatpush1.bf16.msra.mxu0 0
  %5253 = vmatprep.subr.bf16.mxu0 0
  %5254 = vmatpush1.bf16.msra.mxu0 0
  %5255 = vmatprep.subr.bf16.mxu0 0
  %5256 = vmatpush1.bf16.msra.mxu0 0
  %5257 = vmatprep.subr.bf16.mxu0 0
  %5258 = vmatpush1.bf16.msra.mxu0 0
  %5259 = vmatprep.mubr.bf16.mxu0 0
  %5260 = vmatmul.mubr.bf16.gmra.mrb[0].mxu0 %v5182
  %v5261 = vpop.f32.mrb[0].mxu0
  %v5262 = vadd.f32 %v5055, %v5261
  %v5263 = vpop.f32.mrb[0].mxu0
  %v5264 = vadd.f32 %v5059, %v5263
  %v5265 = vpop.f32.mrb[0].mxu0
  %v5266 = vadd.f32 %v5055, %v5265
  %v5267 = vpop.f32.mrb[0].mxu0
  %v5268 = vadd.f32 %v5059, %v5267
  %5269 = vdwg.mxu0
  %5270 = vmatprep.subr.bf16.mxu0 %v5150
  %5271 = vmatpush1.bf16.msra.mxu0 %v5149
  %5272 = vmatprep.subr.bf16.mxu0 %v5159
  %5273 = vmatpush1.bf16.msra.mxu0 %v5158
  %5274 = vmatprep.subr.bf16.mxu0 0
  %5275 = vmatpush1.bf16.msra.mxu0 0
  %5276 = vmatprep.subr.bf16.mxu0 0
  %5277 = vmatpush1.bf16.msra.mxu0 0
  %5278 = vmatprep.subr.bf16.mxu0 0
  %5279 = vmatpush1.bf16.msra.mxu0 0
  %5280 = vmatprep.subr.bf16.mxu0 0
  %5281 = vmatpush1.bf16.msra.mxu0 0
  %5282 = vmatprep.subr.bf16.mxu0 0
  %5283 = vmatpush1.bf16.msra.mxu0 0
  %5284 = vmatprep.subr.bf16.mxu0 0
  %5285 = vmatpush1.bf16.msra.mxu0 0
  %5286 = vmatprep.subr.bf16.mxu0 0
  %5287 = vmatpush1.bf16.msra.mxu0 0
  %5288 = vmatprep.subr.bf16.mxu0 0
  %5289 = vmatpush1.bf16.msra.mxu0 0
  %5290 = vmatprep.subr.bf16.mxu0 0
  %5291 = vmatpush1.bf16.msra.mxu0 0
  %5292 = vmatprep.subr.bf16.mxu0 0
  %5293 = vmatpush1.bf16.msra.mxu0 0
  %5294 = vmatprep.subr.bf16.mxu0 0
  %5295 = vmatpush1.bf16.msra.mxu0 0
  %5296 = vmatprep.subr.bf16.mxu0 0
  %5297 = vmatpush1.bf16.msra.mxu0 0
  %5298 = vmatprep.subr.bf16.mxu0 0
  %5299 = vmatpush1.bf16.msra.mxu0 0
  %5300 = vmatprep.subr.bf16.mxu0 0
  %5301 = vmatpush1.bf16.msra.mxu0 0
  %5302 = vmatprep.mubr.bf16.mxu0 0
  %5303 = vmatmul.mubr.bf16.gmra.mrb[0].mxu0 %v5182
  %v5304 = vpop.f32.mrb[0].mxu0
  %v5305 = vadd.f32 %v5063, %v5304
  %v5306 = vpop.f32.mrb[0].mxu0
  %v5307 = vadd.f32 %v5067, %v5306
  %v5308 = vpop.f32.mrb[0].mxu0
  %v5309 = vadd.f32 %v5063, %v5308
  %v5310 = vpop.f32.mrb[0].mxu0
  %v5311 = vadd.f32 %v5067, %v5310
  %5312 = vdwg.mxu0
  %5313 = vmatprep.subr.bf16.mxu0 %v5152
  %5314 = vmatpush1.bf16.msra.mxu0 %v5151
  %5315 = vmatprep.subr.bf16.mxu0 %v5161
  %5316 = vmatpush1.bf16.msra.mxu0 %v5160
  %5317 = vmatprep.subr.bf16.mxu0 0
  %5318 = vmatpush1.bf16.msra.mxu0 0
  %5319 = vmatprep.subr.bf16.mxu0 0
  %5320 = vmatpush1.bf16.msra.mxu0 0
  %5321 = vmatprep.subr.bf16.mxu0 0
  %5322 = vmatpush1.bf16.msra.mxu0 0
  %5323 = vmatprep.subr.bf16.mxu0 0
  %5324 = vmatpush1.bf16.msra.mxu0 0
  %5325 = vmatprep.subr.bf16.mxu0 0
  %5326 = vmatpush1.bf16.msra.mxu0 0
  %5327 = vmatprep.subr.bf16.mxu0 0
  %5328 = vmatpush1.bf16.msra.mxu0 0
  %5329 = vmatprep.subr.bf16.mxu0 0
  %5330 = vmatpush1.bf16.msra.mxu0 0
  %5331 = vmatprep.subr.bf16.mxu0 0
  %5332 = vmatpush1.bf16.msra.mxu0 0
  %5333 = vmatprep.subr.bf16.mxu0 0
  %5334 = vmatpush1.bf16.msra.mxu0 0
  %5335 = vmatprep.subr.bf16.mxu0 0
  %5336 = vmatpush1.bf16.msra.mxu0 0
  %5337 = vmatprep.subr.bf16.mxu0 0
  %5338 = vmatpush1.bf16.msra.mxu0 0
  %5339 = vmatprep.subr.bf16.mxu0 0
  %5340 = vmatpush1.bf16.msra.mxu0 0
  %5341 = vmatprep.subr.bf16.mxu0 0
  %5342 = vmatpush1.bf16.msra.mxu0 0
  %5343 = vmatprep.subr.bf16.mxu0 0
  %5344 = vmatpush1.bf16.msra.mxu0 0
  %5345 = vmatprep.mubr.bf16.mxu0 0
  %5346 = vmatmul.mubr.bf16.gmra.mrb[0].mxu0 %v5182
  %v5347 = vpop.f32.mrb[0].mxu0
  %v5348 = vadd.f32 %v5071, %v5347
  %v5349 = vpop.f32.mrb[0].mxu0
  %v5350 = vadd.f32 %v5075, %v5349
  %v5351 = vpop.f32.mrb[0].mxu0
  %v5352 = vadd.f32 %v5071, %v5351
  %v5353 = vpop.f32.mrb[0].mxu0
  %v5354 = vadd.f32 %v5075, %v5353
  %5355 = vdwg.mxu0
  %5356 = vmatprep.subr.bf16.mxu0 0
  %5357 = vmatpush1.bf16.msra.mxu0 %v5153
  %5358 = vmatprep.subr.bf16.mxu0 0
  %5359 = vmatpush1.bf16.msra.mxu0 %v5162
  %5360 = vmatprep.subr.bf16.mxu0 0
  %5361 = vmatpush1.bf16.msra.mxu0 0
  %5362 = vmatprep.subr.bf16.mxu0 0
  %5363 = vmatpush1.bf16.msra.mxu0 0
  %5364 = vmatprep.subr.bf16.mxu0 0
  %5365 = vmatpush1.bf16.msra.mxu0 0
  %5366 = vmatprep.subr.bf16.mxu0 0
  %5367 = vmatpush1.bf16.msra.mxu0 0
  %5368 = vmatprep.subr.bf16.mxu0 0
  %5369 = vmatpush1.bf16.msra.mxu0 0
  %5370 = vmatprep.subr.bf16.mxu0 0
  %5371 = vmatpush1.bf16.msra.mxu0 0
  %5372 = vmatprep.subr.bf16.mxu0 0
  %5373 = vmatpush1.bf16.msra.mxu0 0
  %5374 = vmatprep.subr.bf16.mxu0 0
  %5375 = vmatpush1.bf16.msra.mxu0 0
  %5376 = vmatprep.subr.bf16.mxu0 0
  %5377 = vmatpush1.bf16.msra.mxu0 0
  %5378 = vmatprep.subr.bf16.mxu0 0
  %5379 = vmatpush1.bf16.msra.mxu0 0
  %5380 = vmatprep.subr.bf16.mxu0 0
  %5381 = vmatpush1.bf16.msra.mxu0 0
  %5382 = vmatprep.subr.bf16.mxu0 0
  %5383 = vmatpush1.bf16.msra.mxu0 0
  %5384 = vmatprep.subr.bf16.mxu0 0
  %5385 = vmatpush1.bf16.msra.mxu0 0
  %5386 = vmatprep.subr.bf16.mxu0 0
  %5387 = vmatpush1.bf16.msra.mxu0 0
  %5388 = vmatprep.mubr.bf16.mxu0 0
  %5389 = vmatmul.mubr.bf16.gmra.mrb[0].mxu0 %v5182
  %v5390 = vpop.f32.mrb[0].mxu0
  %v5391 = vadd.f32 %v5079, %v5390
  %v5392 = vpop.f32.mrb[0].mxu0
  %v5393 = vpop.f32.mrb[0].mxu0
  %v5394 = vadd.f32 %v5079, %v5393
  %v5395 = vpop.f32.mrb[0].mxu0
  %5396 = vdwg.mxu0
  %5397 = vst [vmem:[%s11] sm:$0xff] %v5219
  %5398 = vst [vmem:[%s11 + $0x8] sm:$0xff] %v5221
  %5399 = vst [vmem:[%s11 + $0x10] sm:$0xff] %v5262
  %5400 = vst [vmem:[%s11 + $0x18] sm:$0xff] %v5264
  %5401 = vst [vmem:[%s11 + $0x20] sm:$0xff] %v5305
  %5402 = vst [vmem:[%s11 + $0x28] sm:$0xff] %v5307
  %5403 = vst [vmem:[%s11 + $0x30] sm:$0xff] %v5348
  %5404 = vst [vmem:[%s11 + $0x38] sm:$0xff] %v5350
  %5405 = vst [vmem:[%s11 + $0x40] sm:$0xff] %v5391
  %5406 = vst [vmem:[%s11 + $0x48] sm:$0x1] %v5223
  %5407 = vst [vmem:[%s11 + $0x50] sm:$0x1] %v5225
  %5408 = vst [vmem:[%s11 + $0x58] sm:$0x1] %v5266
  %5409 = vst [vmem:[%s11 + $0x60] sm:$0x1] %v5268
  %5410 = vst [vmem:[%s11 + $0x68] sm:$0x1] %v5309
  %5411 = vst [vmem:[%s11 + $0x70] sm:$0x1] %v5311
  %5412 = vst [vmem:[%s11 + $0x78] sm:$0x1] %v5352
  %5413 = vst [vmem:[%s11 + $0x80] sm:$0x1] %v5354
  %5414 = vst [vmem:[%s11 + $0x88] sm:$0x1] %v5394
  // Predicated region
  $region54: #{mtlstm_forward.1} parent=0 // pred_check
    _
  $region55: #{mtlstm_forward.1} parent=0 // pred_check_branch
    %5416 = sbr.rel (0) target = $region57
  $region56: #{mtlstm_forward.1} parent=0 // pred_region
    _
  $region57: #{mtlstm_forward.1} parent=0 // pred_fallthru
    _
  // Predicated region
  $region58: #{mtlstm_forward.1} parent=0 // pred_check
    _
  $region59: #{mtlstm_forward.1} parent=0 // pred_check_branch
    %5418 = sbr.rel (0) target = $region61
  $region60: #{mtlstm_forward.1} parent=0 // pred_region
    _
  $region61: #{mtlstm_forward.1} parent=0 // pred_fallthru
    _

</llo_original>
